<compile_context>
chip_gen: v7x
topology: tpu7x:2x2x1
jax: 0.10.0
libtpu: 0.0.40
codegen_flags: <defaults>
</compile_context>

<pallas_src>
import numpy as np
import jax
import jax.numpy as jnp
from jax import lax
from jax.experimental import pallas as pl
from jax.experimental.pallas import tpu as pltpu

NEG_SLOPE = 0.01          # nn.LeakyReLU default
H_IN, W_IN = 50, 24       # input spatial dims (NCHW, C=1)
W_PAD = 16                # nn.ZeroPad2d(padding=(0, 16, 0, 0)) -> right pad
KH1, KW1 = 3, 20          # conv1 kernel
H1 = 48                   # conv1/conv2 output height
C1 = 64
C2 = 64
FC_IN = C2 * H1           # 3072
FC_H = 128
N_CLASSES = 2
KPAD = 128                # packed im2col row: p0(60) | 0(4) | p1(60) | 0(4)
OUT_PAD = 128             # lane-dense output width
TB_MAX = 256              # max batch rows per grid step (multiple of 16)


def _leaky(x):
    return jnp.where(x > 0, x, NEG_SLOPE * x)


def _round_up(a, b):
    return (a + b - 1) // b * b


def _choose_tb(n, tb_max=TB_MAX):
    # Batch rows per grid step: multiple of 16 (bf16 sublane packing), capped
    # at tb_max, and picked so the grid keeps >= 2 tiles when the batch allows
    # it (v7x has 2 TensorCores and batch is the only "parallel" grid axis).
    n16 = _round_up(max(n, 1), 16)
    if n16 <= 16:
        return 16
    return min(tb_max, _round_up((n16 + 1) // 2, 16))


# ---------------- fused Pallas kernel ----------------

def fused_kernel(p_ref, w1_ref, b1_ref, w2_ref, b2_ref,
                 wf1_ref, bf1_ref, wf2_ref, bf2_ref, wf3_ref, bf3_ref,
                 out_ref):
    tb = out_ref.shape[0]                      # batch tile size (static)
    p = p_ref[...]                             # bf16 [48*tb, 128], rows (h, b)

    # conv1: both width positions in one K=128 matmul (block-diag weight).
    a1 = _leaky(jnp.dot(p, w1_ref[...], preferred_element_type=jnp.float32)
                + b1_ref[...])                 # f32 [48*tb, 128]
    a1 = a1.astype(jnp.bfloat16)

    # conv2: kernel (1,2) -> single K=128 matmul.  The weight's 128 output
    # lanes are the 64 channels duplicated: [c | c] (same MXU cost as N=64).
    a2 = _leaky(jnp.dot(a1, w2_ref[...], preferred_element_type=jnp.float32)
                + b2_ref[...])                 # f32 [48*tb, 128] = [c | c]
    a2 = a2.astype(jnp.bfloat16)

    # TODO(synk): Dropout(p=0.2) layers are identity in eval mode; not modeled.

    # Repack conv output into one lane-dense [tb, 3072] block so fc1 is a
    # single K=3072 matmul.  Rows are ordered (h, b), so per-h slices are
    # sublane-tile aligned; a lane-select merges each even/odd h pair into
    # [c(h) | c(h+1)] (128 lanes), and one aligned concat builds the 3072-lane
    # row with feature order h*64 + c (matched by the wf1 permutation below).
    lane = lax.broadcasted_iota(jnp.int32, (tb, 2 * C2), 1)
    low = lane < C2
    pieces = []
    for h in range(0, H1, 2):
        even = a2[h * tb:(h + 1) * tb, :]      # [tb, 128] = [c(h)   | c(h)]
        odd = a2[(h + 1) * tb:(h + 2) * tb, :]  # [tb, 128] = [c(h+1) | c(h+1)]
        pieces.append(jnp.where(low, even, odd))          # [c(h) | c(h+1)]
    a2f = jnp.concatenate(pieces, axis=-1)     # bf16 [tb, 3072]

    # fc1 / fc2: bf16 matmuls, f32 bias + LeakyReLU.
    h1 = _leaky(jnp.dot(a2f, wf1_ref[...], preferred_element_type=jnp.float32)
                + bf1_ref[...])                # [tb, 128]
    h2 = _leaky(jnp.dot(h1.astype(jnp.bfloat16), wf2_ref[...],
                        preferred_element_type=jnp.float32)
                + bf2_ref[...])                # [tb, 128]

    # fc3 zero-padded to 128 lanes; padded lanes carry a -1e30 bias so the
    # softmax over 128 lanes equals Softmax(dim=1) over the 2 real classes.
    logits = (jnp.dot(h2.astype(jnp.bfloat16), wf3_ref[...],
                      preferred_element_type=jnp.float32)
              + bf3_ref[...])                  # f32 [tb, 128]
    m = jnp.max(logits, axis=1, keepdims=True)
    e = jnp.exp(logits - m)
    s = jnp.sum(e, axis=1, keepdims=True)
    out_ref[...] = e * pl.reciprocal(s, approx=True)


# ---------------- wrapper (glue in plain JAX) ----------------

def dnn_forward(x, params, tb_max=TB_MAX):
    (w1, b1, w2, b2, wf1, bf1, wf2, bf2, wf3, bf3) = params   # torch layouts
    n = x.shape[0]
    tb = _choose_tb(n, tb_max)
    pad_n = _round_up(n, tb)
    t = pad_n // tb
    rows = H1 * tb

    # ZeroPad2d((0, 16, 0, 0)): pad width on the right by 16; cast to bf16.
    xp = jnp.pad(x[:, 0], ((0, 0), (0, 0), (0, W_PAD))).astype(jnp.bfloat16)

    # im2col via shifted slices (no gather).  Width stride == kernel width,
    # so the two width windows are the two non-overlapping halves of xp.
    s0, s1, s2 = xp[:, 0:H1, :], xp[:, 1:H1 + 1, :], xp[:, 2:H1 + 2, :]
    p0 = jnp.concatenate([s0[:, :, :KW1], s1[:, :, :KW1], s2[:, :, :KW1]], -1)
    p1 = jnp.concatenate([s0[:, :, KW1:], s1[:, :, KW1:], s2[:, :, KW1:]], -1)
    z4 = jnp.zeros((n, H1, 4), jnp.bfloat16)
    pcat = jnp.concatenate([p0, z4, p1, z4], axis=-1)         # bf16 [N,48,128]
    pcat = jnp.pad(pcat, ((0, pad_n - n), (0, 0), (0, 0)))
    # rows ordered (tile, h, b): each grid step reads one contiguous block and
    # per-h row groups inside a tile stay sublane-tile aligned.
    pcat = pcat.reshape(t, tb, H1, KPAD).transpose(0, 2, 1, 3)
    pcat = pcat.reshape(t * rows, KPAD)

    # ---- weight re-layouts (glue); matmul operands in bf16, biases in f32 ----
    w1m = w1.reshape(C1, KH1 * KW1).T                          # [60, 64]
    wbig1 = jnp.zeros((KPAD, 2 * C1), jnp.float32)
    wbig1 = wbig1.at[0:60, 0:C1].set(w1m).at[64:124, C1:2 * C1].set(w1m)
    wbig1 = wbig1.astype(jnp.bfloat16)
    b1cat = jnp.concatenate([b1, b1]).reshape(1, 2 * C1).astype(jnp.float32)
    w2base = jnp.concatenate([w2[:, :, 0, 0].T, w2[:, :, 0, 1].T], 0)  # [128,64]
    w2dup = jnp.concatenate([w2base, w2base], axis=1).astype(jnp.bfloat16)
    b2dup = jnp.concatenate([b2, b2]).reshape(1, 2 * C2).astype(jnp.float32)
    # fc1 weight permuted so input feature index h*64 + c matches the packed
    # [tb, 3072] conv block (PyTorch's NCHW flatten index is c*48 + h).
    wf1r = (wf1.reshape(FC_H, C2, H1).transpose(2, 1, 0)
            .reshape(FC_IN, FC_H).astype(jnp.bfloat16))        # [3072, 128]
    bf1r = bf1.reshape(1, FC_H).astype(jnp.float32)
    wf2m = wf2.T.astype(jnp.bfloat16)
    bf2r = bf2.reshape(1, FC_H).astype(jnp.float32)
    wf3p = (jnp.zeros((FC_H, OUT_PAD), jnp.float32)
            .at[:, :N_CLASSES].set(wf3.T).astype(jnp.bfloat16))
    bf3p = jnp.full((1, OUT_PAD), -1e30, jnp.float32).at[0, :N_CLASSES].set(bf3)

    resident = lambda shape: pl.BlockSpec(shape, lambda i, _s=shape: (0,) * len(_s))

    flops = 2 * pad_n * (H1 * KPAD * 2 * C1 + H1 * 2 * C1 * 2 * C2
                         + FC_IN * FC_H + FC_H * FC_H + FC_H * OUT_PAD)
    weight_bytes = 2 * (KPAD * 2 * C1 + 2 * C1 * 2 * C2 + FC_IN * FC_H
                        + FC_H * FC_H + FC_H * OUT_PAD) + 4 * 5 * FC_H
    cost = pl.CostEstimate(flops=flops,
                           transcendentals=pad_n * OUT_PAD,
                           bytes_accessed=pcat.size * 2 + pad_n * OUT_PAD * 4
                                          + weight_bytes)

    out = pl.pallas_call(
        fused_kernel,
        out_shape=jax.ShapeDtypeStruct((pad_n, OUT_PAD), jnp.float32),
        grid=(t,),
        in_specs=[
            pl.BlockSpec((rows, KPAD), lambda i: (i, 0)),      # im2col patches
            resident((KPAD, 2 * C1)), resident((1, 2 * C1)),   # conv1
            resident((2 * C1, 2 * C2)), resident((1, 2 * C2)),  # conv2 (dup N)
            resident((FC_IN, FC_H)), resident((1, FC_H)),      # fc1
            resident((FC_H, FC_H)), resident((1, FC_H)),       # fc2
            resident((FC_H, OUT_PAD)), resident((1, OUT_PAD)),  # fc3
        ],
        out_specs=pl.BlockSpec((tb, OUT_PAD), lambda i: (i, 0)),
        compiler_params=pltpu.CompilerParams(
            dimension_semantics=("parallel",),
            vmem_limit_bytes=48 * 1024 * 1024),
        cost_estimate=cost,
    )(pcat, wbig1, b1cat, w2dup, b2dup, wf1r, bf1r, wf2m, bf2r, wf3p, bf3p)

    return out[:n, :N_CLASSES]


# ---------------- deterministic parameter init (PyTorch-default-style) ----------------

def init_params(key):
    ks = jax.random.split(key, 10)

    def u(k, shape, fan_in):
        b = 1.0 / np.sqrt(fan_in)
        return jax.random.uniform(k, shape, jnp.float32, -b, b)

    w1 = u(ks[0], (C1, 1, KH1, KW1), 1 * KH1 * KW1)
    b1 = u(ks[1], (C1,), 1 * KH1 * KW1)
    w2 = u(ks[2], (C2, C1, 1, 2), C1 * 2)
    b2 = u(ks[3], (C2,), C1 * 2)
    wf1 = u(ks[4], (FC_H, FC_IN), FC_IN)
    bf1 = u(ks[5], (FC_H,), FC_IN)
    wf2 = u(ks[6], (FC_H, FC_H), FC_H)
    bf2 = u(ks[7], (FC_H,), FC_H)
    wf3 = u(ks[8], (N_CLASSES, FC_H), FC_H)
    bf3 = u(ks[9], (N_CLASSES,), FC_H)
    return (w1, b1, w2, b2, wf1, bf1, wf2, bf2, wf3, bf3)


# ---------------- pure-JAX f32 reference (for correctness check) ----------------

def dnn_reference(x, params):
    (w1, b1, w2, b2, wf1, bf1, wf2, bf2, wf3, bf3) = params
    xp = jnp.pad(x, ((0, 0), (0, 0), (0, 0), (0, W_PAD)))
    y = lax.conv_general_dilated(xp, w1, (1, KW1), 'VALID',
                                 dimension_numbers=('NCHW', 'OIHW', 'NCHW'))
    y = _leaky(y + b1[None, :, None, None])
    y = lax.conv_general_dilated(y, w2, (1, 1), 'VALID',
                                 dimension_numbers=('NCHW', 'OIHW', 'NCHW'))
    y = _leaky(y + b2[None, :, None, None])
    flat = y.reshape(x.shape[0], -1)
    h = _leaky(flat @ wf1.T + bf1)
    h = _leaky(h @ wf2.T + bf2)
    logits = h @ wf3.T + bf3
    return jax.nn.softmax(logits, axis=1)


if __name__ == "__main__":
    key = jax.random.PRNGKey(0)
    kx, kp = jax.random.split(key)
    params = init_params(kp)
    fwd = jax.jit(dnn_forward)

    # Primary small-shape check (single batch tile).
    N = 2
    x = jax.random.normal(kx, (N, 1, H_IN, W_IN), jnp.float32)
    out = jax.block_until_ready(fwd(x, params))
    ref = dnn_reference(x, params)
    assert out.shape == (N, N_CLASSES)
    np.testing.assert_allclose(np.asarray(out), np.asarray(ref),
                               rtol=5e-2, atol=2e-2)

    # Multi-tile grid check (exercises batch padding + grid=(t>=2,)).
    N2 = 40
    x2 = jax.random.normal(kx, (N2, 1, H_IN, W_IN), jnp.float32)
    out2 = jax.block_until_ready(fwd(x2, params))
    ref2 = dnn_reference(x2, params)
    assert out2.shape == (N2, N_CLASSES)
    np.testing.assert_allclose(np.asarray(out2), np.asarray(ref2),
                               rtol=5e-2, atol=2e-2)

    print("KERNEL_OK")
</pallas_src>

<mosaic_0001>
module attributes {stable_mosaic.version = 11 : i64} {
  func.func @fused_kernel(%arg0: i32, %arg1: memref<768x128xbf16, #tpu.memory_space<vmem>>, %arg2: memref<128x128xbf16, #tpu.memory_space<vmem>>, %arg3: memref<1x128xf32, #tpu.memory_space<vmem>>, %arg4: memref<128x128xbf16, #tpu.memory_space<vmem>>, %arg5: memref<1x128xf32, #tpu.memory_space<vmem>>, %arg6: memref<3072x128xbf16, #tpu.memory_space<vmem>>, %arg7: memref<1x128xf32, #tpu.memory_space<vmem>>, %arg8: memref<128x128xbf16, #tpu.memory_space<vmem>>, %arg9: memref<1x128xf32, #tpu.memory_space<vmem>>, %arg10: memref<128x128xbf16, #tpu.memory_space<vmem>>, %arg11: memref<1x128xf32, #tpu.memory_space<vmem>>, %arg12: memref<16x128xf32, #tpu.memory_space<vmem>>) attributes {dimension_semantics = [#tpu.dimension_semantics<parallel>], iteration_bounds = array<i64: 1>, scalar_prefetch = 0 : i64, scratch_operands = 0 : i64, tpu.core_type = #tpu.core_type<tc>, window_params = [{transform_indices = @transform_0, window_bounds = array<i64: 768, 128>}, {pipeline_mode = #tpu.pipeline_mode<synchronous>, transform_indices = @transform_1, window_bounds = array<i64: 128, 128>}, {pipeline_mode = #tpu.pipeline_mode<synchronous>, transform_indices = @transform_2, window_bounds = array<i64: 1, 128>}, {pipeline_mode = #tpu.pipeline_mode<synchronous>, transform_indices = @transform_3, window_bounds = array<i64: 128, 128>}, {pipeline_mode = #tpu.pipeline_mode<synchronous>, transform_indices = @transform_4, window_bounds = array<i64: 1, 128>}, {pipeline_mode = #tpu.pipeline_mode<synchronous>, transform_indices = @transform_5, window_bounds = array<i64: 3072, 128>}, {pipeline_mode = #tpu.pipeline_mode<synchronous>, transform_indices = @transform_6, window_bounds = array<i64: 1, 128>}, {pipeline_mode = #tpu.pipeline_mode<synchronous>, transform_indices = @transform_7, window_bounds = array<i64: 128, 128>}, {pipeline_mode = #tpu.pipeline_mode<synchronous>, transform_indices = @transform_8, window_bounds = array<i64: 1, 128>}, {pipeline_mode = #tpu.pipeline_mode<synchronous>, transform_indices = @transform_9, window_bounds = array<i64: 128, 128>}, {pipeline_mode = #tpu.pipeline_mode<synchronous>, transform_indices = @transform_10, window_bounds = array<i64: 1, 128>}, {transform_indices = @transform_11, window_bounds = array<i64: 16, 128>}]} {
    %c0 = arith.constant 0 : index
    %c0_0 = arith.constant 0 : index
    %0 = vector.load %arg1[%c0, %c0_0] : memref<768x128xbf16, #tpu.memory_space<vmem>>, vector<768x128xbf16>
    %c0_1 = arith.constant 0 : index
    %c0_2 = arith.constant 0 : index
    %1 = vector.load %arg2[%c0_1, %c0_2] : memref<128x128xbf16, #tpu.memory_space<vmem>>, vector<128x128xbf16>
    %cst = arith.constant dense<0.000000e+00> : vector<768x128xf32>
    %2 = tpu.matmul %0, %1, %cst {dimension_numbers = #tpu.dot_dimension_numbers<[1], [0], [0], [1], [0, 0, 1, 1], [], []>} : vector<768x128xbf16>, vector<128x128xbf16>, vector<768x128xf32> -> vector<768x128xf32>
    %c0_3 = arith.constant 0 : index
    %c0_4 = arith.constant 0 : index
    %3 = vector.load %arg3[%c0_3, %c0_4] : memref<1x128xf32, #tpu.memory_space<vmem>>, vector<1x128xf32>
    %4 = vector.broadcast %3 : vector<1x128xf32> to vector<768x128xf32>
    %5 = arith.addf %2, %4 : vector<768x128xf32>
    %cst_5 = arith.constant 0.000000e+00 : f32
    %6 = vector.broadcast %cst_5 : f32 to vector<768x128xf32>
    %7 = arith.cmpf ogt, %5, %6 : vector<768x128xf32>
    %cst_6 = arith.constant 0.00999999977 : f32
    %8 = vector.broadcast %cst_6 : f32 to vector<768x128xf32>
    %9 = arith.mulf %8, %5 : vector<768x128xf32>
    %10 = arith.select %7, %5, %9 : vector<768x128xi1>, vector<768x128xf32>
    %11 = arith.truncf %10 : vector<768x128xf32> to vector<768x128xbf16>
    %c0_7 = arith.constant 0 : index
    %c0_8 = arith.constant 0 : index
    %12 = vector.load %arg4[%c0_7, %c0_8] : memref<128x128xbf16, #tpu.memory_space<vmem>>, vector<128x128xbf16>
    %cst_9 = arith.constant dense<0.000000e+00> : vector<768x128xf32>
    %13 = tpu.matmul %11, %12, %cst_9 {dimension_numbers = #tpu.dot_dimension_numbers<[1], [0], [0], [1], [0, 0, 1, 1], [], []>} : vector<768x128xbf16>, vector<128x128xbf16>, vector<768x128xf32> -> vector<768x128xf32>
    %c0_10 = arith.constant 0 : index
    %c0_11 = arith.constant 0 : index
    %14 = vector.load %arg5[%c0_10, %c0_11] : memref<1x128xf32, #tpu.memory_space<vmem>>, vector<1x128xf32>
    %15 = vector.broadcast %14 : vector<1x128xf32> to vector<768x128xf32>
    %16 = arith.addf %13, %15 : vector<768x128xf32>
    %cst_12 = arith.constant 0.000000e+00 : f32
    %17 = vector.broadcast %cst_12 : f32 to vector<768x128xf32>
    %18 = arith.cmpf ogt, %16, %17 : vector<768x128xf32>
    %cst_13 = arith.constant 0.00999999977 : f32
    %19 = vector.broadcast %cst_13 : f32 to vector<768x128xf32>
    %20 = arith.mulf %19, %16 : vector<768x128xf32>
    %21 = arith.select %18, %16, %20 : vector<768x128xi1>, vector<768x128xf32>
    %22 = arith.truncf %21 : vector<768x128xf32> to vector<768x128xbf16>
    %23 = tpu.iota {dimensions = array<i32: 1>} : vector<16x128xi32>
    %c64_i32 = arith.constant 64 : i32
    %24 = vector.broadcast %c64_i32 : i32 to vector<16x128xi32>
    %25 = arith.cmpi slt, %23, %24 : vector<16x128xi32>
    %26 = vector.extract_strided_slice %22 {offsets = [0, 0], sizes = [16, 128], strides = [1, 1]} : vector<768x128xbf16> to vector<16x128xbf16>
    %27 = vector.extract_strided_slice %22 {offsets = [16, 0], sizes = [16, 128], strides = [1, 1]} : vector<768x128xbf16> to vector<16x128xbf16>
    %28 = arith.select %25, %26, %27 : vector<16x128xi1>, vector<16x128xbf16>
    %29 = vector.extract_strided_slice %22 {offsets = [32, 0], sizes = [16, 128], strides = [1, 1]} : vector<768x128xbf16> to vector<16x128xbf16>
    %30 = vector.extract_strided_slice %22 {offsets = [48, 0], sizes = [16, 128], strides = [1, 1]} : vector<768x128xbf16> to vector<16x128xbf16>
    %31 = arith.select %25, %29, %30 : vector<16x128xi1>, vector<16x128xbf16>
    %32 = vector.extract_strided_slice %22 {offsets = [64, 0], sizes = [16, 128], strides = [1, 1]} : vector<768x128xbf16> to vector<16x128xbf16>
    %33 = vector.extract_strided_slice %22 {offsets = [80, 0], sizes = [16, 128], strides = [1, 1]} : vector<768x128xbf16> to vector<16x128xbf16>
    %34 = arith.select %25, %32, %33 : vector<16x128xi1>, vector<16x128xbf16>
    %35 = vector.extract_strided_slice %22 {offsets = [96, 0], sizes = [16, 128], strides = [1, 1]} : vector<768x128xbf16> to vector<16x128xbf16>
    %36 = vector.extract_strided_slice %22 {offsets = [112, 0], sizes = [16, 128], strides = [1, 1]} : vector<768x128xbf16> to vector<16x128xbf16>
    %37 = arith.select %25, %35, %36 : vector<16x128xi1>, vector<16x128xbf16>
    %38 = vector.extract_strided_slice %22 {offsets = [128, 0], sizes = [16, 128], strides = [1, 1]} : vector<768x128xbf16> to vector<16x128xbf16>
    %39 = vector.extract_strided_slice %22 {offsets = [144, 0], sizes = [16, 128], strides = [1, 1]} : vector<768x128xbf16> to vector<16x128xbf16>
    %40 = arith.select %25, %38, %39 : vector<16x128xi1>, vector<16x128xbf16>
    %41 = vector.extract_strided_slice %22 {offsets = [160, 0], sizes = [16, 128], strides = [1, 1]} : vector<768x128xbf16> to vector<16x128xbf16>
    %42 = vector.extract_strided_slice %22 {offsets = [176, 0], sizes = [16, 128], strides = [1, 1]} : vector<768x128xbf16> to vector<16x128xbf16>
    %43 = arith.select %25, %41, %42 : vector<16x128xi1>, vector<16x128xbf16>
    %44 = vector.extract_strided_slice %22 {offsets = [192, 0], sizes = [16, 128], strides = [1, 1]} : vector<768x128xbf16> to vector<16x128xbf16>
    %45 = vector.extract_strided_slice %22 {offsets = [208, 0], sizes = [16, 128], strides = [1, 1]} : vector<768x128xbf16> to vector<16x128xbf16>
    %46 = arith.select %25, %44, %45 : vector<16x128xi1>, vector<16x128xbf16>
    %47 = vector.extract_strided_slice %22 {offsets = [224, 0], sizes = [16, 128], strides = [1, 1]} : vector<768x128xbf16> to vector<16x128xbf16>
    %48 = vector.extract_strided_slice %22 {offsets = [240, 0], sizes = [16, 128], strides = [1, 1]} : vector<768x128xbf16> to vector<16x128xbf16>
    %49 = arith.select %25, %47, %48 : vector<16x128xi1>, vector<16x128xbf16>
    %50 = vector.extract_strided_slice %22 {offsets = [256, 0], sizes = [16, 128], strides = [1, 1]} : vector<768x128xbf16> to vector<16x128xbf16>
    %51 = vector.extract_strided_slice %22 {offsets = [272, 0], sizes = [16, 128], strides = [1, 1]} : vector<768x128xbf16> to vector<16x128xbf16>
    %52 = arith.select %25, %50, %51 : vector<16x128xi1>, vector<16x128xbf16>
    %53 = vector.extract_strided_slice %22 {offsets = [288, 0], sizes = [16, 128], strides = [1, 1]} : vector<768x128xbf16> to vector<16x128xbf16>
    %54 = vector.extract_strided_slice %22 {offsets = [304, 0], sizes = [16, 128], strides = [1, 1]} : vector<768x128xbf16> to vector<16x128xbf16>
    %55 = arith.select %25, %53, %54 : vector<16x128xi1>, vector<16x128xbf16>
    %56 = vector.extract_strided_slice %22 {offsets = [320, 0], sizes = [16, 128], strides = [1, 1]} : vector<768x128xbf16> to vector<16x128xbf16>
    %57 = vector.extract_strided_slice %22 {offsets = [336, 0], sizes = [16, 128], strides = [1, 1]} : vector<768x128xbf16> to vector<16x128xbf16>
    %58 = arith.select %25, %56, %57 : vector<16x128xi1>, vector<16x128xbf16>
    %59 = vector.extract_strided_slice %22 {offsets = [352, 0], sizes = [16, 128], strides = [1, 1]} : vector<768x128xbf16> to vector<16x128xbf16>
    %60 = vector.extract_strided_slice %22 {offsets = [368, 0], sizes = [16, 128], strides = [1, 1]} : vector<768x128xbf16> to vector<16x128xbf16>
    %61 = arith.select %25, %59, %60 : vector<16x128xi1>, vector<16x128xbf16>
    %62 = vector.extract_strided_slice %22 {offsets = [384, 0], sizes = [16, 128], strides = [1, 1]} : vector<768x128xbf16> to vector<16x128xbf16>
    %63 = vector.extract_strided_slice %22 {offsets = [400, 0], sizes = [16, 128], strides = [1, 1]} : vector<768x128xbf16> to vector<16x128xbf16>
    %64 = arith.select %25, %62, %63 : vector<16x128xi1>, vector<16x128xbf16>
    %65 = vector.extract_strided_slice %22 {offsets = [416, 0], sizes = [16, 128], strides = [1, 1]} : vector<768x128xbf16> to vector<16x128xbf16>
    %66 = vector.extract_strided_slice %22 {offsets = [432, 0], sizes = [16, 128], strides = [1, 1]} : vector<768x128xbf16> to vector<16x128xbf16>
    %67 = arith.select %25, %65, %66 : vector<16x128xi1>, vector<16x128xbf16>
    %68 = vector.extract_strided_slice %22 {offsets = [448, 0], sizes = [16, 128], strides = [1, 1]} : vector<768x128xbf16> to vector<16x128xbf16>
    %69 = vector.extract_strided_slice %22 {offsets = [464, 0], sizes = [16, 128], strides = [1, 1]} : vector<768x128xbf16> to vector<16x128xbf16>
    %70 = arith.select %25, %68, %69 : vector<16x128xi1>, vector<16x128xbf16>
    %71 = vector.extract_strided_slice %22 {offsets = [480, 0], sizes = [16, 128], strides = [1, 1]} : vector<768x128xbf16> to vector<16x128xbf16>
    %72 = vector.extract_strided_slice %22 {offsets = [496, 0], sizes = [16, 128], strides = [1, 1]} : vector<768x128xbf16> to vector<16x128xbf16>
    %73 = arith.select %25, %71, %72 : vector<16x128xi1>, vector<16x128xbf16>
    %74 = vector.extract_strided_slice %22 {offsets = [512, 0], sizes = [16, 128], strides = [1, 1]} : vector<768x128xbf16> to vector<16x128xbf16>
    %75 = vector.extract_strided_slice %22 {offsets = [528, 0], sizes = [16, 128], strides = [1, 1]} : vector<768x128xbf16> to vector<16x128xbf16>
    %76 = arith.select %25, %74, %75 : vector<16x128xi1>, vector<16x128xbf16>
    %77 = vector.extract_strided_slice %22 {offsets = [544, 0], sizes = [16, 128], strides = [1, 1]} : vector<768x128xbf16> to vector<16x128xbf16>
    %78 = vector.extract_strided_slice %22 {offsets = [560, 0], sizes = [16, 128], strides = [1, 1]} : vector<768x128xbf16> to vector<16x128xbf16>
    %79 = arith.select %25, %77, %78 : vector<16x128xi1>, vector<16x128xbf16>
    %80 = vector.extract_strided_slice %22 {offsets = [576, 0], sizes = [16, 128], strides = [1, 1]} : vector<768x128xbf16> to vector<16x128xbf16>
    %81 = vector.extract_strided_slice %22 {offsets = [592, 0], sizes = [16, 128], strides = [1, 1]} : vector<768x128xbf16> to vector<16x128xbf16>
    %82 = arith.select %25, %80, %81 : vector<16x128xi1>, vector<16x128xbf16>
    %83 = vector.extract_strided_slice %22 {offsets = [608, 0], sizes = [16, 128], strides = [1, 1]} : vector<768x128xbf16> to vector<16x128xbf16>
    %84 = vector.extract_strided_slice %22 {offsets = [624, 0], sizes = [16, 128], strides = [1, 1]} : vector<768x128xbf16> to vector<16x128xbf16>
    %85 = arith.select %25, %83, %84 : vector<16x128xi1>, vector<16x128xbf16>
    %86 = vector.extract_strided_slice %22 {offsets = [640, 0], sizes = [16, 128], strides = [1, 1]} : vector<768x128xbf16> to vector<16x128xbf16>
    %87 = vector.extract_strided_slice %22 {offsets = [656, 0], sizes = [16, 128], strides = [1, 1]} : vector<768x128xbf16> to vector<16x128xbf16>
    %88 = arith.select %25, %86, %87 : vector<16x128xi1>, vector<16x128xbf16>
    %89 = vector.extract_strided_slice %22 {offsets = [672, 0], sizes = [16, 128], strides = [1, 1]} : vector<768x128xbf16> to vector<16x128xbf16>
    %90 = vector.extract_strided_slice %22 {offsets = [688, 0], sizes = [16, 128], strides = [1, 1]} : vector<768x128xbf16> to vector<16x128xbf16>
    %91 = arith.select %25, %89, %90 : vector<16x128xi1>, vector<16x128xbf16>
    %92 = vector.extract_strided_slice %22 {offsets = [704, 0], sizes = [16, 128], strides = [1, 1]} : vector<768x128xbf16> to vector<16x128xbf16>
    %93 = vector.extract_strided_slice %22 {offsets = [720, 0], sizes = [16, 128], strides = [1, 1]} : vector<768x128xbf16> to vector<16x128xbf16>
    %94 = arith.select %25, %92, %93 : vector<16x128xi1>, vector<16x128xbf16>
    %95 = vector.extract_strided_slice %22 {offsets = [736, 0], sizes = [16, 128], strides = [1, 1]} : vector<768x128xbf16> to vector<16x128xbf16>
    %96 = vector.extract_strided_slice %22 {offsets = [752, 0], sizes = [16, 128], strides = [1, 1]} : vector<768x128xbf16> to vector<16x128xbf16>
    %97 = arith.select %25, %95, %96 : vector<16x128xi1>, vector<16x128xbf16>
    %98 = tpu.concatenate %28, %31, %34, %37, %40, %43, %46, %49, %52, %55, %58, %61, %64, %67, %70, %73 in 1 : vector<16x128xbf16>, vector<16x128xbf16>, vector<16x128xbf16>, vector<16x128xbf16>, vector<16x128xbf16>, vector<16x128xbf16>, vector<16x128xbf16>, vector<16x128xbf16>, vector<16x128xbf16>, vector<16x128xbf16>, vector<16x128xbf16>, vector<16x128xbf16>, vector<16x128xbf16>, vector<16x128xbf16>, vector<16x128xbf16>, vector<16x128xbf16> -> vector<16x2048xbf16>
    %99 = tpu.concatenate %76, %79, %82, %85, %88, %91, %94, %97 in 1 : vector<16x128xbf16>, vector<16x128xbf16>, vector<16x128xbf16>, vector<16x128xbf16>, vector<16x128xbf16>, vector<16x128xbf16>, vector<16x128xbf16>, vector<16x128xbf16> -> vector<16x1024xbf16>
    %100 = tpu.concatenate %98, %99 in 1 : vector<16x2048xbf16>, vector<16x1024xbf16> -> vector<16x3072xbf16>
    %c0_14 = arith.constant 0 : index
    %c0_15 = arith.constant 0 : index
    %101 = vector.load %arg6[%c0_14, %c0_15] : memref<3072x128xbf16, #tpu.memory_space<vmem>>, vector<3072x128xbf16>
    %cst_16 = arith.constant dense<0.000000e+00> : vector<16x128xf32>
    %102 = tpu.matmul %100, %101, %cst_16 {dimension_numbers = #tpu.dot_dimension_numbers<[1], [0], [0], [1], [0, 0, 1, 1], [], []>} : vector<16x3072xbf16>, vector<3072x128xbf16>, vector<16x128xf32> -> vector<16x128xf32>
    %c0_17 = arith.constant 0 : index
    %c0_18 = arith.constant 0 : index
    %103 = vector.load %arg7[%c0_17, %c0_18] : memref<1x128xf32, #tpu.memory_space<vmem>>, vector<1x128xf32>
    %104 = vector.broadcast %103 : vector<1x128xf32> to vector<16x128xf32>
    %105 = arith.addf %102, %104 : vector<16x128xf32>
    %cst_19 = arith.constant 0.000000e+00 : f32
    %106 = vector.broadcast %cst_19 : f32 to vector<16x128xf32>
    %107 = arith.cmpf ogt, %105, %106 : vector<16x128xf32>
    %cst_20 = arith.constant 0.00999999977 : f32
    %108 = vector.broadcast %cst_20 : f32 to vector<16x128xf32>
    %109 = arith.mulf %108, %105 : vector<16x128xf32>
    %110 = arith.select %107, %105, %109 : vector<16x128xi1>, vector<16x128xf32>
    %111 = arith.truncf %110 : vector<16x128xf32> to vector<16x128xbf16>
    %c0_21 = arith.constant 0 : index
    %c0_22 = arith.constant 0 : index
    %112 = vector.load %arg8[%c0_21, %c0_22] : memref<128x128xbf16, #tpu.memory_space<vmem>>, vector<128x128xbf16>
    %cst_23 = arith.constant dense<0.000000e+00> : vector<16x128xf32>
    %113 = tpu.matmul %111, %112, %cst_23 {dimension_numbers = #tpu.dot_dimension_numbers<[1], [0], [0], [1], [0, 0, 1, 1], [], []>} : vector<16x128xbf16>, vector<128x128xbf16>, vector<16x128xf32> -> vector<16x128xf32>
    %c0_24 = arith.constant 0 : index
    %c0_25 = arith.constant 0 : index
    %114 = vector.load %arg9[%c0_24, %c0_25] : memref<1x128xf32, #tpu.memory_space<vmem>>, vector<1x128xf32>
    %115 = vector.broadcast %114 : vector<1x128xf32> to vector<16x128xf32>
    %116 = arith.addf %113, %115 : vector<16x128xf32>
    %cst_26 = arith.constant 0.000000e+00 : f32
    %117 = vector.broadcast %cst_26 : f32 to vector<16x128xf32>
    %118 = arith.cmpf ogt, %116, %117 : vector<16x128xf32>
    %cst_27 = arith.constant 0.00999999977 : f32
    %119 = vector.broadcast %cst_27 : f32 to vector<16x128xf32>
    %120 = arith.mulf %119, %116 : vector<16x128xf32>
    %121 = arith.select %118, %116, %120 : vector<16x128xi1>, vector<16x128xf32>
    %122 = arith.truncf %121 : vector<16x128xf32> to vector<16x128xbf16>
    %c0_28 = arith.constant 0 : index
    %c0_29 = arith.constant 0 : index
    %123 = vector.load %arg10[%c0_28, %c0_29] : memref<128x128xbf16, #tpu.memory_space<vmem>>, vector<128x128xbf16>
    %cst_30 = arith.constant dense<0.000000e+00> : vector<16x128xf32>
    %124 = tpu.matmul %122, %123, %cst_30 {dimension_numbers = #tpu.dot_dimension_numbers<[1], [0], [0], [1], [0, 0, 1, 1], [], []>} : vector<16x128xbf16>, vector<128x128xbf16>, vector<16x128xf32> -> vector<16x128xf32>
    %c0_31 = arith.constant 0 : index
    %c0_32 = arith.constant 0 : index
    %125 = vector.load %arg11[%c0_31, %c0_32] : memref<1x128xf32, #tpu.memory_space<vmem>>, vector<1x128xf32>
    %126 = vector.broadcast %125 : vector<1x128xf32> to vector<16x128xf32>
    %127 = arith.addf %124, %126 : vector<16x128xf32>
    %cst_33 = arith.constant dense<0xFF800000> : vector<16xf32>
    %128 = vector.multi_reduction <maximumf>, %127, %cst_33 [1] : vector<16x128xf32> to vector<16xf32>
    %129 = vector.shape_cast %128 : vector<16xf32> to vector<16x1xf32>
    %130 = vector.broadcast %129 : vector<16x1xf32> to vector<16x128xf32>
    %131 = arith.subf %127, %130 : vector<16x128xf32>
    %132 = math.exp %131 : vector<16x128xf32>
    %cst_34 = arith.constant dense<0.000000e+00> : vector<16xf32>
    %133 = vector.multi_reduction <add>, %132, %cst_34 [1] : vector<16x128xf32> to vector<16xf32>
    %134 = vector.shape_cast %133 : vector<16xf32> to vector<16x1xf32>
    %135 = tpu.reciprocal %134 {approx = true} : vector<16x1xf32> -> vector<16x1xf32>
    %136 = vector.broadcast %135 : vector<16x1xf32> to vector<16x128xf32>
    %137 = arith.mulf %132, %136 : vector<16x128xf32>
    %c0_35 = arith.constant 0 : index
    %c0_36 = arith.constant 0 : index
    %138 = vector.load %arg12[%c0_35, %c0_36] : memref<16x128xf32, #tpu.memory_space<vmem>>, vector<16x128xf32>
    tpu.vector_store %arg12[%c0_35, %c0_36], %137 {strides = array<i32>} : memref<16x128xf32, #tpu.memory_space<vmem>>, vector<16x128xf32>,
    return
  }
  func.func @transform_0(%arg0: i32) -> (i32, i32) {
    %c0_i32 = arith.constant 0 : i32
    %c0_i32_0 = arith.constant 0 : i32
    return %arg0, %c0_i32 : i32, i32
  }
  func.func @transform_1(%arg0: i32) -> (i32, i32) {
    %c0_i32 = arith.constant 0 : i32
    %c0_i32_0 = arith.constant 0 : i32
    %c0_i32_1 = arith.constant 0 : i32
    return %c0_i32, %c0_i32_0 : i32, i32
  }
  func.func @transform_2(%arg0: i32) -> (i32, i32) {
    %c0_i32 = arith.constant 0 : i32
    %c0_i32_0 = arith.constant 0 : i32
    %c0_i32_1 = arith.constant 0 : i32
    return %c0_i32, %c0_i32_0 : i32, i32
  }
  func.func @transform_3(%arg0: i32) -> (i32, i32) {
    %c0_i32 = arith.constant 0 : i32
    %c0_i32_0 = arith.constant 0 : i32
    %c0_i32_1 = arith.constant 0 : i32
    return %c0_i32, %c0_i32_0 : i32, i32
  }
  func.func @transform_4(%arg0: i32) -> (i32, i32) {
    %c0_i32 = arith.constant 0 : i32
    %c0_i32_0 = arith.constant 0 : i32
    %c0_i32_1 = arith.constant 0 : i32
    return %c0_i32, %c0_i32_0 : i32, i32
  }
  func.func @transform_5(%arg0: i32) -> (i32, i32) {
    %c0_i32 = arith.constant 0 : i32
    %c0_i32_0 = arith.constant 0 : i32
    %c0_i32_1 = arith.constant 0 : i32
    return %c0_i32, %c0_i32_0 : i32, i32
  }
  func.func @transform_6(%arg0: i32) -> (i32, i32) {
    %c0_i32 = arith.constant 0 : i32
    %c0_i32_0 = arith.constant 0 : i32
    %c0_i32_1 = arith.constant 0 : i32
    return %c0_i32, %c0_i32_0 : i32, i32
  }
  func.func @transform_7(%arg0: i32) -> (i32, i32) {
    %c0_i32 = arith.constant 0 : i32
    %c0_i32_0 = arith.constant 0 : i32
    %c0_i32_1 = arith.constant 0 : i32
    return %c0_i32, %c0_i32_0 : i32, i32
  }
  func.func @transform_8(%arg0: i32) -> (i32, i32) {
    %c0_i32 = arith.constant 0 : i32
    %c0_i32_0 = arith.constant 0 : i32
    %c0_i32_1 = arith.constant 0 : i32
    return %c0_i32, %c0_i32_0 : i32, i32
  }
  func.func @transform_9(%arg0: i32) -> (i32, i32) {
    %c0_i32 = arith.constant 0 : i32
    %c0_i32_0 = arith.constant 0 : i32
    %c0_i32_1 = arith.constant 0 : i32
    return %c0_i32, %c0_i32_0 : i32, i32
  }
  func.func @transform_10(%arg0: i32) -> (i32, i32) {
    %c0_i32 = arith.constant 0 : i32
    %c0_i32_0 = arith.constant 0 : i32
    %c0_i32_1 = arith.constant 0 : i32
    return %c0_i32, %c0_i32_0 : i32, i32
  }
  func.func @transform_11(%arg0: i32) -> (i32, i32) {
    %c0_i32 = arith.constant 0 : i32
    %c0_i32_0 = arith.constant 0 : i32
    return %arg0, %c0_i32 : i32, i32
  }
}

</mosaic_0001>

<llo_original>
// kernel: dnn_forward.1
$region0: #{dnn_forward.1}
  #allocation0 [shape = 'u32[]', space=smem, size = 0x4, offset = 0x4, fixed_abs, tag = 'smem constant byte address 0x4 - core index']
  #allocation1 [shape = 'u32[144,128]{1,0:T(1,128)}', space=vmem, size = 0x12000, scoped, tag = 'internal scratch']
  %s0 = inlined_call_operand.vmem [shape: bf16[768,128], index: 0, kind: input, shape index: {}]
  %s1 = inlined_call_operand.vmem [shape: bf16[128,128], index: 1, kind: input, shape index: {}]
  %s2 = inlined_call_operand.vmem [shape: f32[1,128], index: 2, kind: input, shape index: {}]
  %s3 = inlined_call_operand.vmem [shape: bf16[128,128], index: 3, kind: input, shape index: {}]
  %s4 = inlined_call_operand.vmem [shape: f32[1,128], index: 4, kind: input, shape index: {}]
  %s5 = inlined_call_operand.vmem [shape: bf16[3072,128], index: 5, kind: input, shape index: {}]
  %s6 = inlined_call_operand.vmem [shape: f32[1,128], index: 6, kind: input, shape index: {}]
  %s7 = inlined_call_operand.vmem [shape: bf16[128,128], index: 7, kind: input, shape index: {}]
  %s8 = inlined_call_operand.vmem [shape: f32[1,128], index: 8, kind: input, shape index: {}]
  %s9 = inlined_call_operand.vmem [shape: bf16[128,128], index: 9, kind: input, shape index: {}]
  %s10 = inlined_call_operand.vmem [shape: f32[1,128], index: 10, kind: input, shape index: {}]
  %s11 = inlined_call_operand.vmem [shape: f32[16,128], index: 11, kind: output, shape index: {}]
  %s12 = sld [smem:[#allocation0]]
  $region54: #{dnn_forward.1} parent=0
    _
  %s14 = ssub.s32 1, %s12
  %s15 = scalar_select 0, %s14, %s12
  // Predicated region
  $region2: #{dnn_forward.1} parent=0 // pred_check
    _
  $region3: #{dnn_forward.1} parent=0 // pred_check_branch
    %17 = sbr.rel (0) target = $region5
  $region4: #{dnn_forward.1} parent=0 // pred_region
    _
  $region5: #{dnn_forward.1} parent=0 // pred_fallthru
    _
  // Predicated region
  $region6: #{dnn_forward.1} parent=0 // pred_check
    _
  $region7: #{dnn_forward.1} parent=0 // pred_check_branch
    %19 = sbr.rel (0) target = $region9
  $region8: #{dnn_forward.1} parent=0 // pred_region
    _
  $region9: #{dnn_forward.1} parent=0 // pred_fallthru
    _
  // Predicated region
  $region10: #{dnn_forward.1} parent=0 // pred_check
    _
  $region11: #{dnn_forward.1} parent=0 // pred_check_branch
    %21 = sbr.rel (0) target = $region13
  $region12: #{dnn_forward.1} parent=0 // pred_region
    _
  $region13: #{dnn_forward.1} parent=0 // pred_fallthru
    _
  // Predicated region
  $region14: #{dnn_forward.1} parent=0 // pred_check
    _
  $region15: #{dnn_forward.1} parent=0 // pred_check_branch
    %23 = sbr.rel (0) target = $region17
  $region16: #{dnn_forward.1} parent=0 // pred_region
    _
  $region17: #{dnn_forward.1} parent=0 // pred_fallthru
    _
  // Predicated region
  $region18: #{dnn_forward.1} parent=0 // pred_check
    _
  $region19: #{dnn_forward.1} parent=0 // pred_check_branch
    %25 = sbr.rel (0) target = $region21
  $region20: #{dnn_forward.1} parent=0 // pred_region
    _
  $region21: #{dnn_forward.1} parent=0 // pred_fallthru
    _
  // Predicated region
  $region22: #{dnn_forward.1} parent=0 // pred_check
    _
  $region23: #{dnn_forward.1} parent=0 // pred_check_branch
    %27 = sbr.rel (0) target = $region25
  $region24: #{dnn_forward.1} parent=0 // pred_region
    _
  $region25: #{dnn_forward.1} parent=0 // pred_fallthru
    _
  // Predicated region
  $region26: #{dnn_forward.1} parent=0 // pred_check
    _
  $region27: #{dnn_forward.1} parent=0 // pred_check_branch
    %29 = sbr.rel (0) target = $region29
  $region28: #{dnn_forward.1} parent=0 // pred_region
    _
  $region29: #{dnn_forward.1} parent=0 // pred_fallthru
    _
  // Predicated region
  $region30: #{dnn_forward.1} parent=0 // pred_check
    _
  $region31: #{dnn_forward.1} parent=0 // pred_check_branch
    %31 = sbr.rel (0) target = $region33
  $region32: #{dnn_forward.1} parent=0 // pred_region
    _
  $region33: #{dnn_forward.1} parent=0 // pred_fallthru
    _
  // Predicated region
  $region34: #{dnn_forward.1} parent=0 // pred_check
    _
  $region35: #{dnn_forward.1} parent=0 // pred_check_branch
    %33 = sbr.rel (0) target = $region37
  $region36: #{dnn_forward.1} parent=0 // pred_region
    _
  $region37: #{dnn_forward.1} parent=0 // pred_fallthru
    _
  // Predicated region
  $region38: #{dnn_forward.1} parent=0 // pred_check
    _
  $region39: #{dnn_forward.1} parent=0 // pred_check_branch
    %35 = sbr.rel (0) target = $region41
  $region40: #{dnn_forward.1} parent=0 // pred_region
    _
  $region41: #{dnn_forward.1} parent=0 // pred_fallthru
    _
  // Predicated region
  $region42: #{dnn_forward.1} parent=0 // pred_check
    _
  $region43: #{dnn_forward.1} parent=0 // pred_check_branch
    %37 = sbr.rel (0) target = $region45
  $region44: #{dnn_forward.1} parent=0 // pred_region
    _
  $region45: #{dnn_forward.1} parent=0 // pred_fallthru
    _
  %v41 = vld [vmem:[%s0] sm:$0xf]
  %v42 = vld [vmem:[%s0 + $0x4] sm:$0xf]
  %v43 = vld [vmem:[%s0 + $0x8] sm:$0xf]
  %v44 = vld [vmem:[%s0 + $0xc] sm:$0xf]
  %v45 = vld [vmem:[%s0 + $0x10] sm:$0xf]
  %v46 = vld [vmem:[%s0 + $0x14] sm:$0xf]
  %v47 = vld [vmem:[%s0 + $0x18] sm:$0xf]
  %v48 = vld [vmem:[%s0 + $0x1c] sm:$0xf]
  %v49 = vld [vmem:[%s0 + $0x20] sm:$0xf]
  %v50 = vld [vmem:[%s0 + $0x24] sm:$0xf]
  %v51 = vld [vmem:[%s0 + $0x28] sm:$0xf]
  %v52 = vld [vmem:[%s0 + $0x2c] sm:$0xf]
  %v53 = vld [vmem:[%s0 + $0x30] sm:$0xf]
  %v54 = vld [vmem:[%s0 + $0x34] sm:$0xf]
  %v55 = vld [vmem:[%s0 + $0x38] sm:$0xf]
  %v56 = vld [vmem:[%s0 + $0x3c] sm:$0xf]
  %v57 = vld [vmem:[%s0 + $0x40] sm:$0xf]
  %v58 = vld [vmem:[%s0 + $0x44] sm:$0xf]
  %v59 = vld [vmem:[%s0 + $0x48] sm:$0xf]
  %v60 = vld [vmem:[%s0 + $0x4c] sm:$0xf]
  %v61 = vld [vmem:[%s0 + $0x50] sm:$0xf]
  %v62 = vld [vmem:[%s0 + $0x54] sm:$0xf]
  %v63 = vld [vmem:[%s0 + $0x58] sm:$0xf]
  %v64 = vld [vmem:[%s0 + $0x5c] sm:$0xf]
  %v65 = vld [vmem:[%s0 + $0x60] sm:$0xf]
  %v66 = vld [vmem:[%s0 + $0x64] sm:$0xf]
  %v67 = vld [vmem:[%s0 + $0x68] sm:$0xf]
  %v68 = vld [vmem:[%s0 + $0x6c] sm:$0xf]
  %v69 = vld [vmem:[%s0 + $0x70] sm:$0xf]
  %v70 = vld [vmem:[%s0 + $0x74] sm:$0xf]
  %v71 = vld [vmem:[%s0 + $0x78] sm:$0xf]
  %v72 = vld [vmem:[%s0 + $0x7c] sm:$0xf]
  %v73 = vld [vmem:[%s0 + $0x80] sm:$0xf]
  %v74 = vld [vmem:[%s0 + $0x84] sm:$0xf]
  %v75 = vld [vmem:[%s0 + $0x88] sm:$0xf]
  %v76 = vld [vmem:[%s0 + $0x8c] sm:$0xf]
  %v77 = vld [vmem:[%s0 + $0x90] sm:$0xf]
  %v78 = vld [vmem:[%s0 + $0x94] sm:$0xf]
  %v79 = vld [vmem:[%s0 + $0x98] sm:$0xf]
  %v80 = vld [vmem:[%s0 + $0x9c] sm:$0xf]
  %v81 = vld [vmem:[%s0 + $0xa0] sm:$0xf]
  %v82 = vld [vmem:[%s0 + $0xa4] sm:$0xf]
  %v83 = vld [vmem:[%s0 + $0xa8] sm:$0xf]
  %v84 = vld [vmem:[%s0 + $0xac] sm:$0xf]
  %v85 = vld [vmem:[%s0 + $0xb0] sm:$0xf]
  %v86 = vld [vmem:[%s0 + $0xb4] sm:$0xf]
  %v87 = vld [vmem:[%s0 + $0xb8] sm:$0xf]
  %v88 = vld [vmem:[%s0 + $0xbc] sm:$0xf]
  %v89 = vld [vmem:[%s0 + $0xc0] sm:$0xf]
  %v90 = vld [vmem:[%s0 + $0xc4] sm:$0xf]
  %v91 = vld [vmem:[%s0 + $0xc8] sm:$0xf]
  %v92 = vld [vmem:[%s0 + $0xcc] sm:$0xf]
  %v93 = vld [vmem:[%s0 + $0xd0] sm:$0xf]
  %v94 = vld [vmem:[%s0 + $0xd4] sm:$0xf]
  %v95 = vld [vmem:[%s0 + $0xd8] sm:$0xf]
  %v96 = vld [vmem:[%s0 + $0xdc] sm:$0xf]
  %v97 = vld [vmem:[%s0 + $0xe0] sm:$0xf]
  %v98 = vld [vmem:[%s0 + $0xe4] sm:$0xf]
  %v99 = vld [vmem:[%s0 + $0xe8] sm:$0xf]
  %v100 = vld [vmem:[%s0 + $0xec] sm:$0xf]
  %v101 = vld [vmem:[%s0 + $0xf0] sm:$0xf]
  %v102 = vld [vmem:[%s0 + $0xf4] sm:$0xf]
  %v103 = vld [vmem:[%s0 + $0xf8] sm:$0xf]
  %v104 = vld [vmem:[%s0 + $0xfc] sm:$0xf]
  %v105 = vld [vmem:[%s0 + $0x100] sm:$0xf]
  %v106 = vld [vmem:[%s0 + $0x104] sm:$0xf]
  %v107 = vld [vmem:[%s0 + $0x108] sm:$0xf]
  %v108 = vld [vmem:[%s0 + $0x10c] sm:$0xf]
  %v109 = vld [vmem:[%s0 + $0x110] sm:$0xf]
  %v110 = vld [vmem:[%s0 + $0x114] sm:$0xf]
  %v111 = vld [vmem:[%s0 + $0x118] sm:$0xf]
  %v112 = vld [vmem:[%s0 + $0x11c] sm:$0xf]
  %v113 = vld [vmem:[%s0 + $0x120] sm:$0xf]
  %v114 = vld [vmem:[%s0 + $0x124] sm:$0xf]
  %v115 = vld [vmem:[%s0 + $0x128] sm:$0xf]
  %v116 = vld [vmem:[%s0 + $0x12c] sm:$0xf]
  %v117 = vld [vmem:[%s0 + $0x130] sm:$0xf]
  %v118 = vld [vmem:[%s0 + $0x134] sm:$0xf]
  %v119 = vld [vmem:[%s0 + $0x138] sm:$0xf]
  %v120 = vld [vmem:[%s0 + $0x13c] sm:$0xf]
  %v121 = vld [vmem:[%s0 + $0x140] sm:$0xf]
  %v122 = vld [vmem:[%s0 + $0x144] sm:$0xf]
  %v123 = vld [vmem:[%s0 + $0x148] sm:$0xf]
  %v124 = vld [vmem:[%s0 + $0x14c] sm:$0xf]
  %v125 = vld [vmem:[%s0 + $0x150] sm:$0xf]
  %v126 = vld [vmem:[%s0 + $0x154] sm:$0xf]
  %v127 = vld [vmem:[%s0 + $0x158] sm:$0xf]
  %v128 = vld [vmem:[%s0 + $0x15c] sm:$0xf]
  %v129 = vld [vmem:[%s0 + $0x160] sm:$0xf]
  %v130 = vld [vmem:[%s0 + $0x164] sm:$0xf]
  %v131 = vld [vmem:[%s0 + $0x168] sm:$0xf]
  %v132 = vld [vmem:[%s0 + $0x16c] sm:$0xf]
  %v133 = vld [vmem:[%s0 + $0x170] sm:$0xf]
  %v134 = vld [vmem:[%s0 + $0x174] sm:$0xf]
  %v135 = vld [vmem:[%s0 + $0x178] sm:$0xf]
  %v136 = vld [vmem:[%s0 + $0x17c] sm:$0xf]
  %v137 = vld [vmem:[%s1] sm:$0xf]
  %v138 = vld [vmem:[%s1 + $0x4] sm:$0xf]
  %v139 = vld [vmem:[%s1 + $0x8] sm:$0xf]
  %v140 = vld [vmem:[%s1 + $0xc] sm:$0xf]
  %v141 = vld [vmem:[%s1 + $0x10] sm:$0xf]
  %v142 = vld [vmem:[%s1 + $0x14] sm:$0xf]
  %v143 = vld [vmem:[%s1 + $0x18] sm:$0xf]
  %v144 = vld [vmem:[%s1 + $0x1c] sm:$0xf]
  %v145 = vld [vmem:[%s1 + $0x20] sm:$0xf]
  %v146 = vld [vmem:[%s1 + $0x24] sm:$0xf]
  %v147 = vld [vmem:[%s1 + $0x28] sm:$0xf]
  %v148 = vld [vmem:[%s1 + $0x2c] sm:$0xf]
  %v149 = vld [vmem:[%s1 + $0x30] sm:$0xf]
  %v150 = vld [vmem:[%s1 + $0x34] sm:$0xf]
  %v151 = vld [vmem:[%s1 + $0x38] sm:$0xf]
  %v152 = vld [vmem:[%s1 + $0x3c] sm:$0xf]
  %v153 = vld [vmem:[%s2] sm:$0x1]
  %v155 = vlaneseq
  %v156 = vshrl.u32 %v155, 7
  %v157 = vsub.s32 0, %v156
  %v158 = vrot.slane %v153, %v157
  %v256 = vunpack.c.l.b16 %v41
  %v257 = vunpack.c.l.b16 %v42
  %v258 = vunpack.c.l.b16 %v43
  %v259 = vunpack.c.l.b16 %v44
  %v260 = vunpack.c.l.b16 %v45
  %v261 = vunpack.c.l.b16 %v46
  %v262 = vunpack.c.l.b16 %v47
  %v263 = vunpack.c.l.b16 %v48
  %v264 = vunpack.c.l.b16 %v49
  %v265 = vunpack.c.l.b16 %v50
  %v266 = vunpack.c.l.b16 %v51
  %v267 = vunpack.c.l.b16 %v52
  %v268 = vunpack.c.l.b16 %v53
  %v269 = vunpack.c.l.b16 %v54
  %v270 = vunpack.c.l.b16 %v55
  %v271 = vunpack.c.l.b16 %v56
  %v272 = vunpack.c.l.b16 %v57
  %v273 = vunpack.c.l.b16 %v58
  %v274 = vunpack.c.l.b16 %v59
  %v275 = vunpack.c.l.b16 %v60
  %v276 = vunpack.c.l.b16 %v61
  %v277 = vunpack.c.l.b16 %v62
  %v278 = vunpack.c.l.b16 %v63
  %v279 = vunpack.c.l.b16 %v64
  %v280 = vunpack.c.l.b16 %v65
  %v281 = vunpack.c.l.b16 %v66
  %v282 = vunpack.c.l.b16 %v67
  %v283 = vunpack.c.l.b16 %v68
  %v284 = vunpack.c.l.b16 %v69
  %v285 = vunpack.c.l.b16 %v70
  %v286 = vunpack.c.l.b16 %v71
  %v287 = vunpack.c.l.b16 %v72
  %v288 = vunpack.c.l.b16 %v73
  %v289 = vunpack.c.l.b16 %v74
  %v290 = vunpack.c.l.b16 %v75
  %v291 = vunpack.c.l.b16 %v76
  %v292 = vunpack.c.l.b16 %v77
  %v293 = vunpack.c.l.b16 %v78
  %v294 = vunpack.c.l.b16 %v79
  %v295 = vunpack.c.l.b16 %v80
  %v296 = vunpack.c.l.b16 %v81
  %v297 = vunpack.c.l.b16 %v82
  %v298 = vunpack.c.l.b16 %v83
  %v299 = vunpack.c.l.b16 %v84
  %v300 = vunpack.c.l.b16 %v85
  %v301 = vunpack.c.l.b16 %v86
  %v302 = vunpack.c.l.b16 %v87
  %v303 = vunpack.c.l.b16 %v88
  %v304 = vunpack.c.l.b16 %v89
  %v305 = vunpack.c.l.b16 %v90
  %v306 = vunpack.c.l.b16 %v91
  %v307 = vunpack.c.l.b16 %v92
  %v308 = vunpack.c.l.b16 %v93
  %v309 = vunpack.c.l.b16 %v94
  %v310 = vunpack.c.l.b16 %v95
  %v311 = vunpack.c.l.b16 %v96
  %v312 = vunpack.c.l.b16 %v97
  %v313 = vunpack.c.l.b16 %v98
  %v314 = vunpack.c.l.b16 %v99
  %v315 = vunpack.c.l.b16 %v100
  %v316 = vunpack.c.l.b16 %v101
  %v317 = vunpack.c.l.b16 %v102
  %v318 = vunpack.c.l.b16 %v103
  %v319 = vunpack.c.l.b16 %v104
  %v320 = vunpack.c.l.b16 %v105
  %v321 = vunpack.c.l.b16 %v106
  %v322 = vunpack.c.l.b16 %v107
  %v323 = vunpack.c.l.b16 %v108
  %v324 = vunpack.c.l.b16 %v109
  %v325 = vunpack.c.l.b16 %v110
  %v326 = vunpack.c.l.b16 %v111
  %v327 = vunpack.c.l.b16 %v112
  %v328 = vunpack.c.l.b16 %v113
  %v329 = vunpack.c.l.b16 %v114
  %v330 = vunpack.c.l.b16 %v115
  %v331 = vunpack.c.l.b16 %v116
  %v332 = vunpack.c.l.b16 %v117
  %v333 = vunpack.c.l.b16 %v118
  %v334 = vunpack.c.l.b16 %v119
  %v335 = vunpack.c.l.b16 %v120
  %v336 = vunpack.c.l.b16 %v121
  %v337 = vunpack.c.l.b16 %v122
  %v338 = vunpack.c.l.b16 %v123
  %v339 = vunpack.c.l.b16 %v124
  %v340 = vunpack.c.l.b16 %v125
  %v341 = vunpack.c.l.b16 %v126
  %v342 = vunpack.c.l.b16 %v127
  %v343 = vunpack.c.l.b16 %v128
  %v344 = vunpack.c.l.b16 %v129
  %v345 = vunpack.c.l.b16 %v130
  %v346 = vunpack.c.l.b16 %v131
  %v347 = vunpack.c.l.b16 %v132
  %v348 = vunpack.c.l.b16 %v133
  %v349 = vunpack.c.l.b16 %v134
  %v350 = vunpack.c.l.b16 %v135
  %v351 = vunpack.c.l.b16 %v136
  %v352 = vpack.c.b16 %v257, %v256
  %v353 = vpack.c.b16 %v259, %v258
  %v354 = vpack.c.b16 %v261, %v260
  %v355 = vpack.c.b16 %v263, %v262
  %v356 = vpack.c.b16 %v265, %v264
  %v357 = vpack.c.b16 %v267, %v266
  %v358 = vpack.c.b16 %v269, %v268
  %v359 = vpack.c.b16 %v271, %v270
  %v360 = vpack.c.b16 %v273, %v272
  %v361 = vpack.c.b16 %v275, %v274
  %v362 = vpack.c.b16 %v277, %v276
  %v363 = vpack.c.b16 %v279, %v278
  %v364 = vpack.c.b16 %v281, %v280
  %v365 = vpack.c.b16 %v283, %v282
  %v366 = vpack.c.b16 %v285, %v284
  %v367 = vpack.c.b16 %v287, %v286
  %v368 = vpack.c.b16 %v289, %v288
  %v369 = vpack.c.b16 %v291, %v290
  %v370 = vpack.c.b16 %v293, %v292
  %v371 = vpack.c.b16 %v295, %v294
  %v372 = vpack.c.b16 %v297, %v296
  %v373 = vpack.c.b16 %v299, %v298
  %v374 = vpack.c.b16 %v301, %v300
  %v375 = vpack.c.b16 %v303, %v302
  %v376 = vpack.c.b16 %v305, %v304
  %v377 = vpack.c.b16 %v307, %v306
  %v378 = vpack.c.b16 %v309, %v308
  %v379 = vpack.c.b16 %v311, %v310
  %v380 = vpack.c.b16 %v313, %v312
  %v381 = vpack.c.b16 %v315, %v314
  %v382 = vpack.c.b16 %v317, %v316
  %v383 = vpack.c.b16 %v319, %v318
  %v384 = vpack.c.b16 %v321, %v320
  %v385 = vpack.c.b16 %v323, %v322
  %v386 = vpack.c.b16 %v325, %v324
  %v387 = vpack.c.b16 %v327, %v326
  %v388 = vpack.c.b16 %v329, %v328
  %v389 = vpack.c.b16 %v331, %v330
  %v390 = vpack.c.b16 %v333, %v332
  %v391 = vpack.c.b16 %v335, %v334
  %v392 = vpack.c.b16 %v337, %v336
  %v393 = vpack.c.b16 %v339, %v338
  %v394 = vpack.c.b16 %v341, %v340
  %v395 = vpack.c.b16 %v343, %v342
  %v396 = vpack.c.b16 %v345, %v344
  %v397 = vpack.c.b16 %v347, %v346
  %v398 = vpack.c.b16 %v349, %v348
  %v399 = vpack.c.b16 %v351, %v350
  %v464 = vunpack.c.l.b16 %v137
  %v465 = vunpack.c.l.b16 %v138
  %v466 = vunpack.c.l.b16 %v139
  %v467 = vunpack.c.l.b16 %v140
  %v468 = vunpack.c.l.b16 %v141
  %v469 = vunpack.c.l.b16 %v142
  %v470 = vunpack.c.l.b16 %v143
  %v471 = vunpack.c.l.b16 %v144
  %v472 = vunpack.c.l.b16 %v145
  %v473 = vunpack.c.l.b16 %v146
  %v474 = vunpack.c.l.b16 %v147
  %v475 = vunpack.c.l.b16 %v148
  %v476 = vunpack.c.l.b16 %v149
  %v477 = vunpack.c.l.b16 %v150
  %v478 = vunpack.c.l.b16 %v151
  %v479 = vunpack.c.l.b16 %v152
  %v480 = vpack.c.b16 %v465, %v464
  %v481 = vpack.c.b16 %v467, %v466
  %v482 = vpack.c.b16 %v469, %v468
  %v483 = vpack.c.b16 %v471, %v470
  %v484 = vpack.c.b16 %v473, %v472
  %v485 = vpack.c.b16 %v475, %v474
  %v486 = vpack.c.b16 %v477, %v476
  %v487 = vpack.c.b16 %v479, %v478
  %496 = vmatprep.subr.bf16.mxu0 0
  %497 = vmatpush1.bf16.msra.mxu0 %v480
  %498 = vmatprep.subr.bf16.mxu0 0
  %499 = vmatpush1.bf16.msra.mxu0 %v481
  %500 = vmatprep.subr.bf16.mxu0 0
  %501 = vmatpush1.bf16.msra.mxu0 %v482
  %502 = vmatprep.subr.bf16.mxu0 0
  %503 = vmatpush1.bf16.msra.mxu0 %v483
  %504 = vmatprep.subr.bf16.mxu0 0
  %505 = vmatpush1.bf16.msra.mxu0 %v484
  %506 = vmatprep.subr.bf16.mxu0 0
  %507 = vmatpush1.bf16.msra.mxu0 %v485
  %508 = vmatprep.subr.bf16.mxu0 0
  %509 = vmatpush1.bf16.msra.mxu0 %v486
  %510 = vmatprep.subr.bf16.mxu0 0
  %511 = vmatpush1.bf16.msra.mxu0 %v487
  %512 = vmatprep.subr.bf16.mxu0 0
  %513 = vmatpush1.bf16.msra.mxu0 0
  %514 = vmatprep.subr.bf16.mxu0 0
  %515 = vmatpush1.bf16.msra.mxu0 0
  %516 = vmatprep.subr.bf16.mxu0 0
  %517 = vmatpush1.bf16.msra.mxu0 0
  %518 = vmatprep.subr.bf16.mxu0 0
  %519 = vmatpush1.bf16.msra.mxu0 0
  %520 = vmatprep.subr.bf16.mxu0 0
  %521 = vmatpush1.bf16.msra.mxu0 0
  %522 = vmatprep.subr.bf16.mxu0 0
  %523 = vmatpush1.bf16.msra.mxu0 0
  %524 = vmatprep.subr.bf16.mxu0 0
  %525 = vmatpush1.bf16.msra.mxu0 0
  %526 = vmatprep.subr.bf16.mxu0 0
  %527 = vmatpush1.bf16.msra.mxu0 0
  %528 = vmatprep.mubr.bf16.mxu0 0
  %529 = vmatmul.mubr.bf16.gmra.mrb[0].mxu0 %v352
  %v530 = vpop.f32.mrb[0].mxu0
  %v531 = vadd.f32 %v158, %v530
  %v532 = vpop.f32.mrb[0].mxu0
  %v533 = vpop.f32.mrb[0].mxu0
  %v534 = vadd.f32 %v158, %v533
  %v535 = vpop.f32.mrb[0].mxu0
  %536 = vmatprep.mubr.bf16.mxu0 0
  %537 = vmatmul.mubr.bf16.gmra.mrb[0].mxu0 %v353
  %v538 = vpop.f32.mrb[0].mxu0
  %v539 = vadd.f32 %v158, %v538
  %v540 = vpop.f32.mrb[0].mxu0
  %v541 = vpop.f32.mrb[0].mxu0
  %v542 = vadd.f32 %v158, %v541
  %v543 = vpop.f32.mrb[0].mxu0
  %544 = vmatprep.mubr.bf16.mxu0 0
  %545 = vmatmul.mubr.bf16.gmra.mrb[0].mxu0 %v354
  %v546 = vpop.f32.mrb[0].mxu0
  %v547 = vadd.f32 %v158, %v546
  %v548 = vpop.f32.mrb[0].mxu0
  %v549 = vpop.f32.mrb[0].mxu0
  %v550 = vadd.f32 %v158, %v549
  %v551 = vpop.f32.mrb[0].mxu0
  %552 = vmatprep.mubr.bf16.mxu0 0
  %553 = vmatmul.mubr.bf16.gmra.mrb[0].mxu0 %v355
  %v554 = vpop.f32.mrb[0].mxu0
  %v555 = vadd.f32 %v158, %v554
  %v556 = vpop.f32.mrb[0].mxu0
  %v557 = vpop.f32.mrb[0].mxu0
  %v558 = vadd.f32 %v158, %v557
  %v559 = vpop.f32.mrb[0].mxu0
  %560 = vmatprep.mubr.bf16.mxu0 0
  %561 = vmatmul.mubr.bf16.gmra.mrb[0].mxu0 %v356
  %v562 = vpop.f32.mrb[0].mxu0
  %v563 = vadd.f32 %v158, %v562
  %v564 = vpop.f32.mrb[0].mxu0
  %v565 = vpop.f32.mrb[0].mxu0
  %v566 = vadd.f32 %v158, %v565
  %v567 = vpop.f32.mrb[0].mxu0
  %568 = vmatprep.mubr.bf16.mxu0 0
  %569 = vmatmul.mubr.bf16.gmra.mrb[0].mxu0 %v357
  %v570 = vpop.f32.mrb[0].mxu0
  %v571 = vadd.f32 %v158, %v570
  %v572 = vpop.f32.mrb[0].mxu0
  %v573 = vpop.f32.mrb[0].mxu0
  %v574 = vadd.f32 %v158, %v573
  %v575 = vpop.f32.mrb[0].mxu0
  %576 = vmatprep.mubr.bf16.mxu0 0
  %577 = vmatmul.mubr.bf16.gmra.mrb[0].mxu0 %v358
  %v578 = vpop.f32.mrb[0].mxu0
  %v579 = vadd.f32 %v158, %v578
  %v580 = vpop.f32.mrb[0].mxu0
  %v581 = vpop.f32.mrb[0].mxu0
  %v582 = vadd.f32 %v158, %v581
  %v583 = vpop.f32.mrb[0].mxu0
  %584 = vmatprep.mubr.bf16.mxu0 0
  %585 = vmatmul.mubr.bf16.gmra.mrb[0].mxu0 %v359
  %v586 = vpop.f32.mrb[0].mxu0
  %v587 = vadd.f32 %v158, %v586
  %v588 = vpop.f32.mrb[0].mxu0
  %v589 = vpop.f32.mrb[0].mxu0
  %v590 = vadd.f32 %v158, %v589
  %v591 = vpop.f32.mrb[0].mxu0
  %592 = vmatprep.mubr.bf16.mxu0 0
  %593 = vmatmul.mubr.bf16.gmra.mrb[0].mxu0 %v360
  %v594 = vpop.f32.mrb[0].mxu0
  %v595 = vadd.f32 %v158, %v594
  %v596 = vpop.f32.mrb[0].mxu0
  %v597 = vpop.f32.mrb[0].mxu0
  %v598 = vadd.f32 %v158, %v597
  %v599 = vpop.f32.mrb[0].mxu0
  %600 = vmatprep.mubr.bf16.mxu0 0
  %601 = vmatmul.mubr.bf16.gmra.mrb[0].mxu0 %v361
  %v602 = vpop.f32.mrb[0].mxu0
  %v603 = vadd.f32 %v158, %v602
  %v604 = vpop.f32.mrb[0].mxu0
  %v605 = vpop.f32.mrb[0].mxu0
  %v606 = vadd.f32 %v158, %v605
  %v607 = vpop.f32.mrb[0].mxu0
  %608 = vmatprep.mubr.bf16.mxu0 0
  %609 = vmatmul.mubr.bf16.gmra.mrb[0].mxu0 %v362
  %v610 = vpop.f32.mrb[0].mxu0
  %v611 = vadd.f32 %v158, %v610
  %v612 = vpop.f32.mrb[0].mxu0
  %v613 = vpop.f32.mrb[0].mxu0
  %v614 = vadd.f32 %v158, %v613
  %v615 = vpop.f32.mrb[0].mxu0
  %616 = vmatprep.mubr.bf16.mxu0 0
  %617 = vmatmul.mubr.bf16.gmra.mrb[0].mxu0 %v363
  %v618 = vpop.f32.mrb[0].mxu0
  %v619 = vadd.f32 %v158, %v618
  %v620 = vpop.f32.mrb[0].mxu0
  %v621 = vpop.f32.mrb[0].mxu0
  %v622 = vadd.f32 %v158, %v621
  %v623 = vpop.f32.mrb[0].mxu0
  %624 = vmatprep.mubr.bf16.mxu0 0
  %625 = vmatmul.mubr.bf16.gmra.mrb[0].mxu0 %v364
  %v626 = vpop.f32.mrb[0].mxu0
  %v627 = vadd.f32 %v158, %v626
  %v628 = vpop.f32.mrb[0].mxu0
  %v629 = vpop.f32.mrb[0].mxu0
  %v630 = vadd.f32 %v158, %v629
  %v631 = vpop.f32.mrb[0].mxu0
  %632 = vmatprep.mubr.bf16.mxu0 0
  %633 = vmatmul.mubr.bf16.gmra.mrb[0].mxu0 %v365
  %v634 = vpop.f32.mrb[0].mxu0
  %v635 = vadd.f32 %v158, %v634
  %v636 = vpop.f32.mrb[0].mxu0
  %v637 = vpop.f32.mrb[0].mxu0
  %v638 = vadd.f32 %v158, %v637
  %v639 = vpop.f32.mrb[0].mxu0
  %640 = vmatprep.mubr.bf16.mxu0 0
  %641 = vmatmul.mubr.bf16.gmra.mrb[0].mxu0 %v366
  %v642 = vpop.f32.mrb[0].mxu0
  %v643 = vadd.f32 %v158, %v642
  %v644 = vpop.f32.mrb[0].mxu0
  %v645 = vpop.f32.mrb[0].mxu0
  %v646 = vadd.f32 %v158, %v645
  %v647 = vpop.f32.mrb[0].mxu0
  %648 = vmatprep.mubr.bf16.mxu0 0
  %649 = vmatmul.mubr.bf16.gmra.mrb[0].mxu0 %v367
  %v650 = vpop.f32.mrb[0].mxu0
  %v651 = vadd.f32 %v158, %v650
  %v652 = vpop.f32.mrb[0].mxu0
  %v653 = vpop.f32.mrb[0].mxu0
  %v654 = vadd.f32 %v158, %v653
  %v655 = vpop.f32.mrb[0].mxu0
  %656 = vmatprep.mubr.bf16.mxu0 0
  %657 = vmatmul.mubr.bf16.gmra.mrb[0].mxu0 %v368
  %v658 = vpop.f32.mrb[0].mxu0
  %v659 = vadd.f32 %v158, %v658
  %v660 = vpop.f32.mrb[0].mxu0
  %v661 = vpop.f32.mrb[0].mxu0
  %v662 = vadd.f32 %v158, %v661
  %v663 = vpop.f32.mrb[0].mxu0
  %664 = vmatprep.mubr.bf16.mxu0 0
  %665 = vmatmul.mubr.bf16.gmra.mrb[0].mxu0 %v369
  %v666 = vpop.f32.mrb[0].mxu0
  %v667 = vadd.f32 %v158, %v666
  %v668 = vpop.f32.mrb[0].mxu0
  %v669 = vpop.f32.mrb[0].mxu0
  %v670 = vadd.f32 %v158, %v669
  %v671 = vpop.f32.mrb[0].mxu0
  %672 = vmatprep.mubr.bf16.mxu0 0
  %673 = vmatmul.mubr.bf16.gmra.mrb[0].mxu0 %v370
  %v674 = vpop.f32.mrb[0].mxu0
  %v675 = vadd.f32 %v158, %v674
  %v676 = vpop.f32.mrb[0].mxu0
  %v677 = vpop.f32.mrb[0].mxu0
  %v678 = vadd.f32 %v158, %v677
  %v679 = vpop.f32.mrb[0].mxu0
  %680 = vmatprep.mubr.bf16.mxu0 0
  %681 = vmatmul.mubr.bf16.gmra.mrb[0].mxu0 %v371
  %v682 = vpop.f32.mrb[0].mxu0
  %v683 = vadd.f32 %v158, %v682
  %v684 = vpop.f32.mrb[0].mxu0
  %v685 = vpop.f32.mrb[0].mxu0
  %v686 = vadd.f32 %v158, %v685
  %v687 = vpop.f32.mrb[0].mxu0
  %688 = vmatprep.mubr.bf16.mxu0 0
  %689 = vmatmul.mubr.bf16.gmra.mrb[0].mxu0 %v372
  %v690 = vpop.f32.mrb[0].mxu0
  %v691 = vadd.f32 %v158, %v690
  %v692 = vpop.f32.mrb[0].mxu0
  %v693 = vpop.f32.mrb[0].mxu0
  %v694 = vadd.f32 %v158, %v693
  %v695 = vpop.f32.mrb[0].mxu0
  %696 = vmatprep.mubr.bf16.mxu0 0
  %697 = vmatmul.mubr.bf16.gmra.mrb[0].mxu0 %v373
  %v698 = vpop.f32.mrb[0].mxu0
  %v699 = vadd.f32 %v158, %v698
  %v700 = vpop.f32.mrb[0].mxu0
  %v701 = vpop.f32.mrb[0].mxu0
  %v702 = vadd.f32 %v158, %v701
  %v703 = vpop.f32.mrb[0].mxu0
  %704 = vmatprep.mubr.bf16.mxu0 0
  %705 = vmatmul.mubr.bf16.gmra.mrb[0].mxu0 %v374
  %v706 = vpop.f32.mrb[0].mxu0
  %v707 = vadd.f32 %v158, %v706
  %v708 = vpop.f32.mrb[0].mxu0
  %v709 = vpop.f32.mrb[0].mxu0
  %v710 = vadd.f32 %v158, %v709
  %v711 = vpop.f32.mrb[0].mxu0
  %712 = vmatprep.mubr.bf16.mxu0 0
  %713 = vmatmul.mubr.bf16.gmra.mrb[0].mxu0 %v375
  %v714 = vpop.f32.mrb[0].mxu0
  %v715 = vadd.f32 %v158, %v714
  %v716 = vpop.f32.mrb[0].mxu0
  %v717 = vpop.f32.mrb[0].mxu0
  %v718 = vadd.f32 %v158, %v717
  %v719 = vpop.f32.mrb[0].mxu0
  %720 = vmatprep.mubr.bf16.mxu0 0
  %721 = vmatmul.mubr.bf16.gmra.mrb[0].mxu0 %v376
  %v722 = vpop.f32.mrb[0].mxu0
  %v723 = vadd.f32 %v158, %v722
  %v724 = vpop.f32.mrb[0].mxu0
  %v725 = vpop.f32.mrb[0].mxu0
  %v726 = vadd.f32 %v158, %v725
  %v727 = vpop.f32.mrb[0].mxu0
  %728 = vmatprep.mubr.bf16.mxu0 0
  %729 = vmatmul.mubr.bf16.gmra.mrb[0].mxu0 %v377
  %v730 = vpop.f32.mrb[0].mxu0
  %v731 = vadd.f32 %v158, %v730
  %v732 = vpop.f32.mrb[0].mxu0
  %v733 = vpop.f32.mrb[0].mxu0
  %v734 = vadd.f32 %v158, %v733
  %v735 = vpop.f32.mrb[0].mxu0
  %736 = vmatprep.mubr.bf16.mxu0 0
  %737 = vmatmul.mubr.bf16.gmra.mrb[0].mxu0 %v378
  %v738 = vpop.f32.mrb[0].mxu0
  %v739 = vadd.f32 %v158, %v738
  %v740 = vpop.f32.mrb[0].mxu0
  %v741 = vpop.f32.mrb[0].mxu0
  %v742 = vadd.f32 %v158, %v741
  %v743 = vpop.f32.mrb[0].mxu0
  %744 = vmatprep.mubr.bf16.mxu0 0
  %745 = vmatmul.mubr.bf16.gmra.mrb[0].mxu0 %v379
  %v746 = vpop.f32.mrb[0].mxu0
  %v747 = vadd.f32 %v158, %v746
  %v748 = vpop.f32.mrb[0].mxu0
  %v749 = vpop.f32.mrb[0].mxu0
  %v750 = vadd.f32 %v158, %v749
  %v751 = vpop.f32.mrb[0].mxu0
  %752 = vmatprep.mubr.bf16.mxu0 0
  %753 = vmatmul.mubr.bf16.gmra.mrb[0].mxu0 %v380
  %v754 = vpop.f32.mrb[0].mxu0
  %v755 = vadd.f32 %v158, %v754
  %v756 = vpop.f32.mrb[0].mxu0
  %v757 = vpop.f32.mrb[0].mxu0
  %v758 = vadd.f32 %v158, %v757
  %v759 = vpop.f32.mrb[0].mxu0
  %760 = vmatprep.mubr.bf16.mxu0 0
  %761 = vmatmul.mubr.bf16.gmra.mrb[0].mxu0 %v381
  %v762 = vpop.f32.mrb[0].mxu0
  %v763 = vadd.f32 %v158, %v762
  %v764 = vpop.f32.mrb[0].mxu0
  %v765 = vpop.f32.mrb[0].mxu0
  %v766 = vadd.f32 %v158, %v765
  %v767 = vpop.f32.mrb[0].mxu0
  %768 = vmatprep.mubr.bf16.mxu0 0
  %769 = vmatmul.mubr.bf16.gmra.mrb[0].mxu0 %v382
  %v770 = vpop.f32.mrb[0].mxu0
  %v771 = vadd.f32 %v158, %v770
  %v772 = vpop.f32.mrb[0].mxu0
  %v773 = vpop.f32.mrb[0].mxu0
  %v774 = vadd.f32 %v158, %v773
  %v775 = vpop.f32.mrb[0].mxu0
  %776 = vmatprep.mubr.bf16.mxu0 0
  %777 = vmatmul.mubr.bf16.gmra.mrb[0].mxu0 %v383
  %v778 = vpop.f32.mrb[0].mxu0
  %v779 = vadd.f32 %v158, %v778
  %v780 = vpop.f32.mrb[0].mxu0
  %v781 = vpop.f32.mrb[0].mxu0
  %v782 = vadd.f32 %v158, %v781
  %v783 = vpop.f32.mrb[0].mxu0
  %784 = vmatprep.mubr.bf16.mxu0 0
  %785 = vmatmul.mubr.bf16.gmra.mrb[0].mxu0 %v384
  %v786 = vpop.f32.mrb[0].mxu0
  %v787 = vadd.f32 %v158, %v786
  %v788 = vpop.f32.mrb[0].mxu0
  %v789 = vpop.f32.mrb[0].mxu0
  %v790 = vadd.f32 %v158, %v789
  %v791 = vpop.f32.mrb[0].mxu0
  %792 = vmatprep.mubr.bf16.mxu0 0
  %793 = vmatmul.mubr.bf16.gmra.mrb[0].mxu0 %v385
  %v794 = vpop.f32.mrb[0].mxu0
  %v795 = vadd.f32 %v158, %v794
  %v796 = vpop.f32.mrb[0].mxu0
  %v797 = vpop.f32.mrb[0].mxu0
  %v798 = vadd.f32 %v158, %v797
  %v799 = vpop.f32.mrb[0].mxu0
  %800 = vmatprep.mubr.bf16.mxu0 0
  %801 = vmatmul.mubr.bf16.gmra.mrb[0].mxu0 %v386
  %v802 = vpop.f32.mrb[0].mxu0
  %v803 = vadd.f32 %v158, %v802
  %v804 = vpop.f32.mrb[0].mxu0
  %v805 = vpop.f32.mrb[0].mxu0
  %v806 = vadd.f32 %v158, %v805
  %v807 = vpop.f32.mrb[0].mxu0
  %808 = vmatprep.mubr.bf16.mxu0 0
  %809 = vmatmul.mubr.bf16.gmra.mrb[0].mxu0 %v387
  %v810 = vpop.f32.mrb[0].mxu0
  %v811 = vadd.f32 %v158, %v810
  %v812 = vpop.f32.mrb[0].mxu0
  %v813 = vpop.f32.mrb[0].mxu0
  %v814 = vadd.f32 %v158, %v813
  %v815 = vpop.f32.mrb[0].mxu0
  %816 = vmatprep.mubr.bf16.mxu0 0
  %817 = vmatmul.mubr.bf16.gmra.mrb[0].mxu0 %v388
  %v818 = vpop.f32.mrb[0].mxu0
  %v819 = vadd.f32 %v158, %v818
  %v820 = vpop.f32.mrb[0].mxu0
  %v821 = vpop.f32.mrb[0].mxu0
  %v822 = vadd.f32 %v158, %v821
  %v823 = vpop.f32.mrb[0].mxu0
  %824 = vmatprep.mubr.bf16.mxu0 0
  %825 = vmatmul.mubr.bf16.gmra.mrb[0].mxu0 %v389
  %v826 = vpop.f32.mrb[0].mxu0
  %v827 = vadd.f32 %v158, %v826
  %v828 = vpop.f32.mrb[0].mxu0
  %v829 = vpop.f32.mrb[0].mxu0
  %v830 = vadd.f32 %v158, %v829
  %v831 = vpop.f32.mrb[0].mxu0
  %832 = vmatprep.mubr.bf16.mxu0 0
  %833 = vmatmul.mubr.bf16.gmra.mrb[0].mxu0 %v390
  %v834 = vpop.f32.mrb[0].mxu0
  %v835 = vadd.f32 %v158, %v834
  %v836 = vpop.f32.mrb[0].mxu0
  %v837 = vpop.f32.mrb[0].mxu0
  %v838 = vadd.f32 %v158, %v837
  %v839 = vpop.f32.mrb[0].mxu0
  %840 = vmatprep.mubr.bf16.mxu0 0
  %841 = vmatmul.mubr.bf16.gmra.mrb[0].mxu0 %v391
  %v842 = vpop.f32.mrb[0].mxu0
  %v843 = vadd.f32 %v158, %v842
  %v844 = vpop.f32.mrb[0].mxu0
  %v845 = vpop.f32.mrb[0].mxu0
  %v846 = vadd.f32 %v158, %v845
  %v847 = vpop.f32.mrb[0].mxu0
  %848 = vmatprep.mubr.bf16.mxu0 0
  %849 = vmatmul.mubr.bf16.gmra.mrb[0].mxu0 %v392
  %v850 = vpop.f32.mrb[0].mxu0
  %v851 = vadd.f32 %v158, %v850
  %v852 = vpop.f32.mrb[0].mxu0
  %v853 = vpop.f32.mrb[0].mxu0
  %v854 = vadd.f32 %v158, %v853
  %v855 = vpop.f32.mrb[0].mxu0
  %856 = vmatprep.mubr.bf16.mxu0 0
  %857 = vmatmul.mubr.bf16.gmra.mrb[0].mxu0 %v393
  %v858 = vpop.f32.mrb[0].mxu0
  %v859 = vadd.f32 %v158, %v858
  %v860 = vpop.f32.mrb[0].mxu0
  %v861 = vpop.f32.mrb[0].mxu0
  %v862 = vadd.f32 %v158, %v861
  %v863 = vpop.f32.mrb[0].mxu0
  %864 = vmatprep.mubr.bf16.mxu0 0
  %865 = vmatmul.mubr.bf16.gmra.mrb[0].mxu0 %v394
  %v866 = vpop.f32.mrb[0].mxu0
  %v867 = vadd.f32 %v158, %v866
  %v868 = vpop.f32.mrb[0].mxu0
  %v869 = vpop.f32.mrb[0].mxu0
  %v870 = vadd.f32 %v158, %v869
  %v871 = vpop.f32.mrb[0].mxu0
  %872 = vmatprep.mubr.bf16.mxu0 0
  %873 = vmatmul.mubr.bf16.gmra.mrb[0].mxu0 %v395
  %v874 = vpop.f32.mrb[0].mxu0
  %v875 = vadd.f32 %v158, %v874
  %v876 = vpop.f32.mrb[0].mxu0
  %v877 = vpop.f32.mrb[0].mxu0
  %v878 = vadd.f32 %v158, %v877
  %v879 = vpop.f32.mrb[0].mxu0
  %880 = vmatprep.mubr.bf16.mxu0 0
  %881 = vmatmul.mubr.bf16.gmra.mrb[0].mxu0 %v396
  %v882 = vpop.f32.mrb[0].mxu0
  %v883 = vadd.f32 %v158, %v882
  %v884 = vpop.f32.mrb[0].mxu0
  %v885 = vpop.f32.mrb[0].mxu0
  %v886 = vadd.f32 %v158, %v885
  %v887 = vpop.f32.mrb[0].mxu0
  %888 = vmatprep.mubr.bf16.mxu0 0
  %889 = vmatmul.mubr.bf16.gmra.mrb[0].mxu0 %v397
  %v890 = vpop.f32.mrb[0].mxu0
  %v891 = vadd.f32 %v158, %v890
  %v892 = vpop.f32.mrb[0].mxu0
  %v893 = vpop.f32.mrb[0].mxu0
  %v894 = vadd.f32 %v158, %v893
  %v895 = vpop.f32.mrb[0].mxu0
  %896 = vmatprep.mubr.bf16.mxu0 0
  %897 = vmatmul.mubr.bf16.gmra.mrb[0].mxu0 %v398
  %v898 = vpop.f32.mrb[0].mxu0
  %v899 = vadd.f32 %v158, %v898
  %v900 = vpop.f32.mrb[0].mxu0
  %v901 = vpop.f32.mrb[0].mxu0
  %v902 = vadd.f32 %v158, %v901
  %v903 = vpop.f32.mrb[0].mxu0
  %904 = vmatprep.mubr.bf16.mxu0 0
  %905 = vmatmul.mubr.bf16.gmra.mrb[0].mxu0 %v399
  %v906 = vpop.f32.mrb[0].mxu0
  %v907 = vadd.f32 %v158, %v906
  %v908 = vpop.f32.mrb[0].mxu0
  %v909 = vpop.f32.mrb[0].mxu0
  %v910 = vadd.f32 %v158, %v909
  %v911 = vpop.f32.mrb[0].mxu0
  %912 = vdwg.mxu0
  %vm913 = vcmp.gt.f32.partialorder %v531, 0.0
  %vm914 = vcmp.gt.f32.partialorder %v534, 0.0
  %vm915 = vcmp.gt.f32.partialorder %v539, 0.0
  %vm916 = vcmp.gt.f32.partialorder %v542, 0.0
  %vm917 = vcmp.gt.f32.partialorder %v547, 0.0
  %vm918 = vcmp.gt.f32.partialorder %v550, 0.0
  %vm919 = vcmp.gt.f32.partialorder %v555, 0.0
  %vm920 = vcmp.gt.f32.partialorder %v558, 0.0
  %vm921 = vcmp.gt.f32.partialorder %v563, 0.0
  %vm922 = vcmp.gt.f32.partialorder %v566, 0.0
  %vm923 = vcmp.gt.f32.partialorder %v571, 0.0
  %vm924 = vcmp.gt.f32.partialorder %v574, 0.0
  %vm925 = vcmp.gt.f32.partialorder %v579, 0.0
  %vm926 = vcmp.gt.f32.partialorder %v582, 0.0
  %vm927 = vcmp.gt.f32.partialorder %v587, 0.0
  %vm928 = vcmp.gt.f32.partialorder %v590, 0.0
  %vm929 = vcmp.gt.f32.partialorder %v595, 0.0
  %vm930 = vcmp.gt.f32.partialorder %v598, 0.0
  %vm931 = vcmp.gt.f32.partialorder %v603, 0.0
  %vm932 = vcmp.gt.f32.partialorder %v606, 0.0
  %vm933 = vcmp.gt.f32.partialorder %v611, 0.0
  %vm934 = vcmp.gt.f32.partialorder %v614, 0.0
  %vm935 = vcmp.gt.f32.partialorder %v619, 0.0
  %vm936 = vcmp.gt.f32.partialorder %v622, 0.0
  %vm937 = vcmp.gt.f32.partialorder %v627, 0.0
  %vm938 = vcmp.gt.f32.partialorder %v630, 0.0
  %vm939 = vcmp.gt.f32.partialorder %v635, 0.0
  %vm940 = vcmp.gt.f32.partialorder %v638, 0.0
  %vm941 = vcmp.gt.f32.partialorder %v643, 0.0
  %vm942 = vcmp.gt.f32.partialorder %v646, 0.0
  %vm943 = vcmp.gt.f32.partialorder %v651, 0.0
  %vm944 = vcmp.gt.f32.partialorder %v654, 0.0
  %vm945 = vcmp.gt.f32.partialorder %v659, 0.0
  %vm946 = vcmp.gt.f32.partialorder %v662, 0.0
  %vm947 = vcmp.gt.f32.partialorder %v667, 0.0
  %vm948 = vcmp.gt.f32.partialorder %v670, 0.0
  %vm949 = vcmp.gt.f32.partialorder %v675, 0.0
  %vm950 = vcmp.gt.f32.partialorder %v678, 0.0
  %vm951 = vcmp.gt.f32.partialorder %v683, 0.0
  %vm952 = vcmp.gt.f32.partialorder %v686, 0.0
  %vm953 = vcmp.gt.f32.partialorder %v691, 0.0
  %vm954 = vcmp.gt.f32.partialorder %v694, 0.0
  %vm955 = vcmp.gt.f32.partialorder %v699, 0.0
  %vm956 = vcmp.gt.f32.partialorder %v702, 0.0
  %vm957 = vcmp.gt.f32.partialorder %v707, 0.0
  %vm958 = vcmp.gt.f32.partialorder %v710, 0.0
  %vm959 = vcmp.gt.f32.partialorder %v715, 0.0
  %vm960 = vcmp.gt.f32.partialorder %v718, 0.0
  %vm961 = vcmp.gt.f32.partialorder %v723, 0.0
  %vm962 = vcmp.gt.f32.partialorder %v726, 0.0
  %vm963 = vcmp.gt.f32.partialorder %v731, 0.0
  %vm964 = vcmp.gt.f32.partialorder %v734, 0.0
  %vm965 = vcmp.gt.f32.partialorder %v739, 0.0
  %vm966 = vcmp.gt.f32.partialorder %v742, 0.0
  %vm967 = vcmp.gt.f32.partialorder %v747, 0.0
  %vm968 = vcmp.gt.f32.partialorder %v750, 0.0
  %vm969 = vcmp.gt.f32.partialorder %v755, 0.0
  %vm970 = vcmp.gt.f32.partialorder %v758, 0.0
  %vm971 = vcmp.gt.f32.partialorder %v763, 0.0
  %vm972 = vcmp.gt.f32.partialorder %v766, 0.0
  %vm973 = vcmp.gt.f32.partialorder %v771, 0.0
  %vm974 = vcmp.gt.f32.partialorder %v774, 0.0
  %vm975 = vcmp.gt.f32.partialorder %v779, 0.0
  %vm976 = vcmp.gt.f32.partialorder %v782, 0.0
  %vm977 = vcmp.gt.f32.partialorder %v787, 0.0
  %vm978 = vcmp.gt.f32.partialorder %v790, 0.0
  %vm979 = vcmp.gt.f32.partialorder %v795, 0.0
  %vm980 = vcmp.gt.f32.partialorder %v798, 0.0
  %vm981 = vcmp.gt.f32.partialorder %v803, 0.0
  %vm982 = vcmp.gt.f32.partialorder %v806, 0.0
  %vm983 = vcmp.gt.f32.partialorder %v811, 0.0
  %vm984 = vcmp.gt.f32.partialorder %v814, 0.0
  %vm985 = vcmp.gt.f32.partialorder %v819, 0.0
  %vm986 = vcmp.gt.f32.partialorder %v822, 0.0
  %vm987 = vcmp.gt.f32.partialorder %v827, 0.0
  %vm988 = vcmp.gt.f32.partialorder %v830, 0.0
  %vm989 = vcmp.gt.f32.partialorder %v835, 0.0
  %vm990 = vcmp.gt.f32.partialorder %v838, 0.0
  %vm991 = vcmp.gt.f32.partialorder %v843, 0.0
  %vm992 = vcmp.gt.f32.partialorder %v846, 0.0
  %vm993 = vcmp.gt.f32.partialorder %v851, 0.0
  %vm994 = vcmp.gt.f32.partialorder %v854, 0.0
  %vm995 = vcmp.gt.f32.partialorder %v859, 0.0
  %vm996 = vcmp.gt.f32.partialorder %v862, 0.0
  %vm997 = vcmp.gt.f32.partialorder %v867, 0.0
  %vm998 = vcmp.gt.f32.partialorder %v870, 0.0
  %vm999 = vcmp.gt.f32.partialorder %v875, 0.0
  %vm1000 = vcmp.gt.f32.partialorder %v878, 0.0
  %vm1001 = vcmp.gt.f32.partialorder %v883, 0.0
  %vm1002 = vcmp.gt.f32.partialorder %v886, 0.0
  %vm1003 = vcmp.gt.f32.partialorder %v891, 0.0
  %vm1004 = vcmp.gt.f32.partialorder %v894, 0.0
  %vm1005 = vcmp.gt.f32.partialorder %v899, 0.0
  %vm1006 = vcmp.gt.f32.partialorder %v902, 0.0
  %vm1007 = vcmp.gt.f32.partialorder %v907, 0.0
  %vm1008 = vcmp.gt.f32.partialorder %v910, 0.0
  %v1009 = vmul.f32 %v531, 0.01
  %v1010 = vmul.f32 %v534, 0.01
  %v1011 = vmul.f32 %v539, 0.01
  %v1012 = vmul.f32 %v542, 0.01
  %v1013 = vmul.f32 %v547, 0.01
  %v1014 = vmul.f32 %v550, 0.01
  %v1015 = vmul.f32 %v555, 0.01
  %v1016 = vmul.f32 %v558, 0.01
  %v1017 = vmul.f32 %v563, 0.01
  %v1018 = vmul.f32 %v566, 0.01
  %v1019 = vmul.f32 %v571, 0.01
  %v1020 = vmul.f32 %v574, 0.01
  %v1021 = vmul.f32 %v579, 0.01
  %v1022 = vmul.f32 %v582, 0.01
  %v1023 = vmul.f32 %v587, 0.01
  %v1024 = vmul.f32 %v590, 0.01
  %v1025 = vmul.f32 %v595, 0.01
  %v1026 = vmul.f32 %v598, 0.01
  %v1027 = vmul.f32 %v603, 0.01
  %v1028 = vmul.f32 %v606, 0.01
  %v1029 = vmul.f32 %v611, 0.01
  %v1030 = vmul.f32 %v614, 0.01
  %v1031 = vmul.f32 %v619, 0.01
  %v1032 = vmul.f32 %v622, 0.01
  %v1033 = vmul.f32 %v627, 0.01
  %v1034 = vmul.f32 %v630, 0.01
  %v1035 = vmul.f32 %v635, 0.01
  %v1036 = vmul.f32 %v638, 0.01
  %v1037 = vmul.f32 %v643, 0.01
  %v1038 = vmul.f32 %v646, 0.01
  %v1039 = vmul.f32 %v651, 0.01
  %v1040 = vmul.f32 %v654, 0.01
  %v1041 = vmul.f32 %v659, 0.01
  %v1042 = vmul.f32 %v662, 0.01
  %v1043 = vmul.f32 %v667, 0.01
  %v1044 = vmul.f32 %v670, 0.01
  %v1045 = vmul.f32 %v675, 0.01
  %v1046 = vmul.f32 %v678, 0.01
  %v1047 = vmul.f32 %v683, 0.01
  %v1048 = vmul.f32 %v686, 0.01
  %v1049 = vmul.f32 %v691, 0.01
  %v1050 = vmul.f32 %v694, 0.01
  %v1051 = vmul.f32 %v699, 0.01
  %v1052 = vmul.f32 %v702, 0.01
  %v1053 = vmul.f32 %v707, 0.01
  %v1054 = vmul.f32 %v710, 0.01
  %v1055 = vmul.f32 %v715, 0.01
  %v1056 = vmul.f32 %v718, 0.01
  %v1057 = vmul.f32 %v723, 0.01
  %v1058 = vmul.f32 %v726, 0.01
  %v1059 = vmul.f32 %v731, 0.01
  %v1060 = vmul.f32 %v734, 0.01
  %v1061 = vmul.f32 %v739, 0.01
  %v1062 = vmul.f32 %v742, 0.01
  %v1063 = vmul.f32 %v747, 0.01
  %v1064 = vmul.f32 %v750, 0.01
  %v1065 = vmul.f32 %v755, 0.01
  %v1066 = vmul.f32 %v758, 0.01
  %v1067 = vmul.f32 %v763, 0.01
  %v1068 = vmul.f32 %v766, 0.01
  %v1069 = vmul.f32 %v771, 0.01
  %v1070 = vmul.f32 %v774, 0.01
  %v1071 = vmul.f32 %v779, 0.01
  %v1072 = vmul.f32 %v782, 0.01
  %v1073 = vmul.f32 %v787, 0.01
  %v1074 = vmul.f32 %v790, 0.01
  %v1075 = vmul.f32 %v795, 0.01
  %v1076 = vmul.f32 %v798, 0.01
  %v1077 = vmul.f32 %v803, 0.01
  %v1078 = vmul.f32 %v806, 0.01
  %v1079 = vmul.f32 %v811, 0.01
  %v1080 = vmul.f32 %v814, 0.01
  %v1081 = vmul.f32 %v819, 0.01
  %v1082 = vmul.f32 %v822, 0.01
  %v1083 = vmul.f32 %v827, 0.01
  %v1084 = vmul.f32 %v830, 0.01
  %v1085 = vmul.f32 %v835, 0.01
  %v1086 = vmul.f32 %v838, 0.01
  %v1087 = vmul.f32 %v843, 0.01
  %v1088 = vmul.f32 %v846, 0.01
  %v1089 = vmul.f32 %v851, 0.01
  %v1090 = vmul.f32 %v854, 0.01
  %v1091 = vmul.f32 %v859, 0.01
  %v1092 = vmul.f32 %v862, 0.01
  %v1093 = vmul.f32 %v867, 0.01
  %v1094 = vmul.f32 %v870, 0.01
  %v1095 = vmul.f32 %v875, 0.01
  %v1096 = vmul.f32 %v878, 0.01
  %v1097 = vmul.f32 %v883, 0.01
  %v1098 = vmul.f32 %v886, 0.01
  %v1099 = vmul.f32 %v891, 0.01
  %v1100 = vmul.f32 %v894, 0.01
  %v1101 = vmul.f32 %v899, 0.01
  %v1102 = vmul.f32 %v902, 0.01
  %v1103 = vmul.f32 %v907, 0.01
  %v1104 = vmul.f32 %v910, 0.01
  %v1105 = vsel %vm913, %v531, %v1009
  %v1106 = vsel %vm914, %v534, %v1010
  %v1107 = vsel %vm915, %v539, %v1011
  %v1108 = vsel %vm916, %v542, %v1012
  %v1109 = vsel %vm917, %v547, %v1013
  %v1110 = vsel %vm918, %v550, %v1014
  %v1111 = vsel %vm919, %v555, %v1015
  %v1112 = vsel %vm920, %v558, %v1016
  %v1113 = vsel %vm921, %v563, %v1017
  %v1114 = vsel %vm922, %v566, %v1018
  %v1115 = vsel %vm923, %v571, %v1019
  %v1116 = vsel %vm924, %v574, %v1020
  %v1117 = vsel %vm925, %v579, %v1021
  %v1118 = vsel %vm926, %v582, %v1022
  %v1119 = vsel %vm927, %v587, %v1023
  %v1120 = vsel %vm928, %v590, %v1024
  %v1121 = vsel %vm929, %v595, %v1025
  %v1122 = vsel %vm930, %v598, %v1026
  %v1123 = vsel %vm931, %v603, %v1027
  %v1124 = vsel %vm932, %v606, %v1028
  %v1125 = vsel %vm933, %v611, %v1029
  %v1126 = vsel %vm934, %v614, %v1030
  %v1127 = vsel %vm935, %v619, %v1031
  %v1128 = vsel %vm936, %v622, %v1032
  %v1129 = vsel %vm937, %v627, %v1033
  %v1130 = vsel %vm938, %v630, %v1034
  %v1131 = vsel %vm939, %v635, %v1035
  %v1132 = vsel %vm940, %v638, %v1036
  %v1133 = vsel %vm941, %v643, %v1037
  %v1134 = vsel %vm942, %v646, %v1038
  %v1135 = vsel %vm943, %v651, %v1039
  %v1136 = vsel %vm944, %v654, %v1040
  %v1137 = vsel %vm945, %v659, %v1041
  %v1138 = vsel %vm946, %v662, %v1042
  %v1139 = vsel %vm947, %v667, %v1043
  %v1140 = vsel %vm948, %v670, %v1044
  %v1141 = vsel %vm949, %v675, %v1045
  %v1142 = vsel %vm950, %v678, %v1046
  %v1143 = vsel %vm951, %v683, %v1047
  %v1144 = vsel %vm952, %v686, %v1048
  %v1145 = vsel %vm953, %v691, %v1049
  %v1146 = vsel %vm954, %v694, %v1050
  %v1147 = vsel %vm955, %v699, %v1051
  %v1148 = vsel %vm956, %v702, %v1052
  %v1149 = vsel %vm957, %v707, %v1053
  %v1150 = vsel %vm958, %v710, %v1054
  %v1151 = vsel %vm959, %v715, %v1055
  %v1152 = vsel %vm960, %v718, %v1056
  %v1153 = vsel %vm961, %v723, %v1057
  %v1154 = vsel %vm962, %v726, %v1058
  %v1155 = vsel %vm963, %v731, %v1059
  %v1156 = vsel %vm964, %v734, %v1060
  %v1157 = vsel %vm965, %v739, %v1061
  %v1158 = vsel %vm966, %v742, %v1062
  %v1159 = vsel %vm967, %v747, %v1063
  %v1160 = vsel %vm968, %v750, %v1064
  %v1161 = vsel %vm969, %v755, %v1065
  %v1162 = vsel %vm970, %v758, %v1066
  %v1163 = vsel %vm971, %v763, %v1067
  %v1164 = vsel %vm972, %v766, %v1068
  %v1165 = vsel %vm973, %v771, %v1069
  %v1166 = vsel %vm974, %v774, %v1070
  %v1167 = vsel %vm975, %v779, %v1071
  %v1168 = vsel %vm976, %v782, %v1072
  %v1169 = vsel %vm977, %v787, %v1073
  %v1170 = vsel %vm978, %v790, %v1074
  %v1171 = vsel %vm979, %v795, %v1075
  %v1172 = vsel %vm980, %v798, %v1076
  %v1173 = vsel %vm981, %v803, %v1077
  %v1174 = vsel %vm982, %v806, %v1078
  %v1175 = vsel %vm983, %v811, %v1079
  %v1176 = vsel %vm984, %v814, %v1080
  %v1177 = vsel %vm985, %v819, %v1081
  %v1178 = vsel %vm986, %v822, %v1082
  %v1179 = vsel %vm987, %v827, %v1083
  %v1180 = vsel %vm988, %v830, %v1084
  %v1181 = vsel %vm989, %v835, %v1085
  %v1182 = vsel %vm990, %v838, %v1086
  %v1183 = vsel %vm991, %v843, %v1087
  %v1184 = vsel %vm992, %v846, %v1088
  %v1185 = vsel %vm993, %v851, %v1089
  %v1186 = vsel %vm994, %v854, %v1090
  %v1187 = vsel %vm995, %v859, %v1091
  %v1188 = vsel %vm996, %v862, %v1092
  %v1189 = vsel %vm997, %v867, %v1093
  %v1190 = vsel %vm998, %v870, %v1094
  %v1191 = vsel %vm999, %v875, %v1095
  %v1192 = vsel %vm1000, %v878, %v1096
  %v1193 = vsel %vm1001, %v883, %v1097
  %v1194 = vsel %vm1002, %v886, %v1098
  %v1195 = vsel %vm1003, %v891, %v1099
  %v1196 = vsel %vm1004, %v894, %v1100
  %v1197 = vsel %vm1005, %v899, %v1101
  %v1198 = vsel %vm1006, %v902, %v1102
  %v1199 = vsel %vm1007, %v907, %v1103
  %v1200 = vsel %vm1008, %v910, %v1104
  %v1201 = vpack.c.bf16 %v1106, %v1105
  %v1202 = vpack.c.bf16 %v1108, %v1107
  %v1203 = vpack.c.bf16 %v1110, %v1109
  %v1204 = vpack.c.bf16 %v1112, %v1111
  %v1205 = vpack.c.bf16 %v1114, %v1113
  %v1206 = vpack.c.bf16 %v1116, %v1115
  %v1207 = vpack.c.bf16 %v1118, %v1117
  %v1208 = vpack.c.bf16 %v1120, %v1119
  %v1209 = vpack.c.bf16 %v1122, %v1121
  %v1210 = vpack.c.bf16 %v1124, %v1123
  %v1211 = vpack.c.bf16 %v1126, %v1125
  %v1212 = vpack.c.bf16 %v1128, %v1127
  %v1213 = vpack.c.bf16 %v1130, %v1129
  %v1214 = vpack.c.bf16 %v1132, %v1131
  %v1215 = vpack.c.bf16 %v1134, %v1133
  %v1216 = vpack.c.bf16 %v1136, %v1135
  %v1217 = vpack.c.bf16 %v1138, %v1137
  %v1218 = vpack.c.bf16 %v1140, %v1139
  %v1219 = vpack.c.bf16 %v1142, %v1141
  %v1220 = vpack.c.bf16 %v1144, %v1143
  %v1221 = vpack.c.bf16 %v1146, %v1145
  %v1222 = vpack.c.bf16 %v1148, %v1147
  %v1223 = vpack.c.bf16 %v1150, %v1149
  %v1224 = vpack.c.bf16 %v1152, %v1151
  %v1225 = vpack.c.bf16 %v1154, %v1153
  %v1226 = vpack.c.bf16 %v1156, %v1155
  %v1227 = vpack.c.bf16 %v1158, %v1157
  %v1228 = vpack.c.bf16 %v1160, %v1159
  %v1229 = vpack.c.bf16 %v1162, %v1161
  %v1230 = vpack.c.bf16 %v1164, %v1163
  %v1231 = vpack.c.bf16 %v1166, %v1165
  %v1232 = vpack.c.bf16 %v1168, %v1167
  %v1233 = vpack.c.bf16 %v1170, %v1169
  %v1234 = vpack.c.bf16 %v1172, %v1171
  %v1235 = vpack.c.bf16 %v1174, %v1173
  %v1236 = vpack.c.bf16 %v1176, %v1175
  %v1237 = vpack.c.bf16 %v1178, %v1177
  %v1238 = vpack.c.bf16 %v1180, %v1179
  %v1239 = vpack.c.bf16 %v1182, %v1181
  %v1240 = vpack.c.bf16 %v1184, %v1183
  %v1241 = vpack.c.bf16 %v1186, %v1185
  %v1242 = vpack.c.bf16 %v1188, %v1187
  %v1243 = vpack.c.bf16 %v1190, %v1189
  %v1244 = vpack.c.bf16 %v1192, %v1191
  %v1245 = vpack.c.bf16 %v1194, %v1193
  %v1246 = vpack.c.bf16 %v1196, %v1195
  %v1247 = vpack.c.bf16 %v1198, %v1197
  %v1248 = vpack.c.bf16 %v1200, %v1199
  %v1249 = vld [vmem:[%s3] sm:$0xf]
  %v1250 = vld [vmem:[%s3 + $0x4] sm:$0xf]
  %v1251 = vld [vmem:[%s3 + $0x8] sm:$0xf]
  %v1252 = vld [vmem:[%s3 + $0xc] sm:$0xf]
  %v1253 = vld [vmem:[%s3 + $0x10] sm:$0xf]
  %v1254 = vld [vmem:[%s3 + $0x14] sm:$0xf]
  %v1255 = vld [vmem:[%s3 + $0x18] sm:$0xf]
  %v1256 = vld [vmem:[%s3 + $0x1c] sm:$0xf]
  %v1257 = vld [vmem:[%s3 + $0x20] sm:$0xf]
  %v1258 = vld [vmem:[%s3 + $0x24] sm:$0xf]
  %v1259 = vld [vmem:[%s3 + $0x28] sm:$0xf]
  %v1260 = vld [vmem:[%s3 + $0x2c] sm:$0xf]
  %v1261 = vld [vmem:[%s3 + $0x30] sm:$0xf]
  %v1262 = vld [vmem:[%s3 + $0x34] sm:$0xf]
  %v1263 = vld [vmem:[%s3 + $0x38] sm:$0xf]
  %v1264 = vld [vmem:[%s3 + $0x3c] sm:$0xf]
  %v1265 = vld [vmem:[%s4] sm:$0x1]
  %v1267 = vlaneseq
  %v1268 = vshrl.u32 %v1267, 7
  %v1269 = vsub.s32 0, %v1268
  %v1270 = vrot.slane %v1265, %v1269
  %v1288 = vunpack.c.l.b16 %v1249
  %v1289 = vunpack.c.l.b16 %v1250
  %v1290 = vunpack.c.l.b16 %v1251
  %v1291 = vunpack.c.l.b16 %v1252
  %v1292 = vunpack.c.l.b16 %v1253
  %v1293 = vunpack.c.l.b16 %v1254
  %v1294 = vunpack.c.l.b16 %v1255
  %v1295 = vunpack.c.l.b16 %v1256
  %v1296 = vunpack.c.l.b16 %v1257
  %v1297 = vunpack.c.l.b16 %v1258
  %v1298 = vunpack.c.l.b16 %v1259
  %v1299 = vunpack.c.l.b16 %v1260
  %v1300 = vunpack.c.l.b16 %v1261
  %v1301 = vunpack.c.l.b16 %v1262
  %v1302 = vunpack.c.l.b16 %v1263
  %v1303 = vunpack.c.l.b16 %v1264
  %v1304 = vpack.c.b16 %v1289, %v1288
  %v1305 = vpack.c.b16 %v1291, %v1290
  %v1306 = vpack.c.b16 %v1293, %v1292
  %v1307 = vpack.c.b16 %v1295, %v1294
  %v1308 = vpack.c.b16 %v1297, %v1296
  %v1309 = vpack.c.b16 %v1299, %v1298
  %v1310 = vpack.c.b16 %v1301, %v1300
  %v1311 = vpack.c.b16 %v1303, %v1302
  %1320 = vmatprep.subr.bf16.mxu0 0
  %1321 = vmatpush1.bf16.msra.mxu0 %v1304
  %1322 = vmatprep.subr.bf16.mxu0 0
  %1323 = vmatpush1.bf16.msra.mxu0 %v1305
  %1324 = vmatprep.subr.bf16.mxu0 0
  %1325 = vmatpush1.bf16.msra.mxu0 %v1306
  %1326 = vmatprep.subr.bf16.mxu0 0
  %1327 = vmatpush1.bf16.msra.mxu0 %v1307
  %1328 = vmatprep.subr.bf16.mxu0 0
  %1329 = vmatpush1.bf16.msra.mxu0 %v1308
  %1330 = vmatprep.subr.bf16.mxu0 0
  %1331 = vmatpush1.bf16.msra.mxu0 %v1309
  %1332 = vmatprep.subr.bf16.mxu0 0
  %1333 = vmatpush1.bf16.msra.mxu0 %v1310
  %1334 = vmatprep.subr.bf16.mxu0 0
  %1335 = vmatpush1.bf16.msra.mxu0 %v1311
  %1336 = vmatprep.subr.bf16.mxu0 0
  %1337 = vmatpush1.bf16.msra.mxu0 0
  %1338 = vmatprep.subr.bf16.mxu0 0
  %1339 = vmatpush1.bf16.msra.mxu0 0
  %1340 = vmatprep.subr.bf16.mxu0 0
  %1341 = vmatpush1.bf16.msra.mxu0 0
  %1342 = vmatprep.subr.bf16.mxu0 0
  %1343 = vmatpush1.bf16.msra.mxu0 0
  %1344 = vmatprep.subr.bf16.mxu0 0
  %1345 = vmatpush1.bf16.msra.mxu0 0
  %1346 = vmatprep.subr.bf16.mxu0 0
  %1347 = vmatpush1.bf16.msra.mxu0 0
  %1348 = vmatprep.subr.bf16.mxu0 0
  %1349 = vmatpush1.bf16.msra.mxu0 0
  %1350 = vmatprep.subr.bf16.mxu0 0
  %1351 = vmatpush1.bf16.msra.mxu0 0
  %1352 = vmatprep.mubr.bf16.mxu0 0
  %1353 = vmatmul.mubr.bf16.gmra.mrb[0].mxu0 %v1201
  %v1354 = vpop.f32.mrb[0].mxu0
  %v1355 = vadd.f32 %v1270, %v1354
  %v1356 = vpop.f32.mrb[0].mxu0
  %v1357 = vpop.f32.mrb[0].mxu0
  %v1358 = vadd.f32 %v1270, %v1357
  %v1359 = vpop.f32.mrb[0].mxu0
  %1360 = vmatprep.mubr.bf16.mxu0 0
  %1361 = vmatmul.mubr.bf16.gmra.mrb[0].mxu0 %v1202
  %v1362 = vpop.f32.mrb[0].mxu0
  %v1363 = vadd.f32 %v1270, %v1362
  %v1364 = vpop.f32.mrb[0].mxu0
  %v1365 = vpop.f32.mrb[0].mxu0
  %v1366 = vadd.f32 %v1270, %v1365
  %v1367 = vpop.f32.mrb[0].mxu0
  %1368 = vmatprep.mubr.bf16.mxu0 0
  %1369 = vmatmul.mubr.bf16.gmra.mrb[0].mxu0 %v1203
  %v1370 = vpop.f32.mrb[0].mxu0
  %v1371 = vadd.f32 %v1270, %v1370
  %v1372 = vpop.f32.mrb[0].mxu0
  %v1373 = vpop.f32.mrb[0].mxu0
  %v1374 = vadd.f32 %v1270, %v1373
  %v1375 = vpop.f32.mrb[0].mxu0
  %1376 = vmatprep.mubr.bf16.mxu0 0
  %1377 = vmatmul.mubr.bf16.gmra.mrb[0].mxu0 %v1204
  %v1378 = vpop.f32.mrb[0].mxu0
  %v1379 = vadd.f32 %v1270, %v1378
  %v1380 = vpop.f32.mrb[0].mxu0
  %v1381 = vpop.f32.mrb[0].mxu0
  %v1382 = vadd.f32 %v1270, %v1381
  %v1383 = vpop.f32.mrb[0].mxu0
  %1384 = vmatprep.mubr.bf16.mxu0 0
  %1385 = vmatmul.mubr.bf16.gmra.mrb[0].mxu0 %v1205
  %v1386 = vpop.f32.mrb[0].mxu0
  %v1387 = vadd.f32 %v1270, %v1386
  %v1388 = vpop.f32.mrb[0].mxu0
  %v1389 = vpop.f32.mrb[0].mxu0
  %v1390 = vadd.f32 %v1270, %v1389
  %v1391 = vpop.f32.mrb[0].mxu0
  %1392 = vmatprep.mubr.bf16.mxu0 0
  %1393 = vmatmul.mubr.bf16.gmra.mrb[0].mxu0 %v1206
  %v1394 = vpop.f32.mrb[0].mxu0
  %v1395 = vadd.f32 %v1270, %v1394
  %v1396 = vpop.f32.mrb[0].mxu0
  %v1397 = vpop.f32.mrb[0].mxu0
  %v1398 = vadd.f32 %v1270, %v1397
  %v1399 = vpop.f32.mrb[0].mxu0
  %1400 = vmatprep.mubr.bf16.mxu0 0
  %1401 = vmatmul.mubr.bf16.gmra.mrb[0].mxu0 %v1207
  %v1402 = vpop.f32.mrb[0].mxu0
  %v1403 = vadd.f32 %v1270, %v1402
  %v1404 = vpop.f32.mrb[0].mxu0
  %v1405 = vpop.f32.mrb[0].mxu0
  %v1406 = vadd.f32 %v1270, %v1405
  %v1407 = vpop.f32.mrb[0].mxu0
  %1408 = vmatprep.mubr.bf16.mxu0 0
  %1409 = vmatmul.mubr.bf16.gmra.mrb[0].mxu0 %v1208
  %v1410 = vpop.f32.mrb[0].mxu0
  %v1411 = vadd.f32 %v1270, %v1410
  %v1412 = vpop.f32.mrb[0].mxu0
  %v1413 = vpop.f32.mrb[0].mxu0
  %v1414 = vadd.f32 %v1270, %v1413
  %v1415 = vpop.f32.mrb[0].mxu0
  %1416 = vmatprep.mubr.bf16.mxu0 0
  %1417 = vmatmul.mubr.bf16.gmra.mrb[0].mxu0 %v1209
  %v1418 = vpop.f32.mrb[0].mxu0
  %v1419 = vadd.f32 %v1270, %v1418
  %v1420 = vpop.f32.mrb[0].mxu0
  %v1421 = vpop.f32.mrb[0].mxu0
  %v1422 = vadd.f32 %v1270, %v1421
  %v1423 = vpop.f32.mrb[0].mxu0
  %1424 = vmatprep.mubr.bf16.mxu0 0
  %1425 = vmatmul.mubr.bf16.gmra.mrb[0].mxu0 %v1210
  %v1426 = vpop.f32.mrb[0].mxu0
  %v1427 = vadd.f32 %v1270, %v1426
  %v1428 = vpop.f32.mrb[0].mxu0
  %v1429 = vpop.f32.mrb[0].mxu0
  %v1430 = vadd.f32 %v1270, %v1429
  %v1431 = vpop.f32.mrb[0].mxu0
  %1432 = vmatprep.mubr.bf16.mxu0 0
  %1433 = vmatmul.mubr.bf16.gmra.mrb[0].mxu0 %v1211
  %v1434 = vpop.f32.mrb[0].mxu0
  %v1435 = vadd.f32 %v1270, %v1434
  %v1436 = vpop.f32.mrb[0].mxu0
  %v1437 = vpop.f32.mrb[0].mxu0
  %v1438 = vadd.f32 %v1270, %v1437
  %v1439 = vpop.f32.mrb[0].mxu0
  %1440 = vmatprep.mubr.bf16.mxu0 0
  %1441 = vmatmul.mubr.bf16.gmra.mrb[0].mxu0 %v1212
  %v1442 = vpop.f32.mrb[0].mxu0
  %v1443 = vadd.f32 %v1270, %v1442
  %v1444 = vpop.f32.mrb[0].mxu0
  %v1445 = vpop.f32.mrb[0].mxu0
  %v1446 = vadd.f32 %v1270, %v1445
  %v1447 = vpop.f32.mrb[0].mxu0
  %1448 = vmatprep.mubr.bf16.mxu0 0
  %1449 = vmatmul.mubr.bf16.gmra.mrb[0].mxu0 %v1213
  %v1450 = vpop.f32.mrb[0].mxu0
  %v1451 = vadd.f32 %v1270, %v1450
  %v1452 = vpop.f32.mrb[0].mxu0
  %v1453 = vpop.f32.mrb[0].mxu0
  %v1454 = vadd.f32 %v1270, %v1453
  %v1455 = vpop.f32.mrb[0].mxu0
  %1456 = vmatprep.mubr.bf16.mxu0 0
  %1457 = vmatmul.mubr.bf16.gmra.mrb[0].mxu0 %v1214
  %v1458 = vpop.f32.mrb[0].mxu0
  %v1459 = vadd.f32 %v1270, %v1458
  %v1460 = vpop.f32.mrb[0].mxu0
  %v1461 = vpop.f32.mrb[0].mxu0
  %v1462 = vadd.f32 %v1270, %v1461
  %v1463 = vpop.f32.mrb[0].mxu0
  %1464 = vmatprep.mubr.bf16.mxu0 0
  %1465 = vmatmul.mubr.bf16.gmra.mrb[0].mxu0 %v1215
  %v1466 = vpop.f32.mrb[0].mxu0
  %v1467 = vadd.f32 %v1270, %v1466
  %v1468 = vpop.f32.mrb[0].mxu0
  %v1469 = vpop.f32.mrb[0].mxu0
  %v1470 = vadd.f32 %v1270, %v1469
  %v1471 = vpop.f32.mrb[0].mxu0
  %1472 = vmatprep.mubr.bf16.mxu0 0
  %1473 = vmatmul.mubr.bf16.gmra.mrb[0].mxu0 %v1216
  %v1474 = vpop.f32.mrb[0].mxu0
  %v1475 = vadd.f32 %v1270, %v1474
  %v1476 = vpop.f32.mrb[0].mxu0
  %v1477 = vpop.f32.mrb[0].mxu0
  %v1478 = vadd.f32 %v1270, %v1477
  %v1479 = vpop.f32.mrb[0].mxu0
  %1480 = vmatprep.mubr.bf16.mxu0 0
  %1481 = vmatmul.mubr.bf16.gmra.mrb[0].mxu0 %v1217
  %v1482 = vpop.f32.mrb[0].mxu0
  %v1483 = vadd.f32 %v1270, %v1482
  %v1484 = vpop.f32.mrb[0].mxu0
  %v1485 = vpop.f32.mrb[0].mxu0
  %v1486 = vadd.f32 %v1270, %v1485
  %v1487 = vpop.f32.mrb[0].mxu0
  %1488 = vmatprep.mubr.bf16.mxu0 0
  %1489 = vmatmul.mubr.bf16.gmra.mrb[0].mxu0 %v1218
  %v1490 = vpop.f32.mrb[0].mxu0
  %v1491 = vadd.f32 %v1270, %v1490
  %v1492 = vpop.f32.mrb[0].mxu0
  %v1493 = vpop.f32.mrb[0].mxu0
  %v1494 = vadd.f32 %v1270, %v1493
  %v1495 = vpop.f32.mrb[0].mxu0
  %1496 = vmatprep.mubr.bf16.mxu0 0
  %1497 = vmatmul.mubr.bf16.gmra.mrb[0].mxu0 %v1219
  %v1498 = vpop.f32.mrb[0].mxu0
  %v1499 = vadd.f32 %v1270, %v1498
  %v1500 = vpop.f32.mrb[0].mxu0
  %v1501 = vpop.f32.mrb[0].mxu0
  %v1502 = vadd.f32 %v1270, %v1501
  %v1503 = vpop.f32.mrb[0].mxu0
  %1504 = vmatprep.mubr.bf16.mxu0 0
  %1505 = vmatmul.mubr.bf16.gmra.mrb[0].mxu0 %v1220
  %v1506 = vpop.f32.mrb[0].mxu0
  %v1507 = vadd.f32 %v1270, %v1506
  %v1508 = vpop.f32.mrb[0].mxu0
  %v1509 = vpop.f32.mrb[0].mxu0
  %v1510 = vadd.f32 %v1270, %v1509
  %v1511 = vpop.f32.mrb[0].mxu0
  %1512 = vmatprep.mubr.bf16.mxu0 0
  %1513 = vmatmul.mubr.bf16.gmra.mrb[0].mxu0 %v1221
  %v1514 = vpop.f32.mrb[0].mxu0
  %v1515 = vadd.f32 %v1270, %v1514
  %v1516 = vpop.f32.mrb[0].mxu0
  %v1517 = vpop.f32.mrb[0].mxu0
  %v1518 = vadd.f32 %v1270, %v1517
  %v1519 = vpop.f32.mrb[0].mxu0
  %1520 = vmatprep.mubr.bf16.mxu0 0
  %1521 = vmatmul.mubr.bf16.gmra.mrb[0].mxu0 %v1222
  %v1522 = vpop.f32.mrb[0].mxu0
  %v1523 = vadd.f32 %v1270, %v1522
  %v1524 = vpop.f32.mrb[0].mxu0
  %v1525 = vpop.f32.mrb[0].mxu0
  %v1526 = vadd.f32 %v1270, %v1525
  %v1527 = vpop.f32.mrb[0].mxu0
  %1528 = vmatprep.mubr.bf16.mxu0 0
  %1529 = vmatmul.mubr.bf16.gmra.mrb[0].mxu0 %v1223
  %v1530 = vpop.f32.mrb[0].mxu0
  %v1531 = vadd.f32 %v1270, %v1530
  %v1532 = vpop.f32.mrb[0].mxu0
  %v1533 = vpop.f32.mrb[0].mxu0
  %v1534 = vadd.f32 %v1270, %v1533
  %v1535 = vpop.f32.mrb[0].mxu0
  %1536 = vmatprep.mubr.bf16.mxu0 0
  %1537 = vmatmul.mubr.bf16.gmra.mrb[0].mxu0 %v1224
  %v1538 = vpop.f32.mrb[0].mxu0
  %v1539 = vadd.f32 %v1270, %v1538
  %v1540 = vpop.f32.mrb[0].mxu0
  %v1541 = vpop.f32.mrb[0].mxu0
  %v1542 = vadd.f32 %v1270, %v1541
  %v1543 = vpop.f32.mrb[0].mxu0
  %1544 = vmatprep.mubr.bf16.mxu0 0
  %1545 = vmatmul.mubr.bf16.gmra.mrb[0].mxu0 %v1225
  %v1546 = vpop.f32.mrb[0].mxu0
  %v1547 = vadd.f32 %v1270, %v1546
  %v1548 = vpop.f32.mrb[0].mxu0
  %v1549 = vpop.f32.mrb[0].mxu0
  %v1550 = vadd.f32 %v1270, %v1549
  %v1551 = vpop.f32.mrb[0].mxu0
  %1552 = vmatprep.mubr.bf16.mxu0 0
  %1553 = vmatmul.mubr.bf16.gmra.mrb[0].mxu0 %v1226
  %v1554 = vpop.f32.mrb[0].mxu0
  %v1555 = vadd.f32 %v1270, %v1554
  %v1556 = vpop.f32.mrb[0].mxu0
  %v1557 = vpop.f32.mrb[0].mxu0
  %v1558 = vadd.f32 %v1270, %v1557
  %v1559 = vpop.f32.mrb[0].mxu0
  %1560 = vmatprep.mubr.bf16.mxu0 0
  %1561 = vmatmul.mubr.bf16.gmra.mrb[0].mxu0 %v1227
  %v1562 = vpop.f32.mrb[0].mxu0
  %v1563 = vadd.f32 %v1270, %v1562
  %v1564 = vpop.f32.mrb[0].mxu0
  %v1565 = vpop.f32.mrb[0].mxu0
  %v1566 = vadd.f32 %v1270, %v1565
  %v1567 = vpop.f32.mrb[0].mxu0
  %1568 = vmatprep.mubr.bf16.mxu0 0
  %1569 = vmatmul.mubr.bf16.gmra.mrb[0].mxu0 %v1228
  %v1570 = vpop.f32.mrb[0].mxu0
  %v1571 = vadd.f32 %v1270, %v1570
  %v1572 = vpop.f32.mrb[0].mxu0
  %v1573 = vpop.f32.mrb[0].mxu0
  %v1574 = vadd.f32 %v1270, %v1573
  %v1575 = vpop.f32.mrb[0].mxu0
  %1576 = vmatprep.mubr.bf16.mxu0 0
  %1577 = vmatmul.mubr.bf16.gmra.mrb[0].mxu0 %v1229
  %v1578 = vpop.f32.mrb[0].mxu0
  %v1579 = vadd.f32 %v1270, %v1578
  %v1580 = vpop.f32.mrb[0].mxu0
  %v1581 = vpop.f32.mrb[0].mxu0
  %v1582 = vadd.f32 %v1270, %v1581
  %v1583 = vpop.f32.mrb[0].mxu0
  %1584 = vmatprep.mubr.bf16.mxu0 0
  %1585 = vmatmul.mubr.bf16.gmra.mrb[0].mxu0 %v1230
  %v1586 = vpop.f32.mrb[0].mxu0
  %v1587 = vadd.f32 %v1270, %v1586
  %v1588 = vpop.f32.mrb[0].mxu0
  %v1589 = vpop.f32.mrb[0].mxu0
  %v1590 = vadd.f32 %v1270, %v1589
  %v1591 = vpop.f32.mrb[0].mxu0
  %1592 = vmatprep.mubr.bf16.mxu0 0
  %1593 = vmatmul.mubr.bf16.gmra.mrb[0].mxu0 %v1231
  %v1594 = vpop.f32.mrb[0].mxu0
  %v1595 = vadd.f32 %v1270, %v1594
  %v1596 = vpop.f32.mrb[0].mxu0
  %v1597 = vpop.f32.mrb[0].mxu0
  %v1598 = vadd.f32 %v1270, %v1597
  %v1599 = vpop.f32.mrb[0].mxu0
  %1600 = vmatprep.mubr.bf16.mxu0 0
  %1601 = vmatmul.mubr.bf16.gmra.mrb[0].mxu0 %v1232
  %v1602 = vpop.f32.mrb[0].mxu0
  %v1603 = vadd.f32 %v1270, %v1602
  %v1604 = vpop.f32.mrb[0].mxu0
  %v1605 = vpop.f32.mrb[0].mxu0
  %v1606 = vadd.f32 %v1270, %v1605
  %v1607 = vpop.f32.mrb[0].mxu0
  %1608 = vmatprep.mubr.bf16.mxu0 0
  %1609 = vmatmul.mubr.bf16.gmra.mrb[0].mxu0 %v1233
  %v1610 = vpop.f32.mrb[0].mxu0
  %v1611 = vadd.f32 %v1270, %v1610
  %v1612 = vpop.f32.mrb[0].mxu0
  %v1613 = vpop.f32.mrb[0].mxu0
  %v1614 = vadd.f32 %v1270, %v1613
  %v1615 = vpop.f32.mrb[0].mxu0
  %1616 = vmatprep.mubr.bf16.mxu0 0
  %1617 = vmatmul.mubr.bf16.gmra.mrb[0].mxu0 %v1234
  %v1618 = vpop.f32.mrb[0].mxu0
  %v1619 = vadd.f32 %v1270, %v1618
  %v1620 = vpop.f32.mrb[0].mxu0
  %v1621 = vpop.f32.mrb[0].mxu0
  %v1622 = vadd.f32 %v1270, %v1621
  %v1623 = vpop.f32.mrb[0].mxu0
  %1624 = vmatprep.mubr.bf16.mxu0 0
  %1625 = vmatmul.mubr.bf16.gmra.mrb[0].mxu0 %v1235
  %v1626 = vpop.f32.mrb[0].mxu0
  %v1627 = vadd.f32 %v1270, %v1626
  %v1628 = vpop.f32.mrb[0].mxu0
  %v1629 = vpop.f32.mrb[0].mxu0
  %v1630 = vadd.f32 %v1270, %v1629
  %v1631 = vpop.f32.mrb[0].mxu0
  %1632 = vmatprep.mubr.bf16.mxu0 0
  %1633 = vmatmul.mubr.bf16.gmra.mrb[0].mxu0 %v1236
  %v1634 = vpop.f32.mrb[0].mxu0
  %v1635 = vadd.f32 %v1270, %v1634
  %v1636 = vpop.f32.mrb[0].mxu0
  %v1637 = vpop.f32.mrb[0].mxu0
  %v1638 = vadd.f32 %v1270, %v1637
  %v1639 = vpop.f32.mrb[0].mxu0
  %1640 = vmatprep.mubr.bf16.mxu0 0
  %1641 = vmatmul.mubr.bf16.gmra.mrb[0].mxu0 %v1237
  %v1642 = vpop.f32.mrb[0].mxu0
  %v1643 = vadd.f32 %v1270, %v1642
  %v1644 = vpop.f32.mrb[0].mxu0
  %v1645 = vpop.f32.mrb[0].mxu0
  %v1646 = vadd.f32 %v1270, %v1645
  %v1647 = vpop.f32.mrb[0].mxu0
  %1648 = vmatprep.mubr.bf16.mxu0 0
  %1649 = vmatmul.mubr.bf16.gmra.mrb[0].mxu0 %v1238
  %v1650 = vpop.f32.mrb[0].mxu0
  %v1651 = vadd.f32 %v1270, %v1650
  %v1652 = vpop.f32.mrb[0].mxu0
  %v1653 = vpop.f32.mrb[0].mxu0
  %v1654 = vadd.f32 %v1270, %v1653
  %v1655 = vpop.f32.mrb[0].mxu0
  %1656 = vmatprep.mubr.bf16.mxu0 0
  %1657 = vmatmul.mubr.bf16.gmra.mrb[0].mxu0 %v1239
  %v1658 = vpop.f32.mrb[0].mxu0
  %v1659 = vadd.f32 %v1270, %v1658
  %v1660 = vpop.f32.mrb[0].mxu0
  %v1661 = vpop.f32.mrb[0].mxu0
  %v1662 = vadd.f32 %v1270, %v1661
  %v1663 = vpop.f32.mrb[0].mxu0
  %1664 = vmatprep.mubr.bf16.mxu0 0
  %1665 = vmatmul.mubr.bf16.gmra.mrb[0].mxu0 %v1240
  %v1666 = vpop.f32.mrb[0].mxu0
  %v1667 = vadd.f32 %v1270, %v1666
  %v1668 = vpop.f32.mrb[0].mxu0
  %v1669 = vpop.f32.mrb[0].mxu0
  %v1670 = vadd.f32 %v1270, %v1669
  %v1671 = vpop.f32.mrb[0].mxu0
  %1672 = vmatprep.mubr.bf16.mxu0 0
  %1673 = vmatmul.mubr.bf16.gmra.mrb[0].mxu0 %v1241
  %v1674 = vpop.f32.mrb[0].mxu0
  %v1675 = vadd.f32 %v1270, %v1674
  %v1676 = vpop.f32.mrb[0].mxu0
  %v1677 = vpop.f32.mrb[0].mxu0
  %v1678 = vadd.f32 %v1270, %v1677
  %v1679 = vpop.f32.mrb[0].mxu0
  %1680 = vmatprep.mubr.bf16.mxu0 0
  %1681 = vmatmul.mubr.bf16.gmra.mrb[0].mxu0 %v1242
  %v1682 = vpop.f32.mrb[0].mxu0
  %v1683 = vadd.f32 %v1270, %v1682
  %v1684 = vpop.f32.mrb[0].mxu0
  %v1685 = vpop.f32.mrb[0].mxu0
  %v1686 = vadd.f32 %v1270, %v1685
  %v1687 = vpop.f32.mrb[0].mxu0
  %1688 = vmatprep.mubr.bf16.mxu0 0
  %1689 = vmatmul.mubr.bf16.gmra.mrb[0].mxu0 %v1243
  %v1690 = vpop.f32.mrb[0].mxu0
  %v1691 = vadd.f32 %v1270, %v1690
  %v1692 = vpop.f32.mrb[0].mxu0
  %v1693 = vpop.f32.mrb[0].mxu0
  %v1694 = vadd.f32 %v1270, %v1693
  %v1695 = vpop.f32.mrb[0].mxu0
  %1696 = vmatprep.mubr.bf16.mxu0 0
  %1697 = vmatmul.mubr.bf16.gmra.mrb[0].mxu0 %v1244
  %v1698 = vpop.f32.mrb[0].mxu0
  %v1699 = vadd.f32 %v1270, %v1698
  %v1700 = vpop.f32.mrb[0].mxu0
  %v1701 = vpop.f32.mrb[0].mxu0
  %v1702 = vadd.f32 %v1270, %v1701
  %v1703 = vpop.f32.mrb[0].mxu0
  %1704 = vmatprep.mubr.bf16.mxu0 0
  %1705 = vmatmul.mubr.bf16.gmra.mrb[0].mxu0 %v1245
  %v1706 = vpop.f32.mrb[0].mxu0
  %v1707 = vadd.f32 %v1270, %v1706
  %v1708 = vpop.f32.mrb[0].mxu0
  %v1709 = vpop.f32.mrb[0].mxu0
  %v1710 = vadd.f32 %v1270, %v1709
  %v1711 = vpop.f32.mrb[0].mxu0
  %1712 = vmatprep.mubr.bf16.mxu0 0
  %1713 = vmatmul.mubr.bf16.gmra.mrb[0].mxu0 %v1246
  %v1714 = vpop.f32.mrb[0].mxu0
  %v1715 = vadd.f32 %v1270, %v1714
  %v1716 = vpop.f32.mrb[0].mxu0
  %v1717 = vpop.f32.mrb[0].mxu0
  %v1718 = vadd.f32 %v1270, %v1717
  %v1719 = vpop.f32.mrb[0].mxu0
  %1720 = vmatprep.mubr.bf16.mxu0 0
  %1721 = vmatmul.mubr.bf16.gmra.mrb[0].mxu0 %v1247
  %v1722 = vpop.f32.mrb[0].mxu0
  %v1723 = vadd.f32 %v1270, %v1722
  %v1724 = vpop.f32.mrb[0].mxu0
  %v1725 = vpop.f32.mrb[0].mxu0
  %v1726 = vadd.f32 %v1270, %v1725
  %v1727 = vpop.f32.mrb[0].mxu0
  %1728 = vmatprep.mubr.bf16.mxu0 0
  %1729 = vmatmul.mubr.bf16.gmra.mrb[0].mxu0 %v1248
  %v1730 = vpop.f32.mrb[0].mxu0
  %v1731 = vadd.f32 %v1270, %v1730
  %v1732 = vpop.f32.mrb[0].mxu0
  %v1733 = vpop.f32.mrb[0].mxu0
  %v1734 = vadd.f32 %v1270, %v1733
  %v1735 = vpop.f32.mrb[0].mxu0
  %1736 = vdwg.mxu0
  %vm1737 = vcmp.gt.f32.partialorder %v1355, 0.0
  %vm1738 = vcmp.gt.f32.partialorder %v1358, 0.0
  %vm1739 = vcmp.gt.f32.partialorder %v1363, 0.0
  %vm1740 = vcmp.gt.f32.partialorder %v1366, 0.0
  %vm1741 = vcmp.gt.f32.partialorder %v1371, 0.0
  %vm1742 = vcmp.gt.f32.partialorder %v1374, 0.0
  %vm1743 = vcmp.gt.f32.partialorder %v1379, 0.0
  %vm1744 = vcmp.gt.f32.partialorder %v1382, 0.0
  %vm1745 = vcmp.gt.f32.partialorder %v1387, 0.0
  %vm1746 = vcmp.gt.f32.partialorder %v1390, 0.0
  %vm1747 = vcmp.gt.f32.partialorder %v1395, 0.0
  %vm1748 = vcmp.gt.f32.partialorder %v1398, 0.0
  %vm1749 = vcmp.gt.f32.partialorder %v1403, 0.0
  %vm1750 = vcmp.gt.f32.partialorder %v1406, 0.0
  %vm1751 = vcmp.gt.f32.partialorder %v1411, 0.0
  %vm1752 = vcmp.gt.f32.partialorder %v1414, 0.0
  %vm1753 = vcmp.gt.f32.partialorder %v1419, 0.0
  %vm1754 = vcmp.gt.f32.partialorder %v1422, 0.0
  %vm1755 = vcmp.gt.f32.partialorder %v1427, 0.0
  %vm1756 = vcmp.gt.f32.partialorder %v1430, 0.0
  %vm1757 = vcmp.gt.f32.partialorder %v1435, 0.0
  %vm1758 = vcmp.gt.f32.partialorder %v1438, 0.0
  %vm1759 = vcmp.gt.f32.partialorder %v1443, 0.0
  %vm1760 = vcmp.gt.f32.partialorder %v1446, 0.0
  %vm1761 = vcmp.gt.f32.partialorder %v1451, 0.0
  %vm1762 = vcmp.gt.f32.partialorder %v1454, 0.0
  %vm1763 = vcmp.gt.f32.partialorder %v1459, 0.0
  %vm1764 = vcmp.gt.f32.partialorder %v1462, 0.0
  %vm1765 = vcmp.gt.f32.partialorder %v1467, 0.0
  %vm1766 = vcmp.gt.f32.partialorder %v1470, 0.0
  %vm1767 = vcmp.gt.f32.partialorder %v1475, 0.0
  %vm1768 = vcmp.gt.f32.partialorder %v1478, 0.0
  %vm1769 = vcmp.gt.f32.partialorder %v1483, 0.0
  %vm1770 = vcmp.gt.f32.partialorder %v1486, 0.0
  %vm1771 = vcmp.gt.f32.partialorder %v1491, 0.0
  %vm1772 = vcmp.gt.f32.partialorder %v1494, 0.0
  %vm1773 = vcmp.gt.f32.partialorder %v1499, 0.0
  %vm1774 = vcmp.gt.f32.partialorder %v1502, 0.0
  %vm1775 = vcmp.gt.f32.partialorder %v1507, 0.0
  %vm1776 = vcmp.gt.f32.partialorder %v1510, 0.0
  %vm1777 = vcmp.gt.f32.partialorder %v1515, 0.0
  %vm1778 = vcmp.gt.f32.partialorder %v1518, 0.0
  %vm1779 = vcmp.gt.f32.partialorder %v1523, 0.0
  %vm1780 = vcmp.gt.f32.partialorder %v1526, 0.0
  %vm1781 = vcmp.gt.f32.partialorder %v1531, 0.0
  %vm1782 = vcmp.gt.f32.partialorder %v1534, 0.0
  %vm1783 = vcmp.gt.f32.partialorder %v1539, 0.0
  %vm1784 = vcmp.gt.f32.partialorder %v1542, 0.0
  %vm1785 = vcmp.gt.f32.partialorder %v1547, 0.0
  %vm1786 = vcmp.gt.f32.partialorder %v1550, 0.0
  %vm1787 = vcmp.gt.f32.partialorder %v1555, 0.0
  %vm1788 = vcmp.gt.f32.partialorder %v1558, 0.0
  %vm1789 = vcmp.gt.f32.partialorder %v1563, 0.0
  %vm1790 = vcmp.gt.f32.partialorder %v1566, 0.0
  %vm1791 = vcmp.gt.f32.partialorder %v1571, 0.0
  %vm1792 = vcmp.gt.f32.partialorder %v1574, 0.0
  %vm1793 = vcmp.gt.f32.partialorder %v1579, 0.0
  %vm1794 = vcmp.gt.f32.partialorder %v1582, 0.0
  %vm1795 = vcmp.gt.f32.partialorder %v1587, 0.0
  %vm1796 = vcmp.gt.f32.partialorder %v1590, 0.0
  %vm1797 = vcmp.gt.f32.partialorder %v1595, 0.0
  %vm1798 = vcmp.gt.f32.partialorder %v1598, 0.0
  %vm1799 = vcmp.gt.f32.partialorder %v1603, 0.0
  %vm1800 = vcmp.gt.f32.partialorder %v1606, 0.0
  %vm1801 = vcmp.gt.f32.partialorder %v1611, 0.0
  %vm1802 = vcmp.gt.f32.partialorder %v1614, 0.0
  %vm1803 = vcmp.gt.f32.partialorder %v1619, 0.0
  %vm1804 = vcmp.gt.f32.partialorder %v1622, 0.0
  %vm1805 = vcmp.gt.f32.partialorder %v1627, 0.0
  %vm1806 = vcmp.gt.f32.partialorder %v1630, 0.0
  %vm1807 = vcmp.gt.f32.partialorder %v1635, 0.0
  %vm1808 = vcmp.gt.f32.partialorder %v1638, 0.0
  %vm1809 = vcmp.gt.f32.partialorder %v1643, 0.0
  %vm1810 = vcmp.gt.f32.partialorder %v1646, 0.0
  %vm1811 = vcmp.gt.f32.partialorder %v1651, 0.0
  %vm1812 = vcmp.gt.f32.partialorder %v1654, 0.0
  %vm1813 = vcmp.gt.f32.partialorder %v1659, 0.0
  %vm1814 = vcmp.gt.f32.partialorder %v1662, 0.0
  %vm1815 = vcmp.gt.f32.partialorder %v1667, 0.0
  %vm1816 = vcmp.gt.f32.partialorder %v1670, 0.0
  %vm1817 = vcmp.gt.f32.partialorder %v1675, 0.0
  %vm1818 = vcmp.gt.f32.partialorder %v1678, 0.0
  %vm1819 = vcmp.gt.f32.partialorder %v1683, 0.0
  %vm1820 = vcmp.gt.f32.partialorder %v1686, 0.0
  %vm1821 = vcmp.gt.f32.partialorder %v1691, 0.0
  %vm1822 = vcmp.gt.f32.partialorder %v1694, 0.0
  %vm1823 = vcmp.gt.f32.partialorder %v1699, 0.0
  %vm1824 = vcmp.gt.f32.partialorder %v1702, 0.0
  %vm1825 = vcmp.gt.f32.partialorder %v1707, 0.0
  %vm1826 = vcmp.gt.f32.partialorder %v1710, 0.0
  %vm1827 = vcmp.gt.f32.partialorder %v1715, 0.0
  %vm1828 = vcmp.gt.f32.partialorder %v1718, 0.0
  %vm1829 = vcmp.gt.f32.partialorder %v1723, 0.0
  %vm1830 = vcmp.gt.f32.partialorder %v1726, 0.0
  %vm1831 = vcmp.gt.f32.partialorder %v1731, 0.0
  %vm1832 = vcmp.gt.f32.partialorder %v1734, 0.0
  %v1833 = vmul.f32 %v1355, 0.01
  %v1834 = vmul.f32 %v1358, 0.01
  %v1835 = vmul.f32 %v1363, 0.01
  %v1836 = vmul.f32 %v1366, 0.01
  %v1837 = vmul.f32 %v1371, 0.01
  %v1838 = vmul.f32 %v1374, 0.01
  %v1839 = vmul.f32 %v1379, 0.01
  %v1840 = vmul.f32 %v1382, 0.01
  %v1841 = vmul.f32 %v1387, 0.01
  %v1842 = vmul.f32 %v1390, 0.01
  %v1843 = vmul.f32 %v1395, 0.01
  %v1844 = vmul.f32 %v1398, 0.01
  %v1845 = vmul.f32 %v1403, 0.01
  %v1846 = vmul.f32 %v1406, 0.01
  %v1847 = vmul.f32 %v1411, 0.01
  %v1848 = vmul.f32 %v1414, 0.01
  %v1849 = vmul.f32 %v1419, 0.01
  %v1850 = vmul.f32 %v1422, 0.01
  %v1851 = vmul.f32 %v1427, 0.01
  %v1852 = vmul.f32 %v1430, 0.01
  %v1853 = vmul.f32 %v1435, 0.01
  %v1854 = vmul.f32 %v1438, 0.01
  %v1855 = vmul.f32 %v1443, 0.01
  %v1856 = vmul.f32 %v1446, 0.01
  %v1857 = vmul.f32 %v1451, 0.01
  %v1858 = vmul.f32 %v1454, 0.01
  %v1859 = vmul.f32 %v1459, 0.01
  %v1860 = vmul.f32 %v1462, 0.01
  %v1861 = vmul.f32 %v1467, 0.01
  %v1862 = vmul.f32 %v1470, 0.01
  %v1863 = vmul.f32 %v1475, 0.01
  %v1864 = vmul.f32 %v1478, 0.01
  %v1865 = vmul.f32 %v1483, 0.01
  %v1866 = vmul.f32 %v1486, 0.01
  %v1867 = vmul.f32 %v1491, 0.01
  %v1868 = vmul.f32 %v1494, 0.01
  %v1869 = vmul.f32 %v1499, 0.01
  %v1870 = vmul.f32 %v1502, 0.01
  %v1871 = vmul.f32 %v1507, 0.01
  %v1872 = vmul.f32 %v1510, 0.01
  %v1873 = vmul.f32 %v1515, 0.01
  %v1874 = vmul.f32 %v1518, 0.01
  %v1875 = vmul.f32 %v1523, 0.01
  %v1876 = vmul.f32 %v1526, 0.01
  %v1877 = vmul.f32 %v1531, 0.01
  %v1878 = vmul.f32 %v1534, 0.01
  %v1879 = vmul.f32 %v1539, 0.01
  %v1880 = vmul.f32 %v1542, 0.01
  %v1881 = vmul.f32 %v1547, 0.01
  %v1882 = vmul.f32 %v1550, 0.01
  %v1883 = vmul.f32 %v1555, 0.01
  %v1884 = vmul.f32 %v1558, 0.01
  %v1885 = vmul.f32 %v1563, 0.01
  %v1886 = vmul.f32 %v1566, 0.01
  %v1887 = vmul.f32 %v1571, 0.01
  %v1888 = vmul.f32 %v1574, 0.01
  %v1889 = vmul.f32 %v1579, 0.01
  %v1890 = vmul.f32 %v1582, 0.01
  %v1891 = vmul.f32 %v1587, 0.01
  %v1892 = vmul.f32 %v1590, 0.01
  %v1893 = vmul.f32 %v1595, 0.01
  %v1894 = vmul.f32 %v1598, 0.01
  %v1895 = vmul.f32 %v1603, 0.01
  %v1896 = vmul.f32 %v1606, 0.01
  %v1897 = vmul.f32 %v1611, 0.01
  %v1898 = vmul.f32 %v1614, 0.01
  %v1899 = vmul.f32 %v1619, 0.01
  %v1900 = vmul.f32 %v1622, 0.01
  %v1901 = vmul.f32 %v1627, 0.01
  %v1902 = vmul.f32 %v1630, 0.01
  %v1903 = vmul.f32 %v1635, 0.01
  %v1904 = vmul.f32 %v1638, 0.01
  %v1905 = vmul.f32 %v1643, 0.01
  %v1906 = vmul.f32 %v1646, 0.01
  %v1907 = vmul.f32 %v1651, 0.01
  %v1908 = vmul.f32 %v1654, 0.01
  %v1909 = vmul.f32 %v1659, 0.01
  %v1910 = vmul.f32 %v1662, 0.01
  %v1911 = vmul.f32 %v1667, 0.01
  %v1912 = vmul.f32 %v1670, 0.01
  %v1913 = vmul.f32 %v1675, 0.01
  %v1914 = vmul.f32 %v1678, 0.01
  %v1915 = vmul.f32 %v1683, 0.01
  %v1916 = vmul.f32 %v1686, 0.01
  %v1917 = vmul.f32 %v1691, 0.01
  %v1918 = vmul.f32 %v1694, 0.01
  %v1919 = vmul.f32 %v1699, 0.01
  %v1920 = vmul.f32 %v1702, 0.01
  %v1921 = vmul.f32 %v1707, 0.01
  %v1922 = vmul.f32 %v1710, 0.01
  %v1923 = vmul.f32 %v1715, 0.01
  %v1924 = vmul.f32 %v1718, 0.01
  %v1925 = vmul.f32 %v1723, 0.01
  %v1926 = vmul.f32 %v1726, 0.01
  %v1927 = vmul.f32 %v1731, 0.01
  %v1928 = vmul.f32 %v1734, 0.01
  %v1929 = vsel %vm1737, %v1355, %v1833
  %v1930 = vsel %vm1738, %v1358, %v1834
  %v1931 = vsel %vm1739, %v1363, %v1835
  %v1932 = vsel %vm1740, %v1366, %v1836
  %v1933 = vsel %vm1741, %v1371, %v1837
  %v1934 = vsel %vm1742, %v1374, %v1838
  %v1935 = vsel %vm1743, %v1379, %v1839
  %v1936 = vsel %vm1744, %v1382, %v1840
  %v1937 = vsel %vm1745, %v1387, %v1841
  %v1938 = vsel %vm1746, %v1390, %v1842
  %v1939 = vsel %vm1747, %v1395, %v1843
  %v1940 = vsel %vm1748, %v1398, %v1844
  %v1941 = vsel %vm1749, %v1403, %v1845
  %v1942 = vsel %vm1750, %v1406, %v1846
  %v1943 = vsel %vm1751, %v1411, %v1847
  %v1944 = vsel %vm1752, %v1414, %v1848
  %v1945 = vsel %vm1753, %v1419, %v1849
  %v1946 = vsel %vm1754, %v1422, %v1850
  %v1947 = vsel %vm1755, %v1427, %v1851
  %v1948 = vsel %vm1756, %v1430, %v1852
  %v1949 = vsel %vm1757, %v1435, %v1853
  %v1950 = vsel %vm1758, %v1438, %v1854
  %v1951 = vsel %vm1759, %v1443, %v1855
  %v1952 = vsel %vm1760, %v1446, %v1856
  %v1953 = vsel %vm1761, %v1451, %v1857
  %v1954 = vsel %vm1762, %v1454, %v1858
  %v1955 = vsel %vm1763, %v1459, %v1859
  %v1956 = vsel %vm1764, %v1462, %v1860
  %v1957 = vsel %vm1765, %v1467, %v1861
  %v1958 = vsel %vm1766, %v1470, %v1862
  %v1959 = vsel %vm1767, %v1475, %v1863
  %v1960 = vsel %vm1768, %v1478, %v1864
  %v1961 = vsel %vm1769, %v1483, %v1865
  %v1962 = vsel %vm1770, %v1486, %v1866
  %v1963 = vsel %vm1771, %v1491, %v1867
  %v1964 = vsel %vm1772, %v1494, %v1868
  %v1965 = vsel %vm1773, %v1499, %v1869
  %v1966 = vsel %vm1774, %v1502, %v1870
  %v1967 = vsel %vm1775, %v1507, %v1871
  %v1968 = vsel %vm1776, %v1510, %v1872
  %v1969 = vsel %vm1777, %v1515, %v1873
  %v1970 = vsel %vm1778, %v1518, %v1874
  %v1971 = vsel %vm1779, %v1523, %v1875
  %v1972 = vsel %vm1780, %v1526, %v1876
  %v1973 = vsel %vm1781, %v1531, %v1877
  %v1974 = vsel %vm1782, %v1534, %v1878
  %v1975 = vsel %vm1783, %v1539, %v1879
  %v1976 = vsel %vm1784, %v1542, %v1880
  %v1977 = vsel %vm1785, %v1547, %v1881
  %v1978 = vsel %vm1786, %v1550, %v1882
  %v1979 = vsel %vm1787, %v1555, %v1883
  %v1980 = vsel %vm1788, %v1558, %v1884
  %v1981 = vsel %vm1789, %v1563, %v1885
  %v1982 = vsel %vm1790, %v1566, %v1886
  %v1983 = vsel %vm1791, %v1571, %v1887
  %v1984 = vsel %vm1792, %v1574, %v1888
  %v1985 = vsel %vm1793, %v1579, %v1889
  %v1986 = vsel %vm1794, %v1582, %v1890
  %v1987 = vsel %vm1795, %v1587, %v1891
  %v1988 = vsel %vm1796, %v1590, %v1892
  %v1989 = vsel %vm1797, %v1595, %v1893
  %v1990 = vsel %vm1798, %v1598, %v1894
  %v1991 = vsel %vm1799, %v1603, %v1895
  %v1992 = vsel %vm1800, %v1606, %v1896
  %v1993 = vsel %vm1801, %v1611, %v1897
  %v1994 = vsel %vm1802, %v1614, %v1898
  %v1995 = vsel %vm1803, %v1619, %v1899
  %v1996 = vsel %vm1804, %v1622, %v1900
  %v1997 = vsel %vm1805, %v1627, %v1901
  %v1998 = vsel %vm1806, %v1630, %v1902
  %v1999 = vsel %vm1807, %v1635, %v1903
  %v2000 = vsel %vm1808, %v1638, %v1904
  %v2001 = vsel %vm1809, %v1643, %v1905
  %v2002 = vsel %vm1810, %v1646, %v1906
  %v2003 = vsel %vm1811, %v1651, %v1907
  %v2004 = vsel %vm1812, %v1654, %v1908
  %v2005 = vsel %vm1813, %v1659, %v1909
  %v2006 = vsel %vm1814, %v1662, %v1910
  %v2007 = vsel %vm1815, %v1667, %v1911
  %v2008 = vsel %vm1816, %v1670, %v1912
  %v2009 = vsel %vm1817, %v1675, %v1913
  %v2010 = vsel %vm1818, %v1678, %v1914
  %v2011 = vsel %vm1819, %v1683, %v1915
  %v2012 = vsel %vm1820, %v1686, %v1916
  %v2013 = vsel %vm1821, %v1691, %v1917
  %v2014 = vsel %vm1822, %v1694, %v1918
  %v2015 = vsel %vm1823, %v1699, %v1919
  %v2016 = vsel %vm1824, %v1702, %v1920
  %v2017 = vsel %vm1825, %v1707, %v1921
  %v2018 = vsel %vm1826, %v1710, %v1922
  %v2019 = vsel %vm1827, %v1715, %v1923
  %v2020 = vsel %vm1828, %v1718, %v1924
  %v2021 = vsel %vm1829, %v1723, %v1925
  %v2022 = vsel %vm1830, %v1726, %v1926
  %v2023 = vsel %vm1831, %v1731, %v1927
  %v2024 = vsel %vm1832, %v1734, %v1928
  %v2025 = vpack.c.bf16 %v1930, %v1929
  %v2026 = vpack.c.bf16 %v1932, %v1931
  %v2027 = vpack.c.bf16 %v1934, %v1933
  %v2028 = vpack.c.bf16 %v1936, %v1935
  %v2029 = vpack.c.bf16 %v1938, %v1937
  %v2030 = vpack.c.bf16 %v1940, %v1939
  %v2031 = vpack.c.bf16 %v1942, %v1941
  %v2032 = vpack.c.bf16 %v1944, %v1943
  %v2033 = vpack.c.bf16 %v1946, %v1945
  %v2034 = vpack.c.bf16 %v1948, %v1947
  %v2035 = vpack.c.bf16 %v1950, %v1949
  %v2036 = vpack.c.bf16 %v1952, %v1951
  %v2037 = vpack.c.bf16 %v1954, %v1953
  %v2038 = vpack.c.bf16 %v1956, %v1955
  %v2039 = vpack.c.bf16 %v1958, %v1957
  %v2040 = vpack.c.bf16 %v1960, %v1959
  %v2041 = vpack.c.bf16 %v1962, %v1961
  %v2042 = vpack.c.bf16 %v1964, %v1963
  %v2043 = vpack.c.bf16 %v1966, %v1965
  %v2044 = vpack.c.bf16 %v1968, %v1967
  %v2045 = vpack.c.bf16 %v1970, %v1969
  %v2046 = vpack.c.bf16 %v1972, %v1971
  %v2047 = vpack.c.bf16 %v1974, %v1973
  %v2048 = vpack.c.bf16 %v1976, %v1975
  %v2049 = vpack.c.bf16 %v1978, %v1977
  %v2050 = vpack.c.bf16 %v1980, %v1979
  %v2051 = vpack.c.bf16 %v1982, %v1981
  %v2052 = vpack.c.bf16 %v1984, %v1983
  %v2053 = vpack.c.bf16 %v1986, %v1985
  %v2054 = vpack.c.bf16 %v1988, %v1987
  %v2055 = vpack.c.bf16 %v1990, %v1989
  %v2056 = vpack.c.bf16 %v1992, %v1991
  %v2057 = vpack.c.bf16 %v1994, %v1993
  %v2058 = vpack.c.bf16 %v1996, %v1995
  %v2059 = vpack.c.bf16 %v1998, %v1997
  %v2060 = vpack.c.bf16 %v2000, %v1999
  %v2061 = vpack.c.bf16 %v2002, %v2001
  %v2062 = vpack.c.bf16 %v2004, %v2003
  %v2063 = vpack.c.bf16 %v2006, %v2005
  %v2064 = vpack.c.bf16 %v2008, %v2007
  %v2065 = vpack.c.bf16 %v2010, %v2009
  %v2066 = vpack.c.bf16 %v2012, %v2011
  %v2067 = vpack.c.bf16 %v2014, %v2013
  %v2068 = vpack.c.bf16 %v2016, %v2015
  %v2069 = vpack.c.bf16 %v2018, %v2017
  %v2070 = vpack.c.bf16 %v2020, %v2019
  %v2071 = vpack.c.bf16 %v2022, %v2021
  %v2072 = vpack.c.bf16 %v2024, %v2023
  %v2073 = vlaneseq
  %v2074 = vand.u32 %v2073, 127
  %vm2075 = vcmp.lt.s32.totalorder %v2074, 64
  %vm2076 = vmpackc.low %vm2075, %vm2075
  %v2077 = vsel %vm2076, 65537, 0
  %v2078 = vlaneseq
  %v2079 = vshrl.u32 %v2078, 7
  %v2080 = vsub.s32 0, %v2079
  %v2081 = vrot.slane %v2077, %v2080
  %vm2082 = vcmp.ne.s16.totalorder %v2081, 0
  %v2083 = vsel %vm2082, %v2025, %v2026
  %v2084 = vsel %vm2082, %v2027, %v2028
  %v2085 = vsel %vm2082, %v2029, %v2030
  %v2086 = vsel %vm2082, %v2031, %v2032
  %v2087 = vsel %vm2082, %v2033, %v2034
  %v2088 = vsel %vm2082, %v2035, %v2036
  %v2089 = vsel %vm2082, %v2037, %v2038
  %v2090 = vsel %vm2082, %v2039, %v2040
  %v2091 = vsel %vm2082, %v2041, %v2042
  %v2092 = vsel %vm2082, %v2043, %v2044
  %v2093 = vsel %vm2082, %v2045, %v2046
  %v2094 = vsel %vm2082, %v2047, %v2048
  %v2095 = vsel %vm2082, %v2049, %v2050
  %v2096 = vsel %vm2082, %v2051, %v2052
  %v2097 = vsel %vm2082, %v2053, %v2054
  %v2098 = vsel %vm2082, %v2055, %v2056
  %v2099 = vsel %vm2082, %v2057, %v2058
  %v2100 = vsel %vm2082, %v2059, %v2060
  %v2101 = vsel %vm2082, %v2061, %v2062
  %v2102 = vsel %vm2082, %v2063, %v2064
  %v2103 = vsel %vm2082, %v2065, %v2066
  %v2104 = vsel %vm2082, %v2067, %v2068
  %v2105 = vsel %vm2082, %v2069, %v2070
  %v2106 = vsel %vm2082, %v2071, %v2072
  %v2107 = vld [vmem:[%s5] sm:$0xf]
  %v2108 = vld [vmem:[%s5 + $0x4] sm:$0xf]
  %v2109 = vld [vmem:[%s5 + $0x8] sm:$0xf]
  %v2110 = vld [vmem:[%s5 + $0xc] sm:$0xf]
  %v2111 = vld [vmem:[%s5 + $0x10] sm:$0xf]
  %v2112 = vld [vmem:[%s5 + $0x14] sm:$0xf]
  %v2113 = vld [vmem:[%s5 + $0x18] sm:$0xf]
  %v2114 = vld [vmem:[%s5 + $0x1c] sm:$0xf]
  %v2115 = vld [vmem:[%s5 + $0x20] sm:$0xf]
  %v2116 = vld [vmem:[%s5 + $0x24] sm:$0xf]
  %v2117 = vld [vmem:[%s5 + $0x28] sm:$0xf]
  %v2118 = vld [vmem:[%s5 + $0x2c] sm:$0xf]
  %v2119 = vld [vmem:[%s5 + $0x30] sm:$0xf]
  %v2120 = vld [vmem:[%s5 + $0x34] sm:$0xf]
  %v2121 = vld [vmem:[%s5 + $0x38] sm:$0xf]
  %v2122 = vld [vmem:[%s5 + $0x3c] sm:$0xf]
  %v2123 = vld [vmem:[%s5 + $0x40] sm:$0xf]
  %v2124 = vld [vmem:[%s5 + $0x44] sm:$0xf]
  %v2125 = vld [vmem:[%s5 + $0x48] sm:$0xf]
  %v2126 = vld [vmem:[%s5 + $0x4c] sm:$0xf]
  %v2127 = vld [vmem:[%s5 + $0x50] sm:$0xf]
  %v2128 = vld [vmem:[%s5 + $0x54] sm:$0xf]
  %v2129 = vld [vmem:[%s5 + $0x58] sm:$0xf]
  %v2130 = vld [vmem:[%s5 + $0x5c] sm:$0xf]
  %v2131 = vld [vmem:[%s5 + $0x60] sm:$0xf]
  %v2132 = vld [vmem:[%s5 + $0x64] sm:$0xf]
  %v2133 = vld [vmem:[%s5 + $0x68] sm:$0xf]
  %v2134 = vld [vmem:[%s5 + $0x6c] sm:$0xf]
  %v2135 = vld [vmem:[%s5 + $0x70] sm:$0xf]
  %v2136 = vld [vmem:[%s5 + $0x74] sm:$0xf]
  %v2137 = vld [vmem:[%s5 + $0x78] sm:$0xf]
  %v2138 = vld [vmem:[%s5 + $0x7c] sm:$0xf]
  %v2139 = vld [vmem:[%s5 + $0x80] sm:$0xf]
  %v2140 = vld [vmem:[%s5 + $0x84] sm:$0xf]
  %v2141 = vld [vmem:[%s5 + $0x88] sm:$0xf]
  %v2142 = vld [vmem:[%s5 + $0x8c] sm:$0xf]
  %v2143 = vld [vmem:[%s5 + $0x90] sm:$0xf]
  %v2144 = vld [vmem:[%s5 + $0x94] sm:$0xf]
  %v2145 = vld [vmem:[%s5 + $0x98] sm:$0xf]
  %v2146 = vld [vmem:[%s5 + $0x9c] sm:$0xf]
  %v2147 = vld [vmem:[%s5 + $0xa0] sm:$0xf]
  %v2148 = vld [vmem:[%s5 + $0xa4] sm:$0xf]
  %v2149 = vld [vmem:[%s5 + $0xa8] sm:$0xf]
  %v2150 = vld [vmem:[%s5 + $0xac] sm:$0xf]
  %v2151 = vld [vmem:[%s5 + $0xb0] sm:$0xf]
  %v2152 = vld [vmem:[%s5 + $0xb4] sm:$0xf]
  %v2153 = vld [vmem:[%s5 + $0xb8] sm:$0xf]
  %v2154 = vld [vmem:[%s5 + $0xbc] sm:$0xf]
  %v2155 = vld [vmem:[%s5 + $0xc0] sm:$0xf]
  %v2156 = vld [vmem:[%s5 + $0xc4] sm:$0xf]
  %v2157 = vld [vmem:[%s5 + $0xc8] sm:$0xf]
  %v2158 = vld [vmem:[%s5 + $0xcc] sm:$0xf]
  %v2159 = vld [vmem:[%s5 + $0xd0] sm:$0xf]
  %v2160 = vld [vmem:[%s5 + $0xd4] sm:$0xf]
  %v2161 = vld [vmem:[%s5 + $0xd8] sm:$0xf]
  %v2162 = vld [vmem:[%s5 + $0xdc] sm:$0xf]
  %v2163 = vld [vmem:[%s5 + $0xe0] sm:$0xf]
  %v2164 = vld [vmem:[%s5 + $0xe4] sm:$0xf]
  %v2165 = vld [vmem:[%s5 + $0xe8] sm:$0xf]
  %v2166 = vld [vmem:[%s5 + $0xec] sm:$0xf]
  %v2167 = vld [vmem:[%s5 + $0xf0] sm:$0xf]
  %v2168 = vld [vmem:[%s5 + $0xf4] sm:$0xf]
  %v2169 = vld [vmem:[%s5 + $0xf8] sm:$0xf]
  %v2170 = vld [vmem:[%s5 + $0xfc] sm:$0xf]
  %v2171 = vld [vmem:[%s5 + $0x100] sm:$0xf]
  %v2172 = vld [vmem:[%s5 + $0x104] sm:$0xf]
  %v2173 = vld [vmem:[%s5 + $0x108] sm:$0xf]
  %v2174 = vld [vmem:[%s5 + $0x10c] sm:$0xf]
  %v2175 = vld [vmem:[%s5 + $0x110] sm:$0xf]
  %v2176 = vld [vmem:[%s5 + $0x114] sm:$0xf]
  %v2177 = vld [vmem:[%s5 + $0x118] sm:$0xf]
  %v2178 = vld [vmem:[%s5 + $0x11c] sm:$0xf]
  %v2179 = vld [vmem:[%s5 + $0x120] sm:$0xf]
  %v2180 = vld [vmem:[%s5 + $0x124] sm:$0xf]
  %v2181 = vld [vmem:[%s5 + $0x128] sm:$0xf]
  %v2182 = vld [vmem:[%s5 + $0x12c] sm:$0xf]
  %v2183 = vld [vmem:[%s5 + $0x130] sm:$0xf]
  %v2184 = vld [vmem:[%s5 + $0x134] sm:$0xf]
  %v2185 = vld [vmem:[%s5 + $0x138] sm:$0xf]
  %v2186 = vld [vmem:[%s5 + $0x13c] sm:$0xf]
  %v2187 = vld [vmem:[%s5 + $0x140] sm:$0xf]
  %v2188 = vld [vmem:[%s5 + $0x144] sm:$0xf]
  %v2189 = vld [vmem:[%s5 + $0x148] sm:$0xf]
  %v2190 = vld [vmem:[%s5 + $0x14c] sm:$0xf]
  %v2191 = vld [vmem:[%s5 + $0x150] sm:$0xf]
  %v2192 = vld [vmem:[%s5 + $0x154] sm:$0xf]
  %v2193 = vld [vmem:[%s5 + $0x158] sm:$0xf]
  %v2194 = vld [vmem:[%s5 + $0x15c] sm:$0xf]
  %v2195 = vld [vmem:[%s5 + $0x160] sm:$0xf]
  %v2196 = vld [vmem:[%s5 + $0x164] sm:$0xf]
  %v2197 = vld [vmem:[%s5 + $0x168] sm:$0xf]
  %v2198 = vld [vmem:[%s5 + $0x16c] sm:$0xf]
  %v2199 = vld [vmem:[%s5 + $0x170] sm:$0xf]
  %v2200 = vld [vmem:[%s5 + $0x174] sm:$0xf]
  %v2201 = vld [vmem:[%s5 + $0x178] sm:$0xf]
  %v2202 = vld [vmem:[%s5 + $0x17c] sm:$0xf]
  %v2203 = vld [vmem:[%s5 + $0x180] sm:$0xf]
  %v2204 = vld [vmem:[%s5 + $0x184] sm:$0xf]
  %v2205 = vld [vmem:[%s5 + $0x188] sm:$0xf]
  %v2206 = vld [vmem:[%s5 + $0x18c] sm:$0xf]
  %v2207 = vld [vmem:[%s5 + $0x190] sm:$0xf]
  %v2208 = vld [vmem:[%s5 + $0x194] sm:$0xf]
  %v2209 = vld [vmem:[%s5 + $0x198] sm:$0xf]
  %v2210 = vld [vmem:[%s5 + $0x19c] sm:$0xf]
  %v2211 = vld [vmem:[%s5 + $0x1a0] sm:$0xf]
  %v2212 = vld [vmem:[%s5 + $0x1a4] sm:$0xf]
  %v2213 = vld [vmem:[%s5 + $0x1a8] sm:$0xf]
  %v2214 = vld [vmem:[%s5 + $0x1ac] sm:$0xf]
  %v2215 = vld [vmem:[%s5 + $0x1b0] sm:$0xf]
  %v2216 = vld [vmem:[%s5 + $0x1b4] sm:$0xf]
  %v2217 = vld [vmem:[%s5 + $0x1b8] sm:$0xf]
  %v2218 = vld [vmem:[%s5 + $0x1bc] sm:$0xf]
  %v2219 = vld [vmem:[%s5 + $0x1c0] sm:$0xf]
  %v2220 = vld [vmem:[%s5 + $0x1c4] sm:$0xf]
  %v2221 = vld [vmem:[%s5 + $0x1c8] sm:$0xf]
  %v2222 = vld [vmem:[%s5 + $0x1cc] sm:$0xf]
  %v2223 = vld [vmem:[%s5 + $0x1d0] sm:$0xf]
  %v2224 = vld [vmem:[%s5 + $0x1d4] sm:$0xf]
  %v2225 = vld [vmem:[%s5 + $0x1d8] sm:$0xf]
  %v2226 = vld [vmem:[%s5 + $0x1dc] sm:$0xf]
  %v2227 = vld [vmem:[%s5 + $0x1e0] sm:$0xf]
  %v2228 = vld [vmem:[%s5 + $0x1e4] sm:$0xf]
  %v2229 = vld [vmem:[%s5 + $0x1e8] sm:$0xf]
  %v2230 = vld [vmem:[%s5 + $0x1ec] sm:$0xf]
  %v2231 = vld [vmem:[%s5 + $0x1f0] sm:$0xf]
  %v2232 = vld [vmem:[%s5 + $0x1f4] sm:$0xf]
  %v2233 = vld [vmem:[%s5 + $0x1f8] sm:$0xf]
  %v2234 = vld [vmem:[%s5 + $0x1fc] sm:$0xf]
  %v2235 = vld [vmem:[%s5 + $0x200] sm:$0xf]
  %v2236 = vld [vmem:[%s5 + $0x204] sm:$0xf]
  %v2237 = vld [vmem:[%s5 + $0x208] sm:$0xf]
  %v2238 = vld [vmem:[%s5 + $0x20c] sm:$0xf]
  %v2239 = vld [vmem:[%s5 + $0x210] sm:$0xf]
  %v2240 = vld [vmem:[%s5 + $0x214] sm:$0xf]
  %v2241 = vld [vmem:[%s5 + $0x218] sm:$0xf]
  %v2242 = vld [vmem:[%s5 + $0x21c] sm:$0xf]
  %v2243 = vld [vmem:[%s5 + $0x220] sm:$0xf]
  %v2244 = vld [vmem:[%s5 + $0x224] sm:$0xf]
  %v2245 = vld [vmem:[%s5 + $0x228] sm:$0xf]
  %v2246 = vld [vmem:[%s5 + $0x22c] sm:$0xf]
  %v2247 = vld [vmem:[%s5 + $0x230] sm:$0xf]
  %v2248 = vld [vmem:[%s5 + $0x234] sm:$0xf]
  %v2249 = vld [vmem:[%s5 + $0x238] sm:$0xf]
  %v2250 = vld [vmem:[%s5 + $0x23c] sm:$0xf]
  %v2251 = vld [vmem:[%s5 + $0x240] sm:$0xf]
  %v2252 = vld [vmem:[%s5 + $0x244] sm:$0xf]
  %v2253 = vld [vmem:[%s5 + $0x248] sm:$0xf]
  %v2254 = vld [vmem:[%s5 + $0x24c] sm:$0xf]
  %v2255 = vld [vmem:[%s5 + $0x250] sm:$0xf]
  %v2256 = vld [vmem:[%s5 + $0x254] sm:$0xf]
  %v2257 = vld [vmem:[%s5 + $0x258] sm:$0xf]
  %v2258 = vld [vmem:[%s5 + $0x25c] sm:$0xf]
  %v2259 = vld [vmem:[%s5 + $0x260] sm:$0xf]
  %v2260 = vld [vmem:[%s5 + $0x264] sm:$0xf]
  %v2261 = vld [vmem:[%s5 + $0x268] sm:$0xf]
  %v2262 = vld [vmem:[%s5 + $0x26c] sm:$0xf]
  %v2263 = vld [vmem:[%s5 + $0x270] sm:$0xf]
  %v2264 = vld [vmem:[%s5 + $0x274] sm:$0xf]
  %v2265 = vld [vmem:[%s5 + $0x278] sm:$0xf]
  %v2266 = vld [vmem:[%s5 + $0x27c] sm:$0xf]
  %v2267 = vld [vmem:[%s5 + $0x280] sm:$0xf]
  %v2268 = vld [vmem:[%s5 + $0x284] sm:$0xf]
  %v2269 = vld [vmem:[%s5 + $0x288] sm:$0xf]
  %v2270 = vld [vmem:[%s5 + $0x28c] sm:$0xf]
  %v2271 = vld [vmem:[%s5 + $0x290] sm:$0xf]
  %v2272 = vld [vmem:[%s5 + $0x294] sm:$0xf]
  %v2273 = vld [vmem:[%s5 + $0x298] sm:$0xf]
  %v2274 = vld [vmem:[%s5 + $0x29c] sm:$0xf]
  %v2275 = vld [vmem:[%s5 + $0x2a0] sm:$0xf]
  %v2276 = vld [vmem:[%s5 + $0x2a4] sm:$0xf]
  %v2277 = vld [vmem:[%s5 + $0x2a8] sm:$0xf]
  %v2278 = vld [vmem:[%s5 + $0x2ac] sm:$0xf]
  %v2279 = vld [vmem:[%s5 + $0x2b0] sm:$0xf]
  %v2280 = vld [vmem:[%s5 + $0x2b4] sm:$0xf]
  %v2281 = vld [vmem:[%s5 + $0x2b8] sm:$0xf]
  %v2282 = vld [vmem:[%s5 + $0x2bc] sm:$0xf]
  %v2283 = vld [vmem:[%s5 + $0x2c0] sm:$0xf]
  %v2284 = vld [vmem:[%s5 + $0x2c4] sm:$0xf]
  %v2285 = vld [vmem:[%s5 + $0x2c8] sm:$0xf]
  %v2286 = vld [vmem:[%s5 + $0x2cc] sm:$0xf]
  %v2287 = vld [vmem:[%s5 + $0x2d0] sm:$0xf]
  %v2288 = vld [vmem:[%s5 + $0x2d4] sm:$0xf]
  %v2289 = vld [vmem:[%s5 + $0x2d8] sm:$0xf]
  %v2290 = vld [vmem:[%s5 + $0x2dc] sm:$0xf]
  %v2291 = vld [vmem:[%s5 + $0x2e0] sm:$0xf]
  %v2292 = vld [vmem:[%s5 + $0x2e4] sm:$0xf]
  %v2293 = vld [vmem:[%s5 + $0x2e8] sm:$0xf]
  %v2294 = vld [vmem:[%s5 + $0x2ec] sm:$0xf]
  %v2295 = vld [vmem:[%s5 + $0x2f0] sm:$0xf]
  %v2296 = vld [vmem:[%s5 + $0x2f4] sm:$0xf]
  %v2297 = vld [vmem:[%s5 + $0x2f8] sm:$0xf]
  %v2298 = vld [vmem:[%s5 + $0x2fc] sm:$0xf]
  %v2299 = vld [vmem:[%s5 + $0x300] sm:$0xf]
  %v2300 = vld [vmem:[%s5 + $0x304] sm:$0xf]
  %v2301 = vld [vmem:[%s5 + $0x308] sm:$0xf]
  %v2302 = vld [vmem:[%s5 + $0x30c] sm:$0xf]
  %v2303 = vld [vmem:[%s5 + $0x310] sm:$0xf]
  %v2304 = vld [vmem:[%s5 + $0x314] sm:$0xf]
  %v2305 = vld [vmem:[%s5 + $0x318] sm:$0xf]
  %v2306 = vld [vmem:[%s5 + $0x31c] sm:$0xf]
  %v2307 = vld [vmem:[%s5 + $0x320] sm:$0xf]
  %v2308 = vld [vmem:[%s5 + $0x324] sm:$0xf]
  %v2309 = vld [vmem:[%s5 + $0x328] sm:$0xf]
  %v2310 = vld [vmem:[%s5 + $0x32c] sm:$0xf]
  %v2311 = vld [vmem:[%s5 + $0x330] sm:$0xf]
  %v2312 = vld [vmem:[%s5 + $0x334] sm:$0xf]
  %v2313 = vld [vmem:[%s5 + $0x338] sm:$0xf]
  %v2314 = vld [vmem:[%s5 + $0x33c] sm:$0xf]
  %v2315 = vld [vmem:[%s5 + $0x340] sm:$0xf]
  %v2316 = vld [vmem:[%s5 + $0x344] sm:$0xf]
  %v2317 = vld [vmem:[%s5 + $0x348] sm:$0xf]
  %v2318 = vld [vmem:[%s5 + $0x34c] sm:$0xf]
  %v2319 = vld [vmem:[%s5 + $0x350] sm:$0xf]
  %v2320 = vld [vmem:[%s5 + $0x354] sm:$0xf]
  %v2321 = vld [vmem:[%s5 + $0x358] sm:$0xf]
  %v2322 = vld [vmem:[%s5 + $0x35c] sm:$0xf]
  %v2323 = vld [vmem:[%s5 + $0x360] sm:$0xf]
  %v2324 = vld [vmem:[%s5 + $0x364] sm:$0xf]
  %v2325 = vld [vmem:[%s5 + $0x368] sm:$0xf]
  %v2326 = vld [vmem:[%s5 + $0x36c] sm:$0xf]
  %v2327 = vld [vmem:[%s5 + $0x370] sm:$0xf]
  %v2328 = vld [vmem:[%s5 + $0x374] sm:$0xf]
  %v2329 = vld [vmem:[%s5 + $0x378] sm:$0xf]
  %v2330 = vld [vmem:[%s5 + $0x37c] sm:$0xf]
  %v2331 = vld [vmem:[%s5 + $0x380] sm:$0xf]
  %v2332 = vld [vmem:[%s5 + $0x384] sm:$0xf]
  %v2333 = vld [vmem:[%s5 + $0x388] sm:$0xf]
  %v2334 = vld [vmem:[%s5 + $0x38c] sm:$0xf]
  %v2335 = vld [vmem:[%s5 + $0x390] sm:$0xf]
  %v2336 = vld [vmem:[%s5 + $0x394] sm:$0xf]
  %v2337 = vld [vmem:[%s5 + $0x398] sm:$0xf]
  %v2338 = vld [vmem:[%s5 + $0x39c] sm:$0xf]
  %v2339 = vld [vmem:[%s5 + $0x3a0] sm:$0xf]
  %v2340 = vld [vmem:[%s5 + $0x3a4] sm:$0xf]
  %v2341 = vld [vmem:[%s5 + $0x3a8] sm:$0xf]
  %v2342 = vld [vmem:[%s5 + $0x3ac] sm:$0xf]
  %v2343 = vld [vmem:[%s5 + $0x3b0] sm:$0xf]
  %v2344 = vld [vmem:[%s5 + $0x3b4] sm:$0xf]
  %v2345 = vld [vmem:[%s5 + $0x3b8] sm:$0xf]
  %v2346 = vld [vmem:[%s5 + $0x3bc] sm:$0xf]
  %v2347 = vld [vmem:[%s5 + $0x3c0] sm:$0xf]
  %v2348 = vld [vmem:[%s5 + $0x3c4] sm:$0xf]
  %v2349 = vld [vmem:[%s5 + $0x3c8] sm:$0xf]
  %v2350 = vld [vmem:[%s5 + $0x3cc] sm:$0xf]
  %v2351 = vld [vmem:[%s5 + $0x3d0] sm:$0xf]
  %v2352 = vld [vmem:[%s5 + $0x3d4] sm:$0xf]
  %v2353 = vld [vmem:[%s5 + $0x3d8] sm:$0xf]
  %v2354 = vld [vmem:[%s5 + $0x3dc] sm:$0xf]
  %v2355 = vld [vmem:[%s5 + $0x3e0] sm:$0xf]
  %v2356 = vld [vmem:[%s5 + $0x3e4] sm:$0xf]
  %v2357 = vld [vmem:[%s5 + $0x3e8] sm:$0xf]
  %v2358 = vld [vmem:[%s5 + $0x3ec] sm:$0xf]
  %v2359 = vld [vmem:[%s5 + $0x3f0] sm:$0xf]
  %v2360 = vld [vmem:[%s5 + $0x3f4] sm:$0xf]
  %v2361 = vld [vmem:[%s5 + $0x3f8] sm:$0xf]
  %v2362 = vld [vmem:[%s5 + $0x3fc] sm:$0xf]
  %v2363 = vld [vmem:[%s5 + $0x400] sm:$0xf]
  %v2364 = vld [vmem:[%s5 + $0x404] sm:$0xf]
  %v2365 = vld [vmem:[%s5 + $0x408] sm:$0xf]
  %v2366 = vld [vmem:[%s5 + $0x40c] sm:$0xf]
  %v2367 = vld [vmem:[%s5 + $0x410] sm:$0xf]
  %v2368 = vld [vmem:[%s5 + $0x414] sm:$0xf]
  %v2369 = vld [vmem:[%s5 + $0x418] sm:$0xf]
  %v2370 = vld [vmem:[%s5 + $0x41c] sm:$0xf]
  %v2371 = vld [vmem:[%s5 + $0x420] sm:$0xf]
  %v2372 = vld [vmem:[%s5 + $0x424] sm:$0xf]
  %v2373 = vld [vmem:[%s5 + $0x428] sm:$0xf]
  %v2374 = vld [vmem:[%s5 + $0x42c] sm:$0xf]
  %v2375 = vld [vmem:[%s5 + $0x430] sm:$0xf]
  %v2376 = vld [vmem:[%s5 + $0x434] sm:$0xf]
  %v2377 = vld [vmem:[%s5 + $0x438] sm:$0xf]
  %v2378 = vld [vmem:[%s5 + $0x43c] sm:$0xf]
  %v2379 = vld [vmem:[%s5 + $0x440] sm:$0xf]
  %v2380 = vld [vmem:[%s5 + $0x444] sm:$0xf]
  %v2381 = vld [vmem:[%s5 + $0x448] sm:$0xf]
  %v2382 = vld [vmem:[%s5 + $0x44c] sm:$0xf]
  %v2383 = vld [vmem:[%s5 + $0x450] sm:$0xf]
  %v2384 = vld [vmem:[%s5 + $0x454] sm:$0xf]
  %v2385 = vld [vmem:[%s5 + $0x458] sm:$0xf]
  %v2386 = vld [vmem:[%s5 + $0x45c] sm:$0xf]
  %v2387 = vld [vmem:[%s5 + $0x460] sm:$0xf]
  %v2388 = vld [vmem:[%s5 + $0x464] sm:$0xf]
  %v2389 = vld [vmem:[%s5 + $0x468] sm:$0xf]
  %v2390 = vld [vmem:[%s5 + $0x46c] sm:$0xf]
  %v2391 = vld [vmem:[%s5 + $0x470] sm:$0xf]
  %v2392 = vld [vmem:[%s5 + $0x474] sm:$0xf]
  %v2393 = vld [vmem:[%s5 + $0x478] sm:$0xf]
  %v2394 = vld [vmem:[%s5 + $0x47c] sm:$0xf]
  %v2395 = vld [vmem:[%s5 + $0x480] sm:$0xf]
  %v2396 = vld [vmem:[%s5 + $0x484] sm:$0xf]
  %v2397 = vld [vmem:[%s5 + $0x488] sm:$0xf]
  %v2398 = vld [vmem:[%s5 + $0x48c] sm:$0xf]
  %v2399 = vld [vmem:[%s5 + $0x490] sm:$0xf]
  %v2400 = vld [vmem:[%s5 + $0x494] sm:$0xf]
  %v2401 = vld [vmem:[%s5 + $0x498] sm:$0xf]
  %v2402 = vld [vmem:[%s5 + $0x49c] sm:$0xf]
  %v2403 = vld [vmem:[%s5 + $0x4a0] sm:$0xf]
  %v2404 = vld [vmem:[%s5 + $0x4a4] sm:$0xf]
  %v2405 = vld [vmem:[%s5 + $0x4a8] sm:$0xf]
  %v2406 = vld [vmem:[%s5 + $0x4ac] sm:$0xf]
  %v2407 = vld [vmem:[%s5 + $0x4b0] sm:$0xf]
  %v2408 = vld [vmem:[%s5 + $0x4b4] sm:$0xf]
  %v2409 = vld [vmem:[%s5 + $0x4b8] sm:$0xf]
  %v2410 = vld [vmem:[%s5 + $0x4bc] sm:$0xf]
  %v2411 = vld [vmem:[%s5 + $0x4c0] sm:$0xf]
  %v2412 = vld [vmem:[%s5 + $0x4c4] sm:$0xf]
  %v2413 = vld [vmem:[%s5 + $0x4c8] sm:$0xf]
  %v2414 = vld [vmem:[%s5 + $0x4cc] sm:$0xf]
  %v2415 = vld [vmem:[%s5 + $0x4d0] sm:$0xf]
  %v2416 = vld [vmem:[%s5 + $0x4d4] sm:$0xf]
  %v2417 = vld [vmem:[%s5 + $0x4d8] sm:$0xf]
  %v2418 = vld [vmem:[%s5 + $0x4dc] sm:$0xf]
  %v2419 = vld [vmem:[%s5 + $0x4e0] sm:$0xf]
  %v2420 = vld [vmem:[%s5 + $0x4e4] sm:$0xf]
  %v2421 = vld [vmem:[%s5 + $0x4e8] sm:$0xf]
  %v2422 = vld [vmem:[%s5 + $0x4ec] sm:$0xf]
  %v2423 = vld [vmem:[%s5 + $0x4f0] sm:$0xf]
  %v2424 = vld [vmem:[%s5 + $0x4f4] sm:$0xf]
  %v2425 = vld [vmem:[%s5 + $0x4f8] sm:$0xf]
  %v2426 = vld [vmem:[%s5 + $0x4fc] sm:$0xf]
  %v2427 = vld [vmem:[%s5 + $0x500] sm:$0xf]
  %v2428 = vld [vmem:[%s5 + $0x504] sm:$0xf]
  %v2429 = vld [vmem:[%s5 + $0x508] sm:$0xf]
  %v2430 = vld [vmem:[%s5 + $0x50c] sm:$0xf]
  %v2431 = vld [vmem:[%s5 + $0x510] sm:$0xf]
  %v2432 = vld [vmem:[%s5 + $0x514] sm:$0xf]
  %v2433 = vld [vmem:[%s5 + $0x518] sm:$0xf]
  %v2434 = vld [vmem:[%s5 + $0x51c] sm:$0xf]
  %v2435 = vld [vmem:[%s5 + $0x520] sm:$0xf]
  %v2436 = vld [vmem:[%s5 + $0x524] sm:$0xf]
  %v2437 = vld [vmem:[%s5 + $0x528] sm:$0xf]
  %v2438 = vld [vmem:[%s5 + $0x52c] sm:$0xf]
  %v2439 = vld [vmem:[%s5 + $0x530] sm:$0xf]
  %v2440 = vld [vmem:[%s5 + $0x534] sm:$0xf]
  %v2441 = vld [vmem:[%s5 + $0x538] sm:$0xf]
  %v2442 = vld [vmem:[%s5 + $0x53c] sm:$0xf]
  %v2443 = vld [vmem:[%s5 + $0x540] sm:$0xf]
  %v2444 = vld [vmem:[%s5 + $0x544] sm:$0xf]
  %v2445 = vld [vmem:[%s5 + $0x548] sm:$0xf]
  %v2446 = vld [vmem:[%s5 + $0x54c] sm:$0xf]
  %v2447 = vld [vmem:[%s5 + $0x550] sm:$0xf]
  %v2448 = vld [vmem:[%s5 + $0x554] sm:$0xf]
  %v2449 = vld [vmem:[%s5 + $0x558] sm:$0xf]
  %v2450 = vld [vmem:[%s5 + $0x55c] sm:$0xf]
  %v2451 = vld [vmem:[%s5 + $0x560] sm:$0xf]
  %v2452 = vld [vmem:[%s5 + $0x564] sm:$0xf]
  %v2453 = vld [vmem:[%s5 + $0x568] sm:$0xf]
  %v2454 = vld [vmem:[%s5 + $0x56c] sm:$0xf]
  %v2455 = vld [vmem:[%s5 + $0x570] sm:$0xf]
  %v2456 = vld [vmem:[%s5 + $0x574] sm:$0xf]
  %v2457 = vld [vmem:[%s5 + $0x578] sm:$0xf]
  %v2458 = vld [vmem:[%s5 + $0x57c] sm:$0xf]
  %v2459 = vld [vmem:[%s5 + $0x580] sm:$0xf]
  %v2460 = vld [vmem:[%s5 + $0x584] sm:$0xf]
  %v2461 = vld [vmem:[%s5 + $0x588] sm:$0xf]
  %v2462 = vld [vmem:[%s5 + $0x58c] sm:$0xf]
  %v2463 = vld [vmem:[%s5 + $0x590] sm:$0xf]
  %v2464 = vld [vmem:[%s5 + $0x594] sm:$0xf]
  %v2465 = vld [vmem:[%s5 + $0x598] sm:$0xf]
  %v2466 = vld [vmem:[%s5 + $0x59c] sm:$0xf]
  %v2467 = vld [vmem:[%s5 + $0x5a0] sm:$0xf]
  %v2468 = vld [vmem:[%s5 + $0x5a4] sm:$0xf]
  %v2469 = vld [vmem:[%s5 + $0x5a8] sm:$0xf]
  %v2470 = vld [vmem:[%s5 + $0x5ac] sm:$0xf]
  %v2471 = vld [vmem:[%s5 + $0x5b0] sm:$0xf]
  %v2472 = vld [vmem:[%s5 + $0x5b4] sm:$0xf]
  %v2473 = vld [vmem:[%s5 + $0x5b8] sm:$0xf]
  %v2474 = vld [vmem:[%s5 + $0x5bc] sm:$0xf]
  %v2475 = vld [vmem:[%s5 + $0x5c0] sm:$0xf]
  %v2476 = vld [vmem:[%s5 + $0x5c4] sm:$0xf]
  %v2477 = vld [vmem:[%s5 + $0x5c8] sm:$0xf]
  %v2478 = vld [vmem:[%s5 + $0x5cc] sm:$0xf]
  %v2479 = vld [vmem:[%s5 + $0x5d0] sm:$0xf]
  %v2480 = vld [vmem:[%s5 + $0x5d4] sm:$0xf]
  %v2481 = vld [vmem:[%s5 + $0x5d8] sm:$0xf]
  %v2482 = vld [vmem:[%s5 + $0x5dc] sm:$0xf]
  %v2483 = vld [vmem:[%s5 + $0x5e0] sm:$0xf]
  %v2484 = vld [vmem:[%s5 + $0x5e4] sm:$0xf]
  %v2485 = vld [vmem:[%s5 + $0x5e8] sm:$0xf]
  %v2486 = vld [vmem:[%s5 + $0x5ec] sm:$0xf]
  %v2487 = vld [vmem:[%s5 + $0x5f0] sm:$0xf]
  %v2488 = vld [vmem:[%s5 + $0x5f4] sm:$0xf]
  %v2489 = vld [vmem:[%s5 + $0x5f8] sm:$0xf]
  %v2490 = vld [vmem:[%s5 + $0x5fc] sm:$0xf]
  %v2491 = vld [vmem:[%s6] sm:$0x1]
  %v2493 = vlaneseq
  %v2494 = vshrl.u32 %v2493, 7
  %v2495 = vsub.s32 0, %v2494
  %v2496 = vrot.slane %v2491, %v2495
  %v2882 = vunpack.c.l.b16 %v2107
  %v2883 = vunpack.c.l.b16 %v2108
  %v2884 = vunpack.c.l.b16 %v2109
  %v2885 = vunpack.c.l.b16 %v2110
  %v2886 = vunpack.c.l.b16 %v2111
  %v2887 = vunpack.c.l.b16 %v2112
  %v2888 = vunpack.c.l.b16 %v2113
  %v2889 = vunpack.c.l.b16 %v2114
  %v2890 = vunpack.c.l.b16 %v2115
  %v2891 = vunpack.c.l.b16 %v2116
  %v2892 = vunpack.c.l.b16 %v2117
  %v2893 = vunpack.c.l.b16 %v2118
  %v2894 = vunpack.c.l.b16 %v2119
  %v2895 = vunpack.c.l.b16 %v2120
  %v2896 = vunpack.c.l.b16 %v2121
  %v2897 = vunpack.c.l.b16 %v2122
  %v2898 = vunpack.c.l.b16 %v2123
  %v2899 = vunpack.c.l.b16 %v2124
  %v2900 = vunpack.c.l.b16 %v2125
  %v2901 = vunpack.c.l.b16 %v2126
  %v2902 = vunpack.c.l.b16 %v2127
  %v2903 = vunpack.c.l.b16 %v2128
  %v2904 = vunpack.c.l.b16 %v2129
  %v2905 = vunpack.c.l.b16 %v2130
  %v2906 = vunpack.c.l.b16 %v2131
  %v2907 = vunpack.c.l.b16 %v2132
  %v2908 = vunpack.c.l.b16 %v2133
  %v2909 = vunpack.c.l.b16 %v2134
  %v2910 = vunpack.c.l.b16 %v2135
  %v2911 = vunpack.c.l.b16 %v2136
  %v2912 = vunpack.c.l.b16 %v2137
  %v2913 = vunpack.c.l.b16 %v2138
  %v2914 = vunpack.c.l.b16 %v2139
  %v2915 = vunpack.c.l.b16 %v2140
  %v2916 = vunpack.c.l.b16 %v2141
  %v2917 = vunpack.c.l.b16 %v2142
  %v2918 = vunpack.c.l.b16 %v2143
  %v2919 = vunpack.c.l.b16 %v2144
  %v2920 = vunpack.c.l.b16 %v2145
  %v2921 = vunpack.c.l.b16 %v2146
  %v2922 = vunpack.c.l.b16 %v2147
  %v2923 = vunpack.c.l.b16 %v2148
  %v2924 = vunpack.c.l.b16 %v2149
  %v2925 = vunpack.c.l.b16 %v2150
  %v2926 = vunpack.c.l.b16 %v2151
  %v2927 = vunpack.c.l.b16 %v2152
  %v2928 = vunpack.c.l.b16 %v2153
  %v2929 = vunpack.c.l.b16 %v2154
  %v2930 = vunpack.c.l.b16 %v2155
  %v2931 = vunpack.c.l.b16 %v2156
  %v2932 = vunpack.c.l.b16 %v2157
  %v2933 = vunpack.c.l.b16 %v2158
  %v2934 = vunpack.c.l.b16 %v2159
  %v2935 = vunpack.c.l.b16 %v2160
  %v2936 = vunpack.c.l.b16 %v2161
  %v2937 = vunpack.c.l.b16 %v2162
  %v2938 = vunpack.c.l.b16 %v2163
  %v2939 = vunpack.c.l.b16 %v2164
  %v2940 = vunpack.c.l.b16 %v2165
  %v2941 = vunpack.c.l.b16 %v2166
  %v2942 = vunpack.c.l.b16 %v2167
  %v2943 = vunpack.c.l.b16 %v2168
  %v2944 = vunpack.c.l.b16 %v2169
  %v2945 = vunpack.c.l.b16 %v2170
  %v2946 = vunpack.c.l.b16 %v2171
  %v2947 = vunpack.c.l.b16 %v2172
  %v2948 = vunpack.c.l.b16 %v2173
  %v2949 = vunpack.c.l.b16 %v2174
  %v2950 = vunpack.c.l.b16 %v2175
  %v2951 = vunpack.c.l.b16 %v2176
  %v2952 = vunpack.c.l.b16 %v2177
  %v2953 = vunpack.c.l.b16 %v2178
  %v2954 = vunpack.c.l.b16 %v2179
  %v2955 = vunpack.c.l.b16 %v2180
  %v2956 = vunpack.c.l.b16 %v2181
  %v2957 = vunpack.c.l.b16 %v2182
  %v2958 = vunpack.c.l.b16 %v2183
  %v2959 = vunpack.c.l.b16 %v2184
  %v2960 = vunpack.c.l.b16 %v2185
  %v2961 = vunpack.c.l.b16 %v2186
  %v2962 = vunpack.c.l.b16 %v2187
  %v2963 = vunpack.c.l.b16 %v2188
  %v2964 = vunpack.c.l.b16 %v2189
  %v2965 = vunpack.c.l.b16 %v2190
  %v2966 = vunpack.c.l.b16 %v2191
  %v2967 = vunpack.c.l.b16 %v2192
  %v2968 = vunpack.c.l.b16 %v2193
  %v2969 = vunpack.c.l.b16 %v2194
  %v2970 = vunpack.c.l.b16 %v2195
  %v2971 = vunpack.c.l.b16 %v2196
  %v2972 = vunpack.c.l.b16 %v2197
  %v2973 = vunpack.c.l.b16 %v2198
  %v2974 = vunpack.c.l.b16 %v2199
  %v2975 = vunpack.c.l.b16 %v2200
  %v2976 = vunpack.c.l.b16 %v2201
  %v2977 = vunpack.c.l.b16 %v2202
  %v2978 = vunpack.c.l.b16 %v2203
  %v2979 = vunpack.c.l.b16 %v2204
  %v2980 = vunpack.c.l.b16 %v2205
  %v2981 = vunpack.c.l.b16 %v2206
  %v2982 = vunpack.c.l.b16 %v2207
  %v2983 = vunpack.c.l.b16 %v2208
  %v2984 = vunpack.c.l.b16 %v2209
  %v2985 = vunpack.c.l.b16 %v2210
  %v2986 = vunpack.c.l.b16 %v2211
  %v2987 = vunpack.c.l.b16 %v2212
  %v2988 = vunpack.c.l.b16 %v2213
  %v2989 = vunpack.c.l.b16 %v2214
  %v2990 = vunpack.c.l.b16 %v2215
  %v2991 = vunpack.c.l.b16 %v2216
  %v2992 = vunpack.c.l.b16 %v2217
  %v2993 = vunpack.c.l.b16 %v2218
  %v2994 = vunpack.c.l.b16 %v2219
  %v2995 = vunpack.c.l.b16 %v2220
  %v2996 = vunpack.c.l.b16 %v2221
  %v2997 = vunpack.c.l.b16 %v2222
  %v2998 = vunpack.c.l.b16 %v2223
  %v2999 = vunpack.c.l.b16 %v2224
  %v3000 = vunpack.c.l.b16 %v2225
  %v3001 = vunpack.c.l.b16 %v2226
  %v3002 = vunpack.c.l.b16 %v2227
  %v3003 = vunpack.c.l.b16 %v2228
  %v3004 = vunpack.c.l.b16 %v2229
  %v3005 = vunpack.c.l.b16 %v2230
  %v3006 = vunpack.c.l.b16 %v2231
  %v3007 = vunpack.c.l.b16 %v2232
  %v3008 = vunpack.c.l.b16 %v2233
  %v3009 = vunpack.c.l.b16 %v2234
  %v3010 = vunpack.c.l.b16 %v2235
  %v3011 = vunpack.c.l.b16 %v2236
  %v3012 = vunpack.c.l.b16 %v2237
  %v3013 = vunpack.c.l.b16 %v2238
  %v3014 = vunpack.c.l.b16 %v2239
  %v3015 = vunpack.c.l.b16 %v2240
  %v3016 = vunpack.c.l.b16 %v2241
  %v3017 = vunpack.c.l.b16 %v2242
  %v3018 = vunpack.c.l.b16 %v2243
  %v3019 = vunpack.c.l.b16 %v2244
  %v3020 = vunpack.c.l.b16 %v2245
  %v3021 = vunpack.c.l.b16 %v2246
  %v3022 = vunpack.c.l.b16 %v2247
  %v3023 = vunpack.c.l.b16 %v2248
  %v3024 = vunpack.c.l.b16 %v2249
  %v3025 = vunpack.c.l.b16 %v2250
  %v3026 = vunpack.c.l.b16 %v2251
  %v3027 = vunpack.c.l.b16 %v2252
  %v3028 = vunpack.c.l.b16 %v2253
  %v3029 = vunpack.c.l.b16 %v2254
  %v3030 = vunpack.c.l.b16 %v2255
  %v3031 = vunpack.c.l.b16 %v2256
  %v3032 = vunpack.c.l.b16 %v2257
  %v3033 = vunpack.c.l.b16 %v2258
  %v3034 = vunpack.c.l.b16 %v2259
  %v3035 = vunpack.c.l.b16 %v2260
  %v3036 = vunpack.c.l.b16 %v2261
  %v3037 = vunpack.c.l.b16 %v2262
  %v3038 = vunpack.c.l.b16 %v2263
  %v3039 = vunpack.c.l.b16 %v2264
  %v3040 = vunpack.c.l.b16 %v2265
  %v3041 = vunpack.c.l.b16 %v2266
  %v3042 = vunpack.c.l.b16 %v2267
  %v3043 = vunpack.c.l.b16 %v2268
  %v3044 = vunpack.c.l.b16 %v2269
  %v3045 = vunpack.c.l.b16 %v2270
  %v3046 = vunpack.c.l.b16 %v2271
  %v3047 = vunpack.c.l.b16 %v2272
  %v3048 = vunpack.c.l.b16 %v2273
  %v3049 = vunpack.c.l.b16 %v2274
  %v3050 = vunpack.c.l.b16 %v2275
  %v3051 = vunpack.c.l.b16 %v2276
  %v3052 = vunpack.c.l.b16 %v2277
  %v3053 = vunpack.c.l.b16 %v2278
  %v3054 = vunpack.c.l.b16 %v2279
  %v3055 = vunpack.c.l.b16 %v2280
  %v3056 = vunpack.c.l.b16 %v2281
  %v3057 = vunpack.c.l.b16 %v2282
  %v3058 = vunpack.c.l.b16 %v2283
  %v3059 = vunpack.c.l.b16 %v2284
  %v3060 = vunpack.c.l.b16 %v2285
  %v3061 = vunpack.c.l.b16 %v2286
  %v3062 = vunpack.c.l.b16 %v2287
  %v3063 = vunpack.c.l.b16 %v2288
  %v3064 = vunpack.c.l.b16 %v2289
  %v3065 = vunpack.c.l.b16 %v2290
  %v3066 = vunpack.c.l.b16 %v2291
  %v3067 = vunpack.c.l.b16 %v2292
  %v3068 = vunpack.c.l.b16 %v2293
  %v3069 = vunpack.c.l.b16 %v2294
  %v3070 = vunpack.c.l.b16 %v2295
  %v3071 = vunpack.c.l.b16 %v2296
  %v3072 = vunpack.c.l.b16 %v2297
  %v3073 = vunpack.c.l.b16 %v2298
  %v3074 = vunpack.c.l.b16 %v2299
  %v3075 = vunpack.c.l.b16 %v2300
  %v3076 = vunpack.c.l.b16 %v2301
  %v3077 = vunpack.c.l.b16 %v2302
  %v3078 = vunpack.c.l.b16 %v2303
  %v3079 = vunpack.c.l.b16 %v2304
  %v3080 = vunpack.c.l.b16 %v2305
  %v3081 = vunpack.c.l.b16 %v2306
  %v3082 = vunpack.c.l.b16 %v2307
  %v3083 = vunpack.c.l.b16 %v2308
  %v3084 = vunpack.c.l.b16 %v2309
  %v3085 = vunpack.c.l.b16 %v2310
  %v3086 = vunpack.c.l.b16 %v2311
  %v3087 = vunpack.c.l.b16 %v2312
  %v3088 = vunpack.c.l.b16 %v2313
  %v3089 = vunpack.c.l.b16 %v2314
  %v3090 = vunpack.c.l.b16 %v2315
  %v3091 = vunpack.c.l.b16 %v2316
  %v3092 = vunpack.c.l.b16 %v2317
  %v3093 = vunpack.c.l.b16 %v2318
  %v3094 = vunpack.c.l.b16 %v2319
  %v3095 = vunpack.c.l.b16 %v2320
  %v3096 = vunpack.c.l.b16 %v2321
  %v3097 = vunpack.c.l.b16 %v2322
  %v3098 = vunpack.c.l.b16 %v2323
  %v3099 = vunpack.c.l.b16 %v2324
  %v3100 = vunpack.c.l.b16 %v2325
  %v3101 = vunpack.c.l.b16 %v2326
  %v3102 = vunpack.c.l.b16 %v2327
  %v3103 = vunpack.c.l.b16 %v2328
  %v3104 = vunpack.c.l.b16 %v2329
  %v3105 = vunpack.c.l.b16 %v2330
  %v3106 = vunpack.c.l.b16 %v2331
  %v3107 = vunpack.c.l.b16 %v2332
  %v3108 = vunpack.c.l.b16 %v2333
  %v3109 = vunpack.c.l.b16 %v2334
  %v3110 = vunpack.c.l.b16 %v2335
  %v3111 = vunpack.c.l.b16 %v2336
  %v3112 = vunpack.c.l.b16 %v2337
  %v3113 = vunpack.c.l.b16 %v2338
  %v3114 = vunpack.c.l.b16 %v2339
  %v3115 = vunpack.c.l.b16 %v2340
  %v3116 = vunpack.c.l.b16 %v2341
  %v3117 = vunpack.c.l.b16 %v2342
  %v3118 = vunpack.c.l.b16 %v2343
  %v3119 = vunpack.c.l.b16 %v2344
  %v3120 = vunpack.c.l.b16 %v2345
  %v3121 = vunpack.c.l.b16 %v2346
  %v3122 = vunpack.c.l.b16 %v2347
  %v3123 = vunpack.c.l.b16 %v2348
  %v3124 = vunpack.c.l.b16 %v2349
  %v3125 = vunpack.c.l.b16 %v2350
  %v3126 = vunpack.c.l.b16 %v2351
  %v3127 = vunpack.c.l.b16 %v2352
  %v3128 = vunpack.c.l.b16 %v2353
  %v3129 = vunpack.c.l.b16 %v2354
  %v3130 = vunpack.c.l.b16 %v2355
  %v3131 = vunpack.c.l.b16 %v2356
  %v3132 = vunpack.c.l.b16 %v2357
  %v3133 = vunpack.c.l.b16 %v2358
  %v3134 = vunpack.c.l.b16 %v2359
  %v3135 = vunpack.c.l.b16 %v2360
  %v3136 = vunpack.c.l.b16 %v2361
  %v3137 = vunpack.c.l.b16 %v2362
  %v3138 = vunpack.c.l.b16 %v2363
  %v3139 = vunpack.c.l.b16 %v2364
  %v3140 = vunpack.c.l.b16 %v2365
  %v3141 = vunpack.c.l.b16 %v2366
  %v3142 = vunpack.c.l.b16 %v2367
  %v3143 = vunpack.c.l.b16 %v2368
  %v3144 = vunpack.c.l.b16 %v2369
  %v3145 = vunpack.c.l.b16 %v2370
  %v3146 = vunpack.c.l.b16 %v2371
  %v3147 = vunpack.c.l.b16 %v2372
  %v3148 = vunpack.c.l.b16 %v2373
  %v3149 = vunpack.c.l.b16 %v2374
  %v3150 = vunpack.c.l.b16 %v2375
  %v3151 = vunpack.c.l.b16 %v2376
  %v3152 = vunpack.c.l.b16 %v2377
  %v3153 = vunpack.c.l.b16 %v2378
  %v3154 = vunpack.c.l.b16 %v2379
  %v3155 = vunpack.c.l.b16 %v2380
  %v3156 = vunpack.c.l.b16 %v2381
  %v3157 = vunpack.c.l.b16 %v2382
  %v3158 = vunpack.c.l.b16 %v2383
  %v3159 = vunpack.c.l.b16 %v2384
  %v3160 = vunpack.c.l.b16 %v2385
  %v3161 = vunpack.c.l.b16 %v2386
  %v3162 = vunpack.c.l.b16 %v2387
  %v3163 = vunpack.c.l.b16 %v2388
  %v3164 = vunpack.c.l.b16 %v2389
  %v3165 = vunpack.c.l.b16 %v2390
  %v3166 = vunpack.c.l.b16 %v2391
  %v3167 = vunpack.c.l.b16 %v2392
  %v3168 = vunpack.c.l.b16 %v2393
  %v3169 = vunpack.c.l.b16 %v2394
  %v3170 = vunpack.c.l.b16 %v2395
  %v3171 = vunpack.c.l.b16 %v2396
  %v3172 = vunpack.c.l.b16 %v2397
  %v3173 = vunpack.c.l.b16 %v2398
  %v3174 = vunpack.c.l.b16 %v2399
  %v3175 = vunpack.c.l.b16 %v2400
  %v3176 = vunpack.c.l.b16 %v2401
  %v3177 = vunpack.c.l.b16 %v2402
  %v3178 = vunpack.c.l.b16 %v2403
  %v3179 = vunpack.c.l.b16 %v2404
  %v3180 = vunpack.c.l.b16 %v2405
  %v3181 = vunpack.c.l.b16 %v2406
  %v3182 = vunpack.c.l.b16 %v2407
  %v3183 = vunpack.c.l.b16 %v2408
  %v3184 = vunpack.c.l.b16 %v2409
  %v3185 = vunpack.c.l.b16 %v2410
  %v3186 = vunpack.c.l.b16 %v2411
  %v3187 = vunpack.c.l.b16 %v2412
  %v3188 = vunpack.c.l.b16 %v2413
  %v3189 = vunpack.c.l.b16 %v2414
  %v3190 = vunpack.c.l.b16 %v2415
  %v3191 = vunpack.c.l.b16 %v2416
  %v3192 = vunpack.c.l.b16 %v2417
  %v3193 = vunpack.c.l.b16 %v2418
  %v3194 = vunpack.c.l.b16 %v2419
  %v3195 = vunpack.c.l.b16 %v2420
  %v3196 = vunpack.c.l.b16 %v2421
  %v3197 = vunpack.c.l.b16 %v2422
  %v3198 = vunpack.c.l.b16 %v2423
  %v3199 = vunpack.c.l.b16 %v2424
  %v3200 = vunpack.c.l.b16 %v2425
  %v3201 = vunpack.c.l.b16 %v2426
  %v3202 = vunpack.c.l.b16 %v2427
  %v3203 = vunpack.c.l.b16 %v2428
  %v3204 = vunpack.c.l.b16 %v2429
  %v3205 = vunpack.c.l.b16 %v2430
  %v3206 = vunpack.c.l.b16 %v2431
  %v3207 = vunpack.c.l.b16 %v2432
  %v3208 = vunpack.c.l.b16 %v2433
  %v3209 = vunpack.c.l.b16 %v2434
  %v3210 = vunpack.c.l.b16 %v2435
  %v3211 = vunpack.c.l.b16 %v2436
  %v3212 = vunpack.c.l.b16 %v2437
  %v3213 = vunpack.c.l.b16 %v2438
  %v3214 = vunpack.c.l.b16 %v2439
  %v3215 = vunpack.c.l.b16 %v2440
  %v3216 = vunpack.c.l.b16 %v2441
  %v3217 = vunpack.c.l.b16 %v2442
  %v3218 = vunpack.c.l.b16 %v2443
  %v3219 = vunpack.c.l.b16 %v2444
  %v3220 = vunpack.c.l.b16 %v2445
  %v3221 = vunpack.c.l.b16 %v2446
  %v3222 = vunpack.c.l.b16 %v2447
  %v3223 = vunpack.c.l.b16 %v2448
  %v3224 = vunpack.c.l.b16 %v2449
  %v3225 = vunpack.c.l.b16 %v2450
  %v3226 = vunpack.c.l.b16 %v2451
  %v3227 = vunpack.c.l.b16 %v2452
  %v3228 = vunpack.c.l.b16 %v2453
  %v3229 = vunpack.c.l.b16 %v2454
  %v3230 = vunpack.c.l.b16 %v2455
  %v3231 = vunpack.c.l.b16 %v2456
  %v3232 = vunpack.c.l.b16 %v2457
  %v3233 = vunpack.c.l.b16 %v2458
  %v3234 = vunpack.c.l.b16 %v2459
  %v3235 = vunpack.c.l.b16 %v2460
  %v3236 = vunpack.c.l.b16 %v2461
  %v3237 = vunpack.c.l.b16 %v2462
  %v3238 = vunpack.c.l.b16 %v2463
  %v3239 = vunpack.c.l.b16 %v2464
  %v3240 = vunpack.c.l.b16 %v2465
  %v3241 = vunpack.c.l.b16 %v2466
  %v3242 = vunpack.c.l.b16 %v2467
  %v3243 = vunpack.c.l.b16 %v2468
  %v3244 = vunpack.c.l.b16 %v2469
  %v3245 = vunpack.c.l.b16 %v2470
  %v3246 = vunpack.c.l.b16 %v2471
  %v3247 = vunpack.c.l.b16 %v2472
  %v3248 = vunpack.c.l.b16 %v2473
  %v3249 = vunpack.c.l.b16 %v2474
  %v3250 = vunpack.c.l.b16 %v2475
  %v3251 = vunpack.c.l.b16 %v2476
  %v3252 = vunpack.c.l.b16 %v2477
  %v3253 = vunpack.c.l.b16 %v2478
  %v3254 = vunpack.c.l.b16 %v2479
  %v3255 = vunpack.c.l.b16 %v2480
  %v3256 = vunpack.c.l.b16 %v2481
  %v3257 = vunpack.c.l.b16 %v2482
  %v3258 = vunpack.c.l.b16 %v2483
  %v3259 = vunpack.c.l.b16 %v2484
  %v3260 = vunpack.c.l.b16 %v2485
  %v3261 = vunpack.c.l.b16 %v2486
  %v3262 = vunpack.c.l.b16 %v2487
  %v3263 = vunpack.c.l.b16 %v2488
  %v3264 = vunpack.c.l.b16 %v2489
  %v3265 = vunpack.c.l.b16 %v2490
  %v3266 = vpack.c.b16 %v2883, %v2882
  %v3267 = vpack.c.b16 %v2885, %v2884
  %v3268 = vpack.c.b16 %v2887, %v2886
  %v3269 = vpack.c.b16 %v2889, %v2888
  %v3270 = vpack.c.b16 %v2891, %v2890
  %v3271 = vpack.c.b16 %v2893, %v2892
  %v3272 = vpack.c.b16 %v2895, %v2894
  %v3273 = vpack.c.b16 %v2897, %v2896
  %v3274 = vpack.c.b16 %v2899, %v2898
  %v3275 = vpack.c.b16 %v2901, %v2900
  %v3276 = vpack.c.b16 %v2903, %v2902
  %v3277 = vpack.c.b16 %v2905, %v2904
  %v3278 = vpack.c.b16 %v2907, %v2906
  %v3279 = vpack.c.b16 %v2909, %v2908
  %v3280 = vpack.c.b16 %v2911, %v2910
  %v3281 = vpack.c.b16 %v2913, %v2912
  %v3282 = vpack.c.b16 %v2915, %v2914
  %v3283 = vpack.c.b16 %v2917, %v2916
  %v3284 = vpack.c.b16 %v2919, %v2918
  %v3285 = vpack.c.b16 %v2921, %v2920
  %v3286 = vpack.c.b16 %v2923, %v2922
  %v3287 = vpack.c.b16 %v2925, %v2924
  %v3288 = vpack.c.b16 %v2927, %v2926
  %v3289 = vpack.c.b16 %v2929, %v2928
  %v3290 = vpack.c.b16 %v2931, %v2930
  %v3291 = vpack.c.b16 %v2933, %v2932
  %v3292 = vpack.c.b16 %v2935, %v2934
  %v3293 = vpack.c.b16 %v2937, %v2936
  %v3294 = vpack.c.b16 %v2939, %v2938
  %v3295 = vpack.c.b16 %v2941, %v2940
  %v3296 = vpack.c.b16 %v2943, %v2942
  %v3297 = vpack.c.b16 %v2945, %v2944
  %v3298 = vpack.c.b16 %v2947, %v2946
  %v3299 = vpack.c.b16 %v2949, %v2948
  %v3300 = vpack.c.b16 %v2951, %v2950
  %v3301 = vpack.c.b16 %v2953, %v2952
  %v3302 = vpack.c.b16 %v2955, %v2954
  %v3303 = vpack.c.b16 %v2957, %v2956
  %v3304 = vpack.c.b16 %v2959, %v2958
  %v3305 = vpack.c.b16 %v2961, %v2960
  %v3306 = vpack.c.b16 %v2963, %v2962
  %v3307 = vpack.c.b16 %v2965, %v2964
  %v3308 = vpack.c.b16 %v2967, %v2966
  %v3309 = vpack.c.b16 %v2969, %v2968
  %v3310 = vpack.c.b16 %v2971, %v2970
  %v3311 = vpack.c.b16 %v2973, %v2972
  %v3312 = vpack.c.b16 %v2975, %v2974
  %v3313 = vpack.c.b16 %v2977, %v2976
  %v3314 = vpack.c.b16 %v2979, %v2978
  %v3315 = vpack.c.b16 %v2981, %v2980
  %v3316 = vpack.c.b16 %v2983, %v2982
  %v3317 = vpack.c.b16 %v2985, %v2984
  %v3318 = vpack.c.b16 %v2987, %v2986
  %v3319 = vpack.c.b16 %v2989, %v2988
  %v3320 = vpack.c.b16 %v2991, %v2990
  %v3321 = vpack.c.b16 %v2993, %v2992
  %v3322 = vpack.c.b16 %v2995, %v2994
  %v3323 = vpack.c.b16 %v2997, %v2996
  %v3324 = vpack.c.b16 %v2999, %v2998
  %v3325 = vpack.c.b16 %v3001, %v3000
  %v3326 = vpack.c.b16 %v3003, %v3002
  %v3327 = vpack.c.b16 %v3005, %v3004
  %v3328 = vpack.c.b16 %v3007, %v3006
  %v3329 = vpack.c.b16 %v3009, %v3008
  %v3330 = vpack.c.b16 %v3011, %v3010
  %v3331 = vpack.c.b16 %v3013, %v3012
  %v3332 = vpack.c.b16 %v3015, %v3014
  %v3333 = vpack.c.b16 %v3017, %v3016
  %v3334 = vpack.c.b16 %v3019, %v3018
  %v3335 = vpack.c.b16 %v3021, %v3020
  %v3336 = vpack.c.b16 %v3023, %v3022
  %v3337 = vpack.c.b16 %v3025, %v3024
  %v3338 = vpack.c.b16 %v3027, %v3026
  %v3339 = vpack.c.b16 %v3029, %v3028
  %v3340 = vpack.c.b16 %v3031, %v3030
  %v3341 = vpack.c.b16 %v3033, %v3032
  %v3342 = vpack.c.b16 %v3035, %v3034
  %v3343 = vpack.c.b16 %v3037, %v3036
  %v3344 = vpack.c.b16 %v3039, %v3038
  %v3345 = vpack.c.b16 %v3041, %v3040
  %v3346 = vpack.c.b16 %v3043, %v3042
  %v3347 = vpack.c.b16 %v3045, %v3044
  %v3348 = vpack.c.b16 %v3047, %v3046
  %v3349 = vpack.c.b16 %v3049, %v3048
  %v3350 = vpack.c.b16 %v3051, %v3050
  %v3351 = vpack.c.b16 %v3053, %v3052
  %v3352 = vpack.c.b16 %v3055, %v3054
  %v3353 = vpack.c.b16 %v3057, %v3056
  %v3354 = vpack.c.b16 %v3059, %v3058
  %v3355 = vpack.c.b16 %v3061, %v3060
  %v3356 = vpack.c.b16 %v3063, %v3062
  %v3357 = vpack.c.b16 %v3065, %v3064
  %v3358 = vpack.c.b16 %v3067, %v3066
  %v3359 = vpack.c.b16 %v3069, %v3068
  %v3360 = vpack.c.b16 %v3071, %v3070
  %v3361 = vpack.c.b16 %v3073, %v3072
  %v3362 = vpack.c.b16 %v3075, %v3074
  %v3363 = vpack.c.b16 %v3077, %v3076
  %v3364 = vpack.c.b16 %v3079, %v3078
  %v3365 = vpack.c.b16 %v3081, %v3080
  %v3366 = vpack.c.b16 %v3083, %v3082
  %v3367 = vpack.c.b16 %v3085, %v3084
  %v3368 = vpack.c.b16 %v3087, %v3086
  %v3369 = vpack.c.b16 %v3089, %v3088
  %v3370 = vpack.c.b16 %v3091, %v3090
  %v3371 = vpack.c.b16 %v3093, %v3092
  %v3372 = vpack.c.b16 %v3095, %v3094
  %v3373 = vpack.c.b16 %v3097, %v3096
  %v3374 = vpack.c.b16 %v3099, %v3098
  %v3375 = vpack.c.b16 %v3101, %v3100
  %v3376 = vpack.c.b16 %v3103, %v3102
  %v3377 = vpack.c.b16 %v3105, %v3104
  %v3378 = vpack.c.b16 %v3107, %v3106
  %v3379 = vpack.c.b16 %v3109, %v3108
  %v3380 = vpack.c.b16 %v3111, %v3110
  %v3381 = vpack.c.b16 %v3113, %v3112
  %v3382 = vpack.c.b16 %v3115, %v3114
  %v3383 = vpack.c.b16 %v3117, %v3116
  %v3384 = vpack.c.b16 %v3119, %v3118
  %v3385 = vpack.c.b16 %v3121, %v3120
  %v3386 = vpack.c.b16 %v3123, %v3122
  %v3387 = vpack.c.b16 %v3125, %v3124
  %v3388 = vpack.c.b16 %v3127, %v3126
  %v3389 = vpack.c.b16 %v3129, %v3128
  %v3390 = vpack.c.b16 %v3131, %v3130
  %v3391 = vpack.c.b16 %v3133, %v3132
  %v3392 = vpack.c.b16 %v3135, %v3134
  %v3393 = vpack.c.b16 %v3137, %v3136
  %v3394 = vpack.c.b16 %v3139, %v3138
  %v3395 = vpack.c.b16 %v3141, %v3140
  %v3396 = vpack.c.b16 %v3143, %v3142
  %v3397 = vpack.c.b16 %v3145, %v3144
  %v3398 = vpack.c.b16 %v3147, %v3146
  %v3399 = vpack.c.b16 %v3149, %v3148
  %v3400 = vpack.c.b16 %v3151, %v3150
  %v3401 = vpack.c.b16 %v3153, %v3152
  %v3402 = vpack.c.b16 %v3155, %v3154
  %v3403 = vpack.c.b16 %v3157, %v3156
  %v3404 = vpack.c.b16 %v3159, %v3158
  %v3405 = vpack.c.b16 %v3161, %v3160
  %v3406 = vpack.c.b16 %v3163, %v3162
  %v3407 = vpack.c.b16 %v3165, %v3164
  %v3408 = vpack.c.b16 %v3167, %v3166
  %v3409 = vpack.c.b16 %v3169, %v3168
  %v3410 = vpack.c.b16 %v3171, %v3170
  %v3411 = vpack.c.b16 %v3173, %v3172
  %v3412 = vpack.c.b16 %v3175, %v3174
  %v3413 = vpack.c.b16 %v3177, %v3176
  %v3414 = vpack.c.b16 %v3179, %v3178
  %v3415 = vpack.c.b16 %v3181, %v3180
  %v3416 = vpack.c.b16 %v3183, %v3182
  %v3417 = vpack.c.b16 %v3185, %v3184
  %v3418 = vpack.c.b16 %v3187, %v3186
  %v3419 = vpack.c.b16 %v3189, %v3188
  %v3420 = vpack.c.b16 %v3191, %v3190
  %v3421 = vpack.c.b16 %v3193, %v3192
  %v3422 = vpack.c.b16 %v3195, %v3194
  %v3423 = vpack.c.b16 %v3197, %v3196
  %v3424 = vpack.c.b16 %v3199, %v3198
  %v3425 = vpack.c.b16 %v3201, %v3200
  %v3426 = vpack.c.b16 %v3203, %v3202
  %v3427 = vpack.c.b16 %v3205, %v3204
  %v3428 = vpack.c.b16 %v3207, %v3206
  %v3429 = vpack.c.b16 %v3209, %v3208
  %v3430 = vpack.c.b16 %v3211, %v3210
  %v3431 = vpack.c.b16 %v3213, %v3212
  %v3432 = vpack.c.b16 %v3215, %v3214
  %v3433 = vpack.c.b16 %v3217, %v3216
  %v3434 = vpack.c.b16 %v3219, %v3218
  %v3435 = vpack.c.b16 %v3221, %v3220
  %v3436 = vpack.c.b16 %v3223, %v3222
  %v3437 = vpack.c.b16 %v3225, %v3224
  %v3438 = vpack.c.b16 %v3227, %v3226
  %v3439 = vpack.c.b16 %v3229, %v3228
  %v3440 = vpack.c.b16 %v3231, %v3230
  %v3441 = vpack.c.b16 %v3233, %v3232
  %v3442 = vpack.c.b16 %v3235, %v3234
  %v3443 = vpack.c.b16 %v3237, %v3236
  %v3444 = vpack.c.b16 %v3239, %v3238
  %v3445 = vpack.c.b16 %v3241, %v3240
  %v3446 = vpack.c.b16 %v3243, %v3242
  %v3447 = vpack.c.b16 %v3245, %v3244
  %v3448 = vpack.c.b16 %v3247, %v3246
  %v3449 = vpack.c.b16 %v3249, %v3248
  %v3450 = vpack.c.b16 %v3251, %v3250
  %v3451 = vpack.c.b16 %v3253, %v3252
  %v3452 = vpack.c.b16 %v3255, %v3254
  %v3453 = vpack.c.b16 %v3257, %v3256
  %v3454 = vpack.c.b16 %v3259, %v3258
  %v3455 = vpack.c.b16 %v3261, %v3260
  %v3456 = vpack.c.b16 %v3263, %v3262
  %v3457 = vpack.c.b16 %v3265, %v3264
  %3650 = vmatprep.subr.bf16.mxu0 0
  %3651 = vmatpush1.bf16.msra.mxu0 %v3266
  %3652 = vmatprep.subr.bf16.mxu0 0
  %3653 = vmatpush1.bf16.msra.mxu0 %v3267
  %3654 = vmatprep.subr.bf16.mxu0 0
  %3655 = vmatpush1.bf16.msra.mxu0 %v3268
  %3656 = vmatprep.subr.bf16.mxu0 0
  %3657 = vmatpush1.bf16.msra.mxu0 %v3269
  %3658 = vmatprep.subr.bf16.mxu0 0
  %3659 = vmatpush1.bf16.msra.mxu0 %v3270
  %3660 = vmatprep.subr.bf16.mxu0 0
  %3661 = vmatpush1.bf16.msra.mxu0 %v3271
  %3662 = vmatprep.subr.bf16.mxu0 0
  %3663 = vmatpush1.bf16.msra.mxu0 %v3272
  %3664 = vmatprep.subr.bf16.mxu0 0
  %3665 = vmatpush1.bf16.msra.mxu0 %v3273
  %3666 = vmatprep.subr.bf16.mxu0 0
  %3667 = vmatpush1.bf16.msra.mxu0 %v3274
  %3668 = vmatprep.subr.bf16.mxu0 0
  %3669 = vmatpush1.bf16.msra.mxu0 %v3275
  %3670 = vmatprep.subr.bf16.mxu0 0
  %3671 = vmatpush1.bf16.msra.mxu0 %v3276
  %3672 = vmatprep.subr.bf16.mxu0 0
  %3673 = vmatpush1.bf16.msra.mxu0 %v3277
  %3674 = vmatprep.subr.bf16.mxu0 0
  %3675 = vmatpush1.bf16.msra.mxu0 %v3278
  %3676 = vmatprep.subr.bf16.mxu0 0
  %3677 = vmatpush1.bf16.msra.mxu0 %v3279
  %3678 = vmatprep.subr.bf16.mxu0 0
  %3679 = vmatpush1.bf16.msra.mxu0 %v3280
  %3680 = vmatprep.subr.bf16.mxu0 0
  %3681 = vmatpush1.bf16.msra.mxu0 %v3281
  %3682 = vmatprep.mubr.bf16.mxu0 %v2084
  %3683 = vmatmul.mubr.bf16.gmra.mrb[0].mxu0 %v2083
  %v3684 = vpop.f32.mrb[0].mxu0
  %v3685 = vadd.f32 %v2496, %v3684
  %v3686 = vpop.f32.mrb[0].mxu0
  %v3687 = vpop.f32.mrb[0].mxu0
  %v3688 = vadd.f32 %v2496, %v3687
  %v3689 = vpop.f32.mrb[0].mxu0
  %3690 = vdwg.mxu0
  %3691 = vmatprep.subr.bf16.mxu0 0
  %3692 = vmatpush1.bf16.msra.mxu0 %v3282
  %3693 = vmatprep.subr.bf16.mxu0 0
  %3694 = vmatpush1.bf16.msra.mxu0 %v3283
  %3695 = vmatprep.subr.bf16.mxu0 0
  %3696 = vmatpush1.bf16.msra.mxu0 %v3284
  %3697 = vmatprep.subr.bf16.mxu0 0
  %3698 = vmatpush1.bf16.msra.mxu0 %v3285
  %3699 = vmatprep.subr.bf16.mxu0 0
  %3700 = vmatpush1.bf16.msra.mxu0 %v3286
  %3701 = vmatprep.subr.bf16.mxu0 0
  %3702 = vmatpush1.bf16.msra.mxu0 %v3287
  %3703 = vmatprep.subr.bf16.mxu0 0
  %3704 = vmatpush1.bf16.msra.mxu0 %v3288
  %3705 = vmatprep.subr.bf16.mxu0 0
  %3706 = vmatpush1.bf16.msra.mxu0 %v3289
  %3707 = vmatprep.subr.bf16.mxu0 0
  %3708 = vmatpush1.bf16.msra.mxu0 %v3290
  %3709 = vmatprep.subr.bf16.mxu0 0
  %3710 = vmatpush1.bf16.msra.mxu0 %v3291
  %3711 = vmatprep.subr.bf16.mxu0 0
  %3712 = vmatpush1.bf16.msra.mxu0 %v3292
  %3713 = vmatprep.subr.bf16.mxu0 0
  %3714 = vmatpush1.bf16.msra.mxu0 %v3293
  %3715 = vmatprep.subr.bf16.mxu0 0
  %3716 = vmatpush1.bf16.msra.mxu0 %v3294
  %3717 = vmatprep.subr.bf16.mxu0 0
  %3718 = vmatpush1.bf16.msra.mxu0 %v3295
  %3719 = vmatprep.subr.bf16.mxu0 0
  %3720 = vmatpush1.bf16.msra.mxu0 %v3296
  %3721 = vmatprep.subr.bf16.mxu0 0
  %3722 = vmatpush1.bf16.msra.mxu0 %v3297
  %3723 = vmatprep.mubr.bf16.mxu0 %v2086
  %3724 = vmatmul.mubr.bf16.gmra.mrb[0].mxu0 %v2085
  %v3725 = vpop.f32.mrb[0].mxu0
  %v3726 = vadd.f32 %v3685, %v3725
  %v3727 = vpop.f32.mrb[0].mxu0
  %v3728 = vpop.f32.mrb[0].mxu0
  %v3729 = vadd.f32 %v3688, %v3728
  %v3730 = vpop.f32.mrb[0].mxu0
  %3731 = vdwg.mxu0
  %3732 = vmatprep.subr.bf16.mxu0 0
  %3733 = vmatpush1.bf16.msra.mxu0 %v3298
  %3734 = vmatprep.subr.bf16.mxu0 0
  %3735 = vmatpush1.bf16.msra.mxu0 %v3299
  %3736 = vmatprep.subr.bf16.mxu0 0
  %3737 = vmatpush1.bf16.msra.mxu0 %v3300
  %3738 = vmatprep.subr.bf16.mxu0 0
  %3739 = vmatpush1.bf16.msra.mxu0 %v3301
  %3740 = vmatprep.subr.bf16.mxu0 0
  %3741 = vmatpush1.bf16.msra.mxu0 %v3302
  %3742 = vmatprep.subr.bf16.mxu0 0
  %3743 = vmatpush1.bf16.msra.mxu0 %v3303
  %3744 = vmatprep.subr.bf16.mxu0 0
  %3745 = vmatpush1.bf16.msra.mxu0 %v3304
  %3746 = vmatprep.subr.bf16.mxu0 0
  %3747 = vmatpush1.bf16.msra.mxu0 %v3305
  %3748 = vmatprep.subr.bf16.mxu0 0
  %3749 = vmatpush1.bf16.msra.mxu0 %v3306
  %3750 = vmatprep.subr.bf16.mxu0 0
  %3751 = vmatpush1.bf16.msra.mxu0 %v3307
  %3752 = vmatprep.subr.bf16.mxu0 0
  %3753 = vmatpush1.bf16.msra.mxu0 %v3308
  %3754 = vmatprep.subr.bf16.mxu0 0
  %3755 = vmatpush1.bf16.msra.mxu0 %v3309
  %3756 = vmatprep.subr.bf16.mxu0 0
  %3757 = vmatpush1.bf16.msra.mxu0 %v3310
  %3758 = vmatprep.subr.bf16.mxu0 0
  %3759 = vmatpush1.bf16.msra.mxu0 %v3311
  %3760 = vmatprep.subr.bf16.mxu0 0
  %3761 = vmatpush1.bf16.msra.mxu0 %v3312
  %3762 = vmatprep.subr.bf16.mxu0 0
  %3763 = vmatpush1.bf16.msra.mxu0 %v3313
  %3764 = vmatprep.mubr.bf16.mxu0 %v2088
  %3765 = vmatmul.mubr.bf16.gmra.mrb[0].mxu0 %v2087
  %v3766 = vpop.f32.mrb[0].mxu0
  %v3767 = vadd.f32 %v3726, %v3766
  %v3768 = vpop.f32.mrb[0].mxu0
  %v3769 = vpop.f32.mrb[0].mxu0
  %v3770 = vadd.f32 %v3729, %v3769
  %v3771 = vpop.f32.mrb[0].mxu0
  %3772 = vdwg.mxu0
  %3773 = vmatprep.subr.bf16.mxu0 0
  %3774 = vmatpush1.bf16.msra.mxu0 %v3314
  %3775 = vmatprep.subr.bf16.mxu0 0
  %3776 = vmatpush1.bf16.msra.mxu0 %v3315
  %3777 = vmatprep.subr.bf16.mxu0 0
  %3778 = vmatpush1.bf16.msra.mxu0 %v3316
  %3779 = vmatprep.subr.bf16.mxu0 0
  %3780 = vmatpush1.bf16.msra.mxu0 %v3317
  %3781 = vmatprep.subr.bf16.mxu0 0
  %3782 = vmatpush1.bf16.msra.mxu0 %v3318
  %3783 = vmatprep.subr.bf16.mxu0 0
  %3784 = vmatpush1.bf16.msra.mxu0 %v3319
  %3785 = vmatprep.subr.bf16.mxu0 0
  %3786 = vmatpush1.bf16.msra.mxu0 %v3320
  %3787 = vmatprep.subr.bf16.mxu0 0
  %3788 = vmatpush1.bf16.msra.mxu0 %v3321
  %3789 = vmatprep.subr.bf16.mxu0 0
  %3790 = vmatpush1.bf16.msra.mxu0 %v3322
  %3791 = vmatprep.subr.bf16.mxu0 0
  %3792 = vmatpush1.bf16.msra.mxu0 %v3323
  %3793 = vmatprep.subr.bf16.mxu0 0
  %3794 = vmatpush1.bf16.msra.mxu0 %v3324
  %3795 = vmatprep.subr.bf16.mxu0 0
  %3796 = vmatpush1.bf16.msra.mxu0 %v3325
  %3797 = vmatprep.subr.bf16.mxu0 0
  %3798 = vmatpush1.bf16.msra.mxu0 %v3326
  %3799 = vmatprep.subr.bf16.mxu0 0
  %3800 = vmatpush1.bf16.msra.mxu0 %v3327
  %3801 = vmatprep.subr.bf16.mxu0 0
  %3802 = vmatpush1.bf16.msra.mxu0 %v3328
  %3803 = vmatprep.subr.bf16.mxu0 0
  %3804 = vmatpush1.bf16.msra.mxu0 %v3329
  %3805 = vmatprep.mubr.bf16.mxu0 %v2090
  %3806 = vmatmul.mubr.bf16.gmra.mrb[0].mxu0 %v2089
  %v3807 = vpop.f32.mrb[0].mxu0
  %v3808 = vadd.f32 %v3767, %v3807
  %v3809 = vpop.f32.mrb[0].mxu0
  %v3810 = vpop.f32.mrb[0].mxu0
  %v3811 = vadd.f32 %v3770, %v3810
  %v3812 = vpop.f32.mrb[0].mxu0
  %3813 = vdwg.mxu0
  %3814 = vmatprep.subr.bf16.mxu0 0
  %3815 = vmatpush1.bf16.msra.mxu0 %v3330
  %3816 = vmatprep.subr.bf16.mxu0 0
  %3817 = vmatpush1.bf16.msra.mxu0 %v3331
  %3818 = vmatprep.subr.bf16.mxu0 0
  %3819 = vmatpush1.bf16.msra.mxu0 %v3332
  %3820 = vmatprep.subr.bf16.mxu0 0
  %3821 = vmatpush1.bf16.msra.mxu0 %v3333
  %3822 = vmatprep.subr.bf16.mxu0 0
  %3823 = vmatpush1.bf16.msra.mxu0 %v3334
  %3824 = vmatprep.subr.bf16.mxu0 0
  %3825 = vmatpush1.bf16.msra.mxu0 %v3335
  %3826 = vmatprep.subr.bf16.mxu0 0
  %3827 = vmatpush1.bf16.msra.mxu0 %v3336
  %3828 = vmatprep.subr.bf16.mxu0 0
  %3829 = vmatpush1.bf16.msra.mxu0 %v3337
  %3830 = vmatprep.subr.bf16.mxu0 0
  %3831 = vmatpush1.bf16.msra.mxu0 %v3338
  %3832 = vmatprep.subr.bf16.mxu0 0
  %3833 = vmatpush1.bf16.msra.mxu0 %v3339
  %3834 = vmatprep.subr.bf16.mxu0 0
  %3835 = vmatpush1.bf16.msra.mxu0 %v3340
  %3836 = vmatprep.subr.bf16.mxu0 0
  %3837 = vmatpush1.bf16.msra.mxu0 %v3341
  %3838 = vmatprep.subr.bf16.mxu0 0
  %3839 = vmatpush1.bf16.msra.mxu0 %v3342
  %3840 = vmatprep.subr.bf16.mxu0 0
  %3841 = vmatpush1.bf16.msra.mxu0 %v3343
  %3842 = vmatprep.subr.bf16.mxu0 0
  %3843 = vmatpush1.bf16.msra.mxu0 %v3344
  %3844 = vmatprep.subr.bf16.mxu0 0
  %3845 = vmatpush1.bf16.msra.mxu0 %v3345
  %3846 = vmatprep.mubr.bf16.mxu0 %v2092
  %3847 = vmatmul.mubr.bf16.gmra.mrb[0].mxu0 %v2091
  %v3848 = vpop.f32.mrb[0].mxu0
  %v3849 = vadd.f32 %v3808, %v3848
  %v3850 = vpop.f32.mrb[0].mxu0
  %v3851 = vpop.f32.mrb[0].mxu0
  %v3852 = vadd.f32 %v3811, %v3851
  %v3853 = vpop.f32.mrb[0].mxu0
  %3854 = vdwg.mxu0
  %3855 = vmatprep.subr.bf16.mxu0 0
  %3856 = vmatpush1.bf16.msra.mxu0 %v3346
  %3857 = vmatprep.subr.bf16.mxu0 0
  %3858 = vmatpush1.bf16.msra.mxu0 %v3347
  %3859 = vmatprep.subr.bf16.mxu0 0
  %3860 = vmatpush1.bf16.msra.mxu0 %v3348
  %3861 = vmatprep.subr.bf16.mxu0 0
  %3862 = vmatpush1.bf16.msra.mxu0 %v3349
  %3863 = vmatprep.subr.bf16.mxu0 0
  %3864 = vmatpush1.bf16.msra.mxu0 %v3350
  %3865 = vmatprep.subr.bf16.mxu0 0
  %3866 = vmatpush1.bf16.msra.mxu0 %v3351
  %3867 = vmatprep.subr.bf16.mxu0 0
  %3868 = vmatpush1.bf16.msra.mxu0 %v3352
  %3869 = vmatprep.subr.bf16.mxu0 0
  %3870 = vmatpush1.bf16.msra.mxu0 %v3353
  %3871 = vmatprep.subr.bf16.mxu0 0
  %3872 = vmatpush1.bf16.msra.mxu0 %v3354
  %3873 = vmatprep.subr.bf16.mxu0 0
  %3874 = vmatpush1.bf16.msra.mxu0 %v3355
  %3875 = vmatprep.subr.bf16.mxu0 0
  %3876 = vmatpush1.bf16.msra.mxu0 %v3356
  %3877 = vmatprep.subr.bf16.mxu0 0
  %3878 = vmatpush1.bf16.msra.mxu0 %v3357
  %3879 = vmatprep.subr.bf16.mxu0 0
  %3880 = vmatpush1.bf16.msra.mxu0 %v3358
  %3881 = vmatprep.subr.bf16.mxu0 0
  %3882 = vmatpush1.bf16.msra.mxu0 %v3359
  %3883 = vmatprep.subr.bf16.mxu0 0
  %3884 = vmatpush1.bf16.msra.mxu0 %v3360
  %3885 = vmatprep.subr.bf16.mxu0 0
  %3886 = vmatpush1.bf16.msra.mxu0 %v3361
  %3887 = vmatprep.mubr.bf16.mxu0 %v2094
  %3888 = vmatmul.mubr.bf16.gmra.mrb[0].mxu0 %v2093
  %v3889 = vpop.f32.mrb[0].mxu0
  %v3890 = vadd.f32 %v3849, %v3889
  %v3891 = vpop.f32.mrb[0].mxu0
  %v3892 = vpop.f32.mrb[0].mxu0
  %v3893 = vadd.f32 %v3852, %v3892
  %v3894 = vpop.f32.mrb[0].mxu0
  %3895 = vdwg.mxu0
  %3896 = vmatprep.subr.bf16.mxu0 0
  %3897 = vmatpush1.bf16.msra.mxu0 %v3362
  %3898 = vmatprep.subr.bf16.mxu0 0
  %3899 = vmatpush1.bf16.msra.mxu0 %v3363
  %3900 = vmatprep.subr.bf16.mxu0 0
  %3901 = vmatpush1.bf16.msra.mxu0 %v3364
  %3902 = vmatprep.subr.bf16.mxu0 0
  %3903 = vmatpush1.bf16.msra.mxu0 %v3365
  %3904 = vmatprep.subr.bf16.mxu0 0
  %3905 = vmatpush1.bf16.msra.mxu0 %v3366
  %3906 = vmatprep.subr.bf16.mxu0 0
  %3907 = vmatpush1.bf16.msra.mxu0 %v3367
  %3908 = vmatprep.subr.bf16.mxu0 0
  %3909 = vmatpush1.bf16.msra.mxu0 %v3368
  %3910 = vmatprep.subr.bf16.mxu0 0
  %3911 = vmatpush1.bf16.msra.mxu0 %v3369
  %3912 = vmatprep.subr.bf16.mxu0 0
  %3913 = vmatpush1.bf16.msra.mxu0 %v3370
  %3914 = vmatprep.subr.bf16.mxu0 0
  %3915 = vmatpush1.bf16.msra.mxu0 %v3371
  %3916 = vmatprep.subr.bf16.mxu0 0
  %3917 = vmatpush1.bf16.msra.mxu0 %v3372
  %3918 = vmatprep.subr.bf16.mxu0 0
  %3919 = vmatpush1.bf16.msra.mxu0 %v3373
  %3920 = vmatprep.subr.bf16.mxu0 0
  %3921 = vmatpush1.bf16.msra.mxu0 %v3374
  %3922 = vmatprep.subr.bf16.mxu0 0
  %3923 = vmatpush1.bf16.msra.mxu0 %v3375
  %3924 = vmatprep.subr.bf16.mxu0 0
  %3925 = vmatpush1.bf16.msra.mxu0 %v3376
  %3926 = vmatprep.subr.bf16.mxu0 0
  %3927 = vmatpush1.bf16.msra.mxu0 %v3377
  %3928 = vmatprep.mubr.bf16.mxu0 %v2096
  %3929 = vmatmul.mubr.bf16.gmra.mrb[0].mxu0 %v2095
  %v3930 = vpop.f32.mrb[0].mxu0
  %v3931 = vadd.f32 %v3890, %v3930
  %v3932 = vpop.f32.mrb[0].mxu0
  %v3933 = vpop.f32.mrb[0].mxu0
  %v3934 = vadd.f32 %v3893, %v3933
  %v3935 = vpop.f32.mrb[0].mxu0
  %3936 = vdwg.mxu0
  %3937 = vmatprep.subr.bf16.mxu0 0
  %3938 = vmatpush1.bf16.msra.mxu0 %v3378
  %3939 = vmatprep.subr.bf16.mxu0 0
  %3940 = vmatpush1.bf16.msra.mxu0 %v3379
  %3941 = vmatprep.subr.bf16.mxu0 0
  %3942 = vmatpush1.bf16.msra.mxu0 %v3380
  %3943 = vmatprep.subr.bf16.mxu0 0
  %3944 = vmatpush1.bf16.msra.mxu0 %v3381
  %3945 = vmatprep.subr.bf16.mxu0 0
  %3946 = vmatpush1.bf16.msra.mxu0 %v3382
  %3947 = vmatprep.subr.bf16.mxu0 0
  %3948 = vmatpush1.bf16.msra.mxu0 %v3383
  %3949 = vmatprep.subr.bf16.mxu0 0
  %3950 = vmatpush1.bf16.msra.mxu0 %v3384
  %3951 = vmatprep.subr.bf16.mxu0 0
  %3952 = vmatpush1.bf16.msra.mxu0 %v3385
  %3953 = vmatprep.subr.bf16.mxu0 0
  %3954 = vmatpush1.bf16.msra.mxu0 %v3386
  %3955 = vmatprep.subr.bf16.mxu0 0
  %3956 = vmatpush1.bf16.msra.mxu0 %v3387
  %3957 = vmatprep.subr.bf16.mxu0 0
  %3958 = vmatpush1.bf16.msra.mxu0 %v3388
  %3959 = vmatprep.subr.bf16.mxu0 0
  %3960 = vmatpush1.bf16.msra.mxu0 %v3389
  %3961 = vmatprep.subr.bf16.mxu0 0
  %3962 = vmatpush1.bf16.msra.mxu0 %v3390
  %3963 = vmatprep.subr.bf16.mxu0 0
  %3964 = vmatpush1.bf16.msra.mxu0 %v3391
  %3965 = vmatprep.subr.bf16.mxu0 0
  %3966 = vmatpush1.bf16.msra.mxu0 %v3392
  %3967 = vmatprep.subr.bf16.mxu0 0
  %3968 = vmatpush1.bf16.msra.mxu0 %v3393
  %3969 = vmatprep.mubr.bf16.mxu0 %v2098
  %3970 = vmatmul.mubr.bf16.gmra.mrb[0].mxu0 %v2097
  %v3971 = vpop.f32.mrb[0].mxu0
  %v3972 = vadd.f32 %v3931, %v3971
  %v3973 = vpop.f32.mrb[0].mxu0
  %v3974 = vpop.f32.mrb[0].mxu0
  %v3975 = vadd.f32 %v3934, %v3974
  %v3976 = vpop.f32.mrb[0].mxu0
  %3977 = vdwg.mxu0
  %3978 = vmatprep.subr.bf16.mxu0 0
  %3979 = vmatpush1.bf16.msra.mxu0 %v3394
  %3980 = vmatprep.subr.bf16.mxu0 0
  %3981 = vmatpush1.bf16.msra.mxu0 %v3395
  %3982 = vmatprep.subr.bf16.mxu0 0
  %3983 = vmatpush1.bf16.msra.mxu0 %v3396
  %3984 = vmatprep.subr.bf16.mxu0 0
  %3985 = vmatpush1.bf16.msra.mxu0 %v3397
  %3986 = vmatprep.subr.bf16.mxu0 0
  %3987 = vmatpush1.bf16.msra.mxu0 %v3398
  %3988 = vmatprep.subr.bf16.mxu0 0
  %3989 = vmatpush1.bf16.msra.mxu0 %v3399
  %3990 = vmatprep.subr.bf16.mxu0 0
  %3991 = vmatpush1.bf16.msra.mxu0 %v3400
  %3992 = vmatprep.subr.bf16.mxu0 0
  %3993 = vmatpush1.bf16.msra.mxu0 %v3401
  %3994 = vmatprep.subr.bf16.mxu0 0
  %3995 = vmatpush1.bf16.msra.mxu0 %v3402
  %3996 = vmatprep.subr.bf16.mxu0 0
  %3997 = vmatpush1.bf16.msra.mxu0 %v3403
  %3998 = vmatprep.subr.bf16.mxu0 0
  %3999 = vmatpush1.bf16.msra.mxu0 %v3404
  %4000 = vmatprep.subr.bf16.mxu0 0
  %4001 = vmatpush1.bf16.msra.mxu0 %v3405
  %4002 = vmatprep.subr.bf16.mxu0 0
  %4003 = vmatpush1.bf16.msra.mxu0 %v3406
  %4004 = vmatprep.subr.bf16.mxu0 0
  %4005 = vmatpush1.bf16.msra.mxu0 %v3407
  %4006 = vmatprep.subr.bf16.mxu0 0
  %4007 = vmatpush1.bf16.msra.mxu0 %v3408
  %4008 = vmatprep.subr.bf16.mxu0 0
  %4009 = vmatpush1.bf16.msra.mxu0 %v3409
  %4010 = vmatprep.mubr.bf16.mxu0 %v2100
  %4011 = vmatmul.mubr.bf16.gmra.mrb[0].mxu0 %v2099
  %v4012 = vpop.f32.mrb[0].mxu0
  %v4013 = vadd.f32 %v3972, %v4012
  %v4014 = vpop.f32.mrb[0].mxu0
  %v4015 = vpop.f32.mrb[0].mxu0
  %v4016 = vadd.f32 %v3975, %v4015
  %v4017 = vpop.f32.mrb[0].mxu0
  %4018 = vdwg.mxu0
  %4019 = vmatprep.subr.bf16.mxu0 0
  %4020 = vmatpush1.bf16.msra.mxu0 %v3410
  %4021 = vmatprep.subr.bf16.mxu0 0
  %4022 = vmatpush1.bf16.msra.mxu0 %v3411
  %4023 = vmatprep.subr.bf16.mxu0 0
  %4024 = vmatpush1.bf16.msra.mxu0 %v3412
  %4025 = vmatprep.subr.bf16.mxu0 0
  %4026 = vmatpush1.bf16.msra.mxu0 %v3413
  %4027 = vmatprep.subr.bf16.mxu0 0
  %4028 = vmatpush1.bf16.msra.mxu0 %v3414
  %4029 = vmatprep.subr.bf16.mxu0 0
  %4030 = vmatpush1.bf16.msra.mxu0 %v3415
  %4031 = vmatprep.subr.bf16.mxu0 0
  %4032 = vmatpush1.bf16.msra.mxu0 %v3416
  %4033 = vmatprep.subr.bf16.mxu0 0
  %4034 = vmatpush1.bf16.msra.mxu0 %v3417
  %4035 = vmatprep.subr.bf16.mxu0 0
  %4036 = vmatpush1.bf16.msra.mxu0 %v3418
  %4037 = vmatprep.subr.bf16.mxu0 0
  %4038 = vmatpush1.bf16.msra.mxu0 %v3419
  %4039 = vmatprep.subr.bf16.mxu0 0
  %4040 = vmatpush1.bf16.msra.mxu0 %v3420
  %4041 = vmatprep.subr.bf16.mxu0 0
  %4042 = vmatpush1.bf16.msra.mxu0 %v3421
  %4043 = vmatprep.subr.bf16.mxu0 0
  %4044 = vmatpush1.bf16.msra.mxu0 %v3422
  %4045 = vmatprep.subr.bf16.mxu0 0
  %4046 = vmatpush1.bf16.msra.mxu0 %v3423
  %4047 = vmatprep.subr.bf16.mxu0 0
  %4048 = vmatpush1.bf16.msra.mxu0 %v3424
  %4049 = vmatprep.subr.bf16.mxu0 0
  %4050 = vmatpush1.bf16.msra.mxu0 %v3425
  %4051 = vmatprep.mubr.bf16.mxu0 %v2102
  %4052 = vmatmul.mubr.bf16.gmra.mrb[0].mxu0 %v2101
  %v4053 = vpop.f32.mrb[0].mxu0
  %v4054 = vadd.f32 %v4013, %v4053
  %v4055 = vpop.f32.mrb[0].mxu0
  %v4056 = vpop.f32.mrb[0].mxu0
  %v4057 = vadd.f32 %v4016, %v4056
  %v4058 = vpop.f32.mrb[0].mxu0
  %4059 = vdwg.mxu0
  %4060 = vmatprep.subr.bf16.mxu0 0
  %4061 = vmatpush1.bf16.msra.mxu0 %v3426
  %4062 = vmatprep.subr.bf16.mxu0 0
  %4063 = vmatpush1.bf16.msra.mxu0 %v3427
  %4064 = vmatprep.subr.bf16.mxu0 0
  %4065 = vmatpush1.bf16.msra.mxu0 %v3428
  %4066 = vmatprep.subr.bf16.mxu0 0
  %4067 = vmatpush1.bf16.msra.mxu0 %v3429
  %4068 = vmatprep.subr.bf16.mxu0 0
  %4069 = vmatpush1.bf16.msra.mxu0 %v3430
  %4070 = vmatprep.subr.bf16.mxu0 0
  %4071 = vmatpush1.bf16.msra.mxu0 %v3431
  %4072 = vmatprep.subr.bf16.mxu0 0
  %4073 = vmatpush1.bf16.msra.mxu0 %v3432
  %4074 = vmatprep.subr.bf16.mxu0 0
  %4075 = vmatpush1.bf16.msra.mxu0 %v3433
  %4076 = vmatprep.subr.bf16.mxu0 0
  %4077 = vmatpush1.bf16.msra.mxu0 %v3434
  %4078 = vmatprep.subr.bf16.mxu0 0
  %4079 = vmatpush1.bf16.msra.mxu0 %v3435
  %4080 = vmatprep.subr.bf16.mxu0 0
  %4081 = vmatpush1.bf16.msra.mxu0 %v3436
  %4082 = vmatprep.subr.bf16.mxu0 0
  %4083 = vmatpush1.bf16.msra.mxu0 %v3437
  %4084 = vmatprep.subr.bf16.mxu0 0
  %4085 = vmatpush1.bf16.msra.mxu0 %v3438
  %4086 = vmatprep.subr.bf16.mxu0 0
  %4087 = vmatpush1.bf16.msra.mxu0 %v3439
  %4088 = vmatprep.subr.bf16.mxu0 0
  %4089 = vmatpush1.bf16.msra.mxu0 %v3440
  %4090 = vmatprep.subr.bf16.mxu0 0
  %4091 = vmatpush1.bf16.msra.mxu0 %v3441
  %4092 = vmatprep.mubr.bf16.mxu0 %v2104
  %4093 = vmatmul.mubr.bf16.gmra.mrb[0].mxu0 %v2103
  %v4094 = vpop.f32.mrb[0].mxu0
  %v4095 = vadd.f32 %v4054, %v4094
  %v4096 = vpop.f32.mrb[0].mxu0
  %v4097 = vpop.f32.mrb[0].mxu0
  %v4098 = vadd.f32 %v4057, %v4097
  %v4099 = vpop.f32.mrb[0].mxu0
  %4100 = vdwg.mxu0
  %4101 = vmatprep.subr.bf16.mxu0 0
  %4102 = vmatpush1.bf16.msra.mxu0 %v3442
  %4103 = vmatprep.subr.bf16.mxu0 0
  %4104 = vmatpush1.bf16.msra.mxu0 %v3443
  %4105 = vmatprep.subr.bf16.mxu0 0
  %4106 = vmatpush1.bf16.msra.mxu0 %v3444
  %4107 = vmatprep.subr.bf16.mxu0 0
  %4108 = vmatpush1.bf16.msra.mxu0 %v3445
  %4109 = vmatprep.subr.bf16.mxu0 0
  %4110 = vmatpush1.bf16.msra.mxu0 %v3446
  %4111 = vmatprep.subr.bf16.mxu0 0
  %4112 = vmatpush1.bf16.msra.mxu0 %v3447
  %4113 = vmatprep.subr.bf16.mxu0 0
  %4114 = vmatpush1.bf16.msra.mxu0 %v3448
  %4115 = vmatprep.subr.bf16.mxu0 0
  %4116 = vmatpush1.bf16.msra.mxu0 %v3449
  %4117 = vmatprep.subr.bf16.mxu0 0
  %4118 = vmatpush1.bf16.msra.mxu0 %v3450
  %4119 = vmatprep.subr.bf16.mxu0 0
  %4120 = vmatpush1.bf16.msra.mxu0 %v3451
  %4121 = vmatprep.subr.bf16.mxu0 0
  %4122 = vmatpush1.bf16.msra.mxu0 %v3452
  %4123 = vmatprep.subr.bf16.mxu0 0
  %4124 = vmatpush1.bf16.msra.mxu0 %v3453
  %4125 = vmatprep.subr.bf16.mxu0 0
  %4126 = vmatpush1.bf16.msra.mxu0 %v3454
  %4127 = vmatprep.subr.bf16.mxu0 0
  %4128 = vmatpush1.bf16.msra.mxu0 %v3455
  %4129 = vmatprep.subr.bf16.mxu0 0
  %4130 = vmatpush1.bf16.msra.mxu0 %v3456
  %4131 = vmatprep.subr.bf16.mxu0 0
  %4132 = vmatpush1.bf16.msra.mxu0 %v3457
  %4133 = vmatprep.mubr.bf16.mxu0 %v2106
  %4134 = vmatmul.mubr.bf16.gmra.mrb[0].mxu0 %v2105
  %v4135 = vpop.f32.mrb[0].mxu0
  %v4136 = vadd.f32 %v4095, %v4135
  %v4137 = vpop.f32.mrb[0].mxu0
  %v4138 = vpop.f32.mrb[0].mxu0
  %v4139 = vadd.f32 %v4098, %v4138
  %v4140 = vpop.f32.mrb[0].mxu0
  %4141 = vdwg.mxu0
  %vm4142 = vcmp.gt.f32.partialorder %v4136, 0.0
  %vm4143 = vcmp.gt.f32.partialorder %v4139, 0.0
  %v4144 = vmul.f32 %v4136, 0.01
  %v4145 = vmul.f32 %v4139, 0.01
  %v4146 = vsel %vm4142, %v4136, %v4144
  %v4147 = vsel %vm4143, %v4139, %v4145
  %v4148 = vpack.c.bf16 %v4147, %v4146
  %v4149 = vld [vmem:[%s7] sm:$0xf]
  %v4150 = vld [vmem:[%s7 + $0x4] sm:$0xf]
  %v4151 = vld [vmem:[%s7 + $0x8] sm:$0xf]
  %v4152 = vld [vmem:[%s7 + $0xc] sm:$0xf]
  %v4153 = vld [vmem:[%s7 + $0x10] sm:$0xf]
  %v4154 = vld [vmem:[%s7 + $0x14] sm:$0xf]
  %v4155 = vld [vmem:[%s7 + $0x18] sm:$0xf]
  %v4156 = vld [vmem:[%s7 + $0x1c] sm:$0xf]
  %v4157 = vld [vmem:[%s7 + $0x20] sm:$0xf]
  %v4158 = vld [vmem:[%s7 + $0x24] sm:$0xf]
  %v4159 = vld [vmem:[%s7 + $0x28] sm:$0xf]
  %v4160 = vld [vmem:[%s7 + $0x2c] sm:$0xf]
  %v4161 = vld [vmem:[%s7 + $0x30] sm:$0xf]
  %v4162 = vld [vmem:[%s7 + $0x34] sm:$0xf]
  %v4163 = vld [vmem:[%s7 + $0x38] sm:$0xf]
  %v4164 = vld [vmem:[%s7 + $0x3c] sm:$0xf]
  %v4165 = vld [vmem:[%s8] sm:$0x1]
  %v4167 = vlaneseq
  %v4168 = vshrl.u32 %v4167, 7
  %v4169 = vsub.s32 0, %v4168
  %v4170 = vrot.slane %v4165, %v4169
  %v4188 = vunpack.c.l.b16 %v4149
  %v4189 = vunpack.c.l.b16 %v4150
  %v4190 = vunpack.c.l.b16 %v4151
  %v4191 = vunpack.c.l.b16 %v4152
  %v4192 = vunpack.c.l.b16 %v4153
  %v4193 = vunpack.c.l.b16 %v4154
  %v4194 = vunpack.c.l.b16 %v4155
  %v4195 = vunpack.c.l.b16 %v4156
  %v4196 = vunpack.c.l.b16 %v4157
  %v4197 = vunpack.c.l.b16 %v4158
  %v4198 = vunpack.c.l.b16 %v4159
  %v4199 = vunpack.c.l.b16 %v4160
  %v4200 = vunpack.c.l.b16 %v4161
  %v4201 = vunpack.c.l.b16 %v4162
  %v4202 = vunpack.c.l.b16 %v4163
  %v4203 = vunpack.c.l.b16 %v4164
  %v4204 = vpack.c.b16 %v4189, %v4188
  %v4205 = vpack.c.b16 %v4191, %v4190
  %v4206 = vpack.c.b16 %v4193, %v4192
  %v4207 = vpack.c.b16 %v4195, %v4194
  %v4208 = vpack.c.b16 %v4197, %v4196
  %v4209 = vpack.c.b16 %v4199, %v4198
  %v4210 = vpack.c.b16 %v4201, %v4200
  %v4211 = vpack.c.b16 %v4203, %v4202
  %4220 = vmatprep.subr.bf16.mxu0 0
  %4221 = vmatpush1.bf16.msra.mxu0 %v4204
  %4222 = vmatprep.subr.bf16.mxu0 0
  %4223 = vmatpush1.bf16.msra.mxu0 %v4205
  %4224 = vmatprep.subr.bf16.mxu0 0
  %4225 = vmatpush1.bf16.msra.mxu0 %v4206
  %4226 = vmatprep.subr.bf16.mxu0 0
  %4227 = vmatpush1.bf16.msra.mxu0 %v4207
  %4228 = vmatprep.subr.bf16.mxu0 0
  %4229 = vmatpush1.bf16.msra.mxu0 %v4208
  %4230 = vmatprep.subr.bf16.mxu0 0
  %4231 = vmatpush1.bf16.msra.mxu0 %v4209
  %4232 = vmatprep.subr.bf16.mxu0 0
  %4233 = vmatpush1.bf16.msra.mxu0 %v4210
  %4234 = vmatprep.subr.bf16.mxu0 0
  %4235 = vmatpush1.bf16.msra.mxu0 %v4211
  %4236 = vmatprep.subr.bf16.mxu0 0
  %4237 = vmatpush1.bf16.msra.mxu0 0
  %4238 = vmatprep.subr.bf16.mxu0 0
  %4239 = vmatpush1.bf16.msra.mxu0 0
  %4240 = vmatprep.subr.bf16.mxu0 0
  %4241 = vmatpush1.bf16.msra.mxu0 0
  %4242 = vmatprep.subr.bf16.mxu0 0
  %4243 = vmatpush1.bf16.msra.mxu0 0
  %4244 = vmatprep.subr.bf16.mxu0 0
  %4245 = vmatpush1.bf16.msra.mxu0 0
  %4246 = vmatprep.subr.bf16.mxu0 0
  %4247 = vmatpush1.bf16.msra.mxu0 0
  %4248 = vmatprep.subr.bf16.mxu0 0
  %4249 = vmatpush1.bf16.msra.mxu0 0
  %4250 = vmatprep.subr.bf16.mxu0 0
  %4251 = vmatpush1.bf16.msra.mxu0 0
  %4252 = vmatprep.mubr.bf16.mxu0 0
  %4253 = vmatmul.mubr.bf16.gmra.mrb[0].mxu0 %v4148
  %v4254 = vpop.f32.mrb[0].mxu0
  %v4255 = vadd.f32 %v4170, %v4254
  %v4256 = vpop.f32.mrb[0].mxu0
  %v4257 = vpop.f32.mrb[0].mxu0
  %v4258 = vadd.f32 %v4170, %v4257
  %v4259 = vpop.f32.mrb[0].mxu0
  %4260 = vdwg.mxu0
  %vm4261 = vcmp.gt.f32.partialorder %v4255, 0.0
  %vm4262 = vcmp.gt.f32.partialorder %v4258, 0.0
  %v4263 = vmul.f32 %v4255, 0.01
  %v4264 = vmul.f32 %v4258, 0.01
  %v4265 = vsel %vm4261, %v4255, %v4263
  %v4266 = vsel %vm4262, %v4258, %v4264
  %v4267 = vpack.c.bf16 %v4266, %v4265
  %v4268 = vld [vmem:[%s9] sm:$0xf]
  %v4269 = vld [vmem:[%s9 + $0x4] sm:$0xf]
  %v4270 = vld [vmem:[%s9 + $0x8] sm:$0xf]
  %v4271 = vld [vmem:[%s9 + $0xc] sm:$0xf]
  %v4272 = vld [vmem:[%s9 + $0x10] sm:$0xf]
  %v4273 = vld [vmem:[%s9 + $0x14] sm:$0xf]
  %v4274 = vld [vmem:[%s9 + $0x18] sm:$0xf]
  %v4275 = vld [vmem:[%s9 + $0x1c] sm:$0xf]
  %v4276 = vld [vmem:[%s9 + $0x20] sm:$0xf]
  %v4277 = vld [vmem:[%s9 + $0x24] sm:$0xf]
  %v4278 = vld [vmem:[%s9 + $0x28] sm:$0xf]
  %v4279 = vld [vmem:[%s9 + $0x2c] sm:$0xf]
  %v4280 = vld [vmem:[%s9 + $0x30] sm:$0xf]
  %v4281 = vld [vmem:[%s9 + $0x34] sm:$0xf]
  %v4282 = vld [vmem:[%s9 + $0x38] sm:$0xf]
  %v4283 = vld [vmem:[%s9 + $0x3c] sm:$0xf]
  %v4284 = vld [vmem:[%s10] sm:$0x1]
  %v4286 = vlaneseq
  %v4287 = vshrl.u32 %v4286, 7
  %v4288 = vsub.s32 0, %v4287
  %v4289 = vrot.slane %v4284, %v4288
  %v4307 = vunpack.c.l.b16 %v4268
  %v4308 = vunpack.c.l.b16 %v4269
  %v4309 = vunpack.c.l.b16 %v4270
  %v4310 = vunpack.c.l.b16 %v4271
  %v4311 = vunpack.c.l.b16 %v4272
  %v4312 = vunpack.c.l.b16 %v4273
  %v4313 = vunpack.c.l.b16 %v4274
  %v4314 = vunpack.c.l.b16 %v4275
  %v4315 = vunpack.c.l.b16 %v4276
  %v4316 = vunpack.c.l.b16 %v4277
  %v4317 = vunpack.c.l.b16 %v4278
  %v4318 = vunpack.c.l.b16 %v4279
  %v4319 = vunpack.c.l.b16 %v4280
  %v4320 = vunpack.c.l.b16 %v4281
  %v4321 = vunpack.c.l.b16 %v4282
  %v4322 = vunpack.c.l.b16 %v4283
  %v4323 = vpack.c.b16 %v4308, %v4307
  %v4324 = vpack.c.b16 %v4310, %v4309
  %v4325 = vpack.c.b16 %v4312, %v4311
  %v4326 = vpack.c.b16 %v4314, %v4313
  %v4327 = vpack.c.b16 %v4316, %v4315
  %v4328 = vpack.c.b16 %v4318, %v4317
  %v4329 = vpack.c.b16 %v4320, %v4319
  %v4330 = vpack.c.b16 %v4322, %v4321
  %4339 = vmatprep.subr.bf16.mxu0 0
  %4340 = vmatpush1.bf16.msra.mxu0 %v4323
  %4341 = vmatprep.subr.bf16.mxu0 0
  %4342 = vmatpush1.bf16.msra.mxu0 %v4324
  %4343 = vmatprep.subr.bf16.mxu0 0
  %4344 = vmatpush1.bf16.msra.mxu0 %v4325
  %4345 = vmatprep.subr.bf16.mxu0 0
  %4346 = vmatpush1.bf16.msra.mxu0 %v4326
  %4347 = vmatprep.subr.bf16.mxu0 0
  %4348 = vmatpush1.bf16.msra.mxu0 %v4327
  %4349 = vmatprep.subr.bf16.mxu0 0
  %4350 = vmatpush1.bf16.msra.mxu0 %v4328
  %4351 = vmatprep.subr.bf16.mxu0 0
  %4352 = vmatpush1.bf16.msra.mxu0 %v4329
  %4353 = vmatprep.subr.bf16.mxu0 0
  %4354 = vmatpush1.bf16.msra.mxu0 %v4330
  %4355 = vmatprep.subr.bf16.mxu0 0
  %4356 = vmatpush1.bf16.msra.mxu0 0
  %4357 = vmatprep.subr.bf16.mxu0 0
  %4358 = vmatpush1.bf16.msra.mxu0 0
  %4359 = vmatprep.subr.bf16.mxu0 0
  %4360 = vmatpush1.bf16.msra.mxu0 0
  %4361 = vmatprep.subr.bf16.mxu0 0
  %4362 = vmatpush1.bf16.msra.mxu0 0
  %4363 = vmatprep.subr.bf16.mxu0 0
  %4364 = vmatpush1.bf16.msra.mxu0 0
  %4365 = vmatprep.subr.bf16.mxu0 0
  %4366 = vmatpush1.bf16.msra.mxu0 0
  %4367 = vmatprep.subr.bf16.mxu0 0
  %4368 = vmatpush1.bf16.msra.mxu0 0
  %4369 = vmatprep.subr.bf16.mxu0 0
  %4370 = vmatpush1.bf16.msra.mxu0 0
  %4371 = vmatprep.mubr.bf16.mxu0 0
  %4372 = vmatmul.mubr.bf16.gmra.mrb[0].mxu0 %v4267
  %v4373 = vpop.f32.mrb[0].mxu0
  %v4374 = vadd.f32 %v4289, %v4373
  %v4375 = vpop.f32.mrb[0].mxu0
  %v4376 = vpop.f32.mrb[0].mxu0
  %v4377 = vadd.f32 %v4289, %v4376
  %v4378 = vpop.f32.mrb[0].mxu0
  %4379 = vdwg.mxu0
  %4380 = vmax.xlane.f32.xlu0 %v4374
  %v4381 = vpop.xlane.xlu0 %4380
  %4382 = vmax.xlane.f32.xlu0 %v4377
  %v4383 = vpop.xlane.xlu0 %4382
  %v4384 = vsub.f32 %v4374, %v4381
  %v4385 = vsub.f32 %v4377, %v4383
  %v4386 = vmul.f32 %v4384, 1.442695
  %v4387 = vpow.pop %v4386
  %v4388 = vmul.f32 %v4385, 1.442695
  %v4389 = vpow.pop %v4388
  %4390 = vadd.xlane.f32.xlu0 %v4387
  %v4391 = vpop.xlane.xlu0 %4390
  %4392 = vadd.xlane.f32.xlu0 %v4389
  %v4393 = vpop.xlane.xlu0 %4392
  %v4394 = vrcp.pop %v4391
  %v4395 = vrcp.pop %v4393
  %v4396 = vmul.f32 %v4387, %v4394
  %v4397 = vmul.f32 %v4389, %v4395
  %4398 = vst [vmem:[%s11] sm:$0xff] %v4396
  %4399 = vst [vmem:[%s11 + $0x8] sm:$0xff] %v4397
  // Predicated region
  $region46: #{dnn_forward.1} parent=0 // pred_check
    _
  $region47: #{dnn_forward.1} parent=0 // pred_check_branch
    %4401 = sbr.rel (0) target = $region49
  $region48: #{dnn_forward.1} parent=0 // pred_region
    _
  $region49: #{dnn_forward.1} parent=0 // pred_fallthru
    _
  // Predicated region
  $region50: #{dnn_forward.1} parent=0 // pred_check
    _
  $region51: #{dnn_forward.1} parent=0 // pred_check_branch
    %4403 = sbr.rel (0) target = $region53
  $region52: #{dnn_forward.1} parent=0 // pred_region
    _
  $region53: #{dnn_forward.1} parent=0 // pred_fallthru
    _

</llo_original>
